<compile_context>
chip_gen: v7x
topology: tpu7x:2x2x1
jax: 0.10.0
libtpu: 0.0.40
codegen_flags: <defaults>
</compile_context>

<pallas_src>
import jax
import jax.numpy as jnp
from jax.experimental import pallas as pl
from jax.experimental.pallas import tpu as pltpu

# ----------------------------- static config --------------------------------
BS = 2                 # batch size
N = 8                  # set size (x is bs x n x n  ->  in_dim == n)
IN_DIM = N
HIDDEN = 32
HIDDEN_INITIAL = 32
HIDDEN_FINAL = 32
LATENT = 8
SET_CHANNELS = 8
MAX_N = 8
AGG_MULT = 4           # PNA: mean, max, min, std

W_COLS = 32            # lane width of the packed slabs (= max out_features)
B_STRIDE = 8           # each bias gets its own 8-row (sublane-aligned) block

# (name, in_rows, out_cols) — packed back-to-back along rows.  All row offsets
# land on multiples of 8 (sublane-tile aligned static slices inside the kernel).
_WEIGHT_LAYOUT = [
    ("enc_wi0", IN_DIM, HIDDEN_INITIAL),
    ("enc_wi1", HIDDEN_INITIAL, HIDDEN),
    ("enc_wl0", HIDDEN, HIDDEN),
    ("enc_wl1", HIDDEN, HIDDEN),
    ("enc_wf0", AGG_MULT * HIDDEN, HIDDEN_FINAL),
    ("enc_wf1_mu", HIDDEN_FINAL, LATENT),
    ("enc_wf1_lv", HIDDEN_FINAL, LATENT),
    ("dec_wi0", SET_CHANNELS, HIDDEN_INITIAL),
    ("dec_wmod", LATENT, HIDDEN_INITIAL),
    ("dec_wi1", HIDDEN_INITIAL, HIDDEN),
    ("dec_wl0", HIDDEN, HIDDEN),
    ("dec_wl1", HIDDEN, HIDDEN),
    ("dec_wf0", HIDDEN, HIDDEN_FINAL),
    ("dec_wf1", HIDDEN_FINAL, MAX_N),
    ("gen_points", MAX_N, SET_CHANNELS),
]
W_OFF = {}
_off = 0
for _n, _r, _c in _WEIGHT_LAYOUT:
    W_OFF[_n] = _off
    _off += _r
W_ROWS = _off                                    # 480
W_SHAPE = {_n: (_r, _c) for _n, _r, _c in _WEIGHT_LAYOUT}

_BIAS_LAYOUT = [
    ("enc_bi0", HIDDEN_INITIAL), ("enc_bi1", HIDDEN),
    ("enc_bl0", HIDDEN), ("enc_bl1", HIDDEN),
    ("enc_bf0", HIDDEN_FINAL), ("enc_bf1_mu", LATENT), ("enc_bf1_lv", LATENT),
    ("dec_bi0", HIDDEN_INITIAL), ("dec_bmod", HIDDEN_INITIAL), ("dec_bi1", HIDDEN),
    ("dec_bl0", HIDDEN), ("dec_bl1", HIDDEN),
    ("dec_bf0", HIDDEN_FINAL), ("dec_bf1", MAX_N),
]
B_IDX = {name: i for i, (name, _) in enumerate(_BIAS_LAYOUT)}
B_WIDTH = {name: c for name, c in _BIAS_LAYOUT}
B_ROWS = len(_BIAS_LAYOUT) * B_STRIDE            # 112


# ----------------------------- fused kernel ----------------------------------
def vae_kernel(x_ref, eps_ref, w_ref, b_ref, out_ref, mu_ref, lv_ref):
    def W(name):
        r0 = W_OFF[name]
        rows, cols = W_SHAPE[name]
        return w_ref[r0:r0 + rows, :cols]

    def B(name):
        r0 = B_IDX[name] * B_STRIDE
        return b_ref[r0:r0 + 1, :B_WIDTH[name]]             # (1, out) broadcast row

    def dot(a, b):
        return jnp.dot(a, b, preferred_element_type=jnp.float32)

    relu = lambda v: jnp.maximum(v, 0.0)

    # --------------- encoder trunk, batched over all BS*N rows ---------------
    x = x_ref[...]                                           # (BS*N, IN_DIM)
    h = relu(dot(x, W("enc_wi0")) + B("enc_bi0"))
    x = relu(dot(h, W("enc_wi1")) + B("enc_bi1"))            # (BS*N, HIDDEN)
    out0 = relu(dot(x, W("enc_wl0")) + B("enc_bl0"))
    x = out0 + x
    out1 = relu(dot(x, W("enc_wl1")) + B("enc_bl1"))
    x = out1 + x                                             # (BS*N, HIDDEN)

    # FirstKGenerator points are batch-shared -> decoder first linear once.
    pts = W("gen_points")[:N, :]                             # (N, SET_CHANNELS)
    base = dot(pts, W("dec_wi0")) + B("dec_bi0")             # (N, HIDDEN_INITIAL)

    wf0 = W("enc_wf0")                                       # (4*HIDDEN, HIDDEN_FINAL)
    eps = eps_ref[...]                                       # (BS, LATENT)
    H = HIDDEN

    for b in range(BS):                                      # static unroll (BS == 2)
        xb = x[b * N:(b + 1) * N, :]                         # (N, HIDDEN)

        # PNA pooling over the set axis: mean / max / min / std
        mean = jnp.mean(xb, axis=0, keepdims=True)
        mx = jnp.max(xb, axis=0, keepdims=True)
        mn = jnp.min(xb, axis=0, keepdims=True)
        diff = xb - mean
        var = jnp.sum(diff * diff, axis=0, keepdims=True) / (N - 1)  # torch.std (unbiased)
        std = jnp.sqrt(jnp.maximum(var, 0.0))

        # relu(concat([mean,max,min,std])) @ Wf0 as a sum over the 4 row blocks
        # of Wf0 (avoids an unaligned lane-dim concatenate in-kernel).
        hb = (dot(relu(mean), wf0[0 * H:1 * H, :])
              + dot(relu(mx), wf0[1 * H:2 * H, :])
              + dot(relu(mn), wf0[2 * H:3 * H, :])
              + dot(relu(std), wf0[3 * H:4 * H, :])
              + B("enc_bf0"))
        hb = relu(hb)                                        # (1, HIDDEN_FINAL)

        mu_b = dot(hb, W("enc_wf1_mu")) + B("enc_bf1_mu")    # (1, LATENT)
        lv_b = dot(hb, W("enc_wf1_lv")) + B("enc_bf1_lv")    # (1, LATENT)
        mu_ref[b:b + 1, :] = mu_b
        lv_ref[b:b + 1, :] = lv_b

        # reparameterize exactly as the PyTorch source: std = log_var ** 2
        lat_b = mu_b + eps[b:b + 1, :] * (lv_b * lv_b)       # (1, LATENT)

        # -------------------------------- decoder -----------------------------
        mod_b = dot(lat_b, W("dec_wmod")) + B("dec_bmod")    # (1, HIDDEN_INITIAL)
        hd = relu(base + mod_b)                              # (N, HIDDEN_INITIAL)
        xd = relu(dot(hd, W("dec_wi1")) + B("dec_bi1"))      # (N, HIDDEN)
        o0 = relu(dot(xd, W("dec_wl0")) + B("dec_bl0"))
        xd = o0 + xd
        o1 = relu(dot(xd, W("dec_wl1")) + B("dec_bl1"))
        xd = o1 + xd
        hf = relu(dot(xd, W("dec_wf0")) + B("dec_bf0"))      # (N, HIDDEN_FINAL)
        ob = dot(hf, W("dec_wf1")) + B("dec_bf1")            # (N, MAX_N)
        out_ref[b] = ob


# ----------------------------- wrapper ---------------------------------------
def set_transformer_vae_forward(x, w_slab, b_slab, key):
    """x: (BS, N, N).  Returns [[out, None], latent_mean, log_var, predicted_n]."""
    assert x.shape == (BS, N, IN_DIM)
    eps = jax.random.normal(key, (BS, LATENT), dtype=jnp.float32)
    x2d = x.reshape(BS * N, IN_DIM)

    out, mu, log_var = pl.pallas_call(
        vae_kernel,
        out_shape=(
            jax.ShapeDtypeStruct((BS, N, MAX_N), jnp.float32),
            jax.ShapeDtypeStruct((BS, LATENT), jnp.float32),
            jax.ShapeDtypeStruct((BS, LATENT), jnp.float32),
        ),
        grid=(1,),
        in_specs=[
            pl.BlockSpec((BS * N, IN_DIM), lambda i: (0, 0)),
            pl.BlockSpec((BS, LATENT), lambda i: (0, 0)),
            pl.BlockSpec((W_ROWS, W_COLS), lambda i: (0, 0)),
            pl.BlockSpec((B_ROWS, W_COLS), lambda i: (0, 0)),
        ],
        out_specs=(
            pl.BlockSpec((BS, N, MAX_N), lambda i: (0, 0, 0)),
            pl.BlockSpec((BS, LATENT), lambda i: (0, 0)),
            pl.BlockSpec((BS, LATENT), lambda i: (0, 0)),
        ),
        compiler_params=pltpu.CompilerParams(dimension_semantics=("arbitrary",)),
    )(x2d, eps, w_slab, b_slab)

    predicted_n = None   # FirstKGenerator does not predict the set size
    return [[out, None], mu, log_var, predicted_n]


# ----------------------------- parameter init / packing ----------------------
def init_params(key):
    ks = iter(jax.random.split(key, 64))
    nrm = lambda shape: 0.1 * jax.random.normal(next(ks), shape, dtype=jnp.float32)
    p = {}
    # encoder: initial MLP
    p["enc_wi0"] = nrm((IN_DIM, HIDDEN_INITIAL)); p["enc_bi0"] = nrm((1, HIDDEN_INITIAL))
    p["enc_wi1"] = nrm((HIDDEN_INITIAL, HIDDEN)); p["enc_bi1"] = nrm((1, HIDDEN))
    # encoder: residual Linear blocks
    p["enc_wl0"] = nrm((HIDDEN, HIDDEN)); p["enc_bl0"] = nrm((1, HIDDEN))
    p["enc_wl1"] = nrm((HIDDEN, HIDDEN)); p["enc_bl1"] = nrm((1, HIDDEN))
    # encoder: final MLP (PNA aggregated dim -> 2*latent)
    p["enc_wf0"] = nrm((AGG_MULT * HIDDEN, HIDDEN_FINAL)); p["enc_bf0"] = nrm((1, HIDDEN_FINAL))
    p["enc_wf1"] = nrm((HIDDEN_FINAL, 2 * LATENT)); p["enc_bf1"] = nrm((1, 2 * LATENT))
    # set generator reference points
    p["gen_points"] = nrm((MAX_N, SET_CHANNELS))
    # decoder: modulated initial MLP
    p["dec_wi0"] = nrm((SET_CHANNELS, HIDDEN_INITIAL)); p["dec_bi0"] = nrm((1, HIDDEN_INITIAL))
    p["dec_wmod"] = nrm((LATENT, HIDDEN_INITIAL)); p["dec_bmod"] = nrm((1, HIDDEN_INITIAL))
    p["dec_wi1"] = nrm((HIDDEN_INITIAL, HIDDEN)); p["dec_bi1"] = nrm((1, HIDDEN))
    # decoder: residual Linear blocks
    p["dec_wl0"] = nrm((HIDDEN, HIDDEN)); p["dec_bl0"] = nrm((1, HIDDEN))
    p["dec_wl1"] = nrm((HIDDEN, HIDDEN)); p["dec_bl1"] = nrm((1, HIDDEN))
    # decoder: final MLP (hidden -> max_n)
    p["dec_wf0"] = nrm((HIDDEN, HIDDEN_FINAL)); p["dec_bf0"] = nrm((1, HIDDEN_FINAL))
    p["dec_wf1"] = nrm((HIDDEN_FINAL, MAX_N)); p["dec_bf1"] = nrm((1, MAX_N))
    return p


def pack_params(p):
    """Pack all weights/biases into two lane-padded f32 slabs (done once)."""
    full = dict(p)
    # split the encoder head so mu / log_var need no in-kernel lane slicing
    full["enc_wf1_mu"] = p["enc_wf1"][:, :LATENT]
    full["enc_wf1_lv"] = p["enc_wf1"][:, LATENT:]
    full["enc_bf1_mu"] = p["enc_bf1"][:, :LATENT]
    full["enc_bf1_lv"] = p["enc_bf1"][:, LATENT:]

    w_blocks = []
    for name, rows, cols in _WEIGHT_LAYOUT:
        w = full[name]
        assert w.shape == (rows, cols), (name, w.shape)
        w_blocks.append(jnp.pad(w, ((0, 0), (0, W_COLS - cols))))
    w_slab = jnp.concatenate(w_blocks, axis=0).astype(jnp.float32)    # (480, 32)

    b_blocks = []
    for name, cols in _BIAS_LAYOUT:
        bias = full[name]
        assert bias.shape == (1, cols), (name, bias.shape)
        b_blocks.append(jnp.pad(bias, ((0, B_STRIDE - 1), (0, W_COLS - cols))))
    b_slab = jnp.concatenate(b_blocks, axis=0).astype(jnp.float32)    # (112, 32)
    return w_slab, b_slab


if __name__ == "__main__":
    root = jax.random.PRNGKey(0)
    k_params, k_x, k_eps = jax.random.split(root, 3)
    params = init_params(k_params)
    w_slab, b_slab = pack_params(params)          # packed once, reused every call
    x = jax.random.normal(k_x, (BS, N, N), dtype=jnp.float32)

    fwd = jax.jit(set_transformer_vae_forward)
    result = fwd(x, w_slab, b_slab, k_eps)
    (out, _), latent_mean, log_var, predicted_n = result

    jax.block_until_ready(out)
    jax.block_until_ready(latent_mean)
    jax.block_until_ready(log_var)

    assert out.shape == (BS, N, MAX_N)
    assert latent_mean.shape == (BS, LATENT)
    assert log_var.shape == (BS, LATENT)
    assert bool(jnp.all(jnp.isfinite(out)))
    print("KERNEL_OK")
</pallas_src>

<mosaic_0001>
module attributes {stable_mosaic.version = 11 : i64} {
  func.func @vae_kernel(%arg0: i32, %arg1: memref<16x8xf32, #tpu.memory_space<vmem>>, %arg2: memref<2x8xf32, #tpu.memory_space<vmem>>, %arg3: memref<480x32xf32, #tpu.memory_space<vmem>>, %arg4: memref<112x32xf32, #tpu.memory_space<vmem>>, %arg5: memref<2x8x8xf32, #tpu.memory_space<vmem>>, %arg6: memref<2x8xf32, #tpu.memory_space<vmem>>, %arg7: memref<2x8xf32, #tpu.memory_space<vmem>>) attributes {dimension_semantics = [#tpu.dimension_semantics<arbitrary>], iteration_bounds = array<i64: 1>, scalar_prefetch = 0 : i64, scratch_operands = 0 : i64, tpu.core_type = #tpu.core_type<tc>, window_params = [{pipeline_mode = #tpu.pipeline_mode<synchronous>, transform_indices = @transform_0, window_bounds = array<i64: 16, 8>}, {pipeline_mode = #tpu.pipeline_mode<synchronous>, transform_indices = @transform_1, window_bounds = array<i64: 2, 8>}, {pipeline_mode = #tpu.pipeline_mode<synchronous>, transform_indices = @transform_2, window_bounds = array<i64: 480, 32>}, {pipeline_mode = #tpu.pipeline_mode<synchronous>, transform_indices = @transform_3, window_bounds = array<i64: 112, 32>}, {pipeline_mode = #tpu.pipeline_mode<synchronous>, transform_indices = @transform_4, window_bounds = array<i64: 2, 8, 8>}, {pipeline_mode = #tpu.pipeline_mode<synchronous>, transform_indices = @transform_5, window_bounds = array<i64: 2, 8>}, {pipeline_mode = #tpu.pipeline_mode<synchronous>, transform_indices = @transform_6, window_bounds = array<i64: 2, 8>}]} {
    %c0 = arith.constant 0 : index
    %c0_0 = arith.constant 0 : index
    %0 = vector.load %arg1[%c0, %c0_0] : memref<16x8xf32, #tpu.memory_space<vmem>>, vector<16x8xf32>
    %c0_1 = arith.constant 0 : index
    %c0_2 = arith.constant 0 : index
    %1 = vector.load %arg3[%c0_1, %c0_2] : memref<480x32xf32, #tpu.memory_space<vmem>>, vector<8x32xf32>
    %cst = arith.constant dense<0.000000e+00> : vector<16x32xf32>
    %2 = tpu.matmul %0, %1, %cst {dimension_numbers = #tpu.dot_dimension_numbers<[1], [0], [0], [1], [0, 0, 1, 1], [], []>} : vector<16x8xf32>, vector<8x32xf32>, vector<16x32xf32> -> vector<16x32xf32>
    %c0_3 = arith.constant 0 : index
    %c0_4 = arith.constant 0 : index
    %3 = vector.load %arg4[%c0_3, %c0_4] : memref<112x32xf32, #tpu.memory_space<vmem>>, vector<1x32xf32>
    %4 = vector.broadcast %3 : vector<1x32xf32> to vector<16x32xf32>
    %5 = arith.addf %2, %4 : vector<16x32xf32>
    %cst_5 = arith.constant 0.000000e+00 : f32
    %6 = vector.broadcast %cst_5 : f32 to vector<16x32xf32>
    %7 = arith.maximumf %5, %6 : vector<16x32xf32>
    %c8 = arith.constant 8 : index
    %c0_6 = arith.constant 0 : index
    %8 = vector.load %arg3[%c8, %c0_6] : memref<480x32xf32, #tpu.memory_space<vmem>>, vector<32x32xf32>
    %cst_7 = arith.constant dense<0.000000e+00> : vector<16x32xf32>
    %9 = tpu.matmul %7, %8, %cst_7 {dimension_numbers = #tpu.dot_dimension_numbers<[1], [0], [0], [1], [0, 0, 1, 1], [], []>} : vector<16x32xf32>, vector<32x32xf32>, vector<16x32xf32> -> vector<16x32xf32>
    %c8_8 = arith.constant 8 : index
    %c0_9 = arith.constant 0 : index
    %10 = vector.load %arg4[%c8_8, %c0_9] : memref<112x32xf32, #tpu.memory_space<vmem>>, vector<1x32xf32>
    %11 = vector.broadcast %10 : vector<1x32xf32> to vector<16x32xf32>
    %12 = arith.addf %9, %11 : vector<16x32xf32>
    %cst_10 = arith.constant 0.000000e+00 : f32
    %13 = vector.broadcast %cst_10 : f32 to vector<16x32xf32>
    %14 = arith.maximumf %12, %13 : vector<16x32xf32>
    %c40 = arith.constant 40 : index
    %c0_11 = arith.constant 0 : index
    %15 = vector.load %arg3[%c40, %c0_11] : memref<480x32xf32, #tpu.memory_space<vmem>>, vector<32x32xf32>
    %cst_12 = arith.constant dense<0.000000e+00> : vector<16x32xf32>
    %16 = tpu.matmul %14, %15, %cst_12 {dimension_numbers = #tpu.dot_dimension_numbers<[1], [0], [0], [1], [0, 0, 1, 1], [], []>} : vector<16x32xf32>, vector<32x32xf32>, vector<16x32xf32> -> vector<16x32xf32>
    %c16 = arith.constant 16 : index
    %c0_13 = arith.constant 0 : index
    %17 = vector.load %arg4[%c16, %c0_13] : memref<112x32xf32, #tpu.memory_space<vmem>>, vector<1x32xf32>
    %18 = vector.broadcast %17 : vector<1x32xf32> to vector<16x32xf32>
    %19 = arith.addf %16, %18 : vector<16x32xf32>
    %cst_14 = arith.constant 0.000000e+00 : f32
    %20 = vector.broadcast %cst_14 : f32 to vector<16x32xf32>
    %21 = arith.maximumf %19, %20 : vector<16x32xf32>
    %22 = arith.addf %21, %14 : vector<16x32xf32>
    %c72 = arith.constant 72 : index
    %c0_15 = arith.constant 0 : index
    %23 = vector.load %arg3[%c72, %c0_15] : memref<480x32xf32, #tpu.memory_space<vmem>>, vector<32x32xf32>
    %cst_16 = arith.constant dense<0.000000e+00> : vector<16x32xf32>
    %24 = tpu.matmul %22, %23, %cst_16 {dimension_numbers = #tpu.dot_dimension_numbers<[1], [0], [0], [1], [0, 0, 1, 1], [], []>} : vector<16x32xf32>, vector<32x32xf32>, vector<16x32xf32> -> vector<16x32xf32>
    %c24 = arith.constant 24 : index
    %c0_17 = arith.constant 0 : index
    %25 = vector.load %arg4[%c24, %c0_17] : memref<112x32xf32, #tpu.memory_space<vmem>>, vector<1x32xf32>
    %26 = vector.broadcast %25 : vector<1x32xf32> to vector<16x32xf32>
    %27 = arith.addf %24, %26 : vector<16x32xf32>
    %cst_18 = arith.constant 0.000000e+00 : f32
    %28 = vector.broadcast %cst_18 : f32 to vector<16x32xf32>
    %29 = arith.maximumf %27, %28 : vector<16x32xf32>
    %30 = arith.addf %29, %22 : vector<16x32xf32>
    %c472 = arith.constant 472 : index
    %c0_19 = arith.constant 0 : index
    %31 = vector.load %arg3[%c472, %c0_19] : memref<480x32xf32, #tpu.memory_space<vmem>>, vector<8x8xf32>
    %c296 = arith.constant 296 : index
    %c0_20 = arith.constant 0 : index
    %32 = vector.load %arg3[%c296, %c0_20] : memref<480x32xf32, #tpu.memory_space<vmem>>, vector<8x32xf32>
    %cst_21 = arith.constant dense<0.000000e+00> : vector<8x32xf32>
    %33 = tpu.matmul %31, %32, %cst_21 {dimension_numbers = #tpu.dot_dimension_numbers<[1], [0], [0], [1], [0, 0, 1, 1], [], []>} : vector<8x8xf32>, vector<8x32xf32>, vector<8x32xf32> -> vector<8x32xf32>
    %c56 = arith.constant 56 : index
    %c0_22 = arith.constant 0 : index
    %34 = vector.load %arg4[%c56, %c0_22] : memref<112x32xf32, #tpu.memory_space<vmem>>, vector<1x32xf32>
    %35 = vector.broadcast %34 : vector<1x32xf32> to vector<8x32xf32>
    %36 = arith.addf %33, %35 : vector<8x32xf32>
    %c104 = arith.constant 104 : index
    %c0_23 = arith.constant 0 : index
    %37 = vector.load %arg3[%c104, %c0_23] : memref<480x32xf32, #tpu.memory_space<vmem>>, vector<128x32xf32>
    %c0_24 = arith.constant 0 : index
    %c0_25 = arith.constant 0 : index
    %38 = vector.load %arg2[%c0_24, %c0_25] : memref<2x8xf32, #tpu.memory_space<vmem>>, vector<2x8xf32>
    %39 = vector.extract_strided_slice %30 {offsets = [0, 0], sizes = [8, 32], strides = [1, 1]} : vector<16x32xf32> to vector<8x32xf32>
    %cst_26 = arith.constant dense<0.000000e+00> : vector<32xf32>
    %40 = vector.multi_reduction <add>, %39, %cst_26 [0] : vector<8x32xf32> to vector<32xf32>
    %41 = vector.shape_cast %40 : vector<32xf32> to vector<1x32xf32>
    %cst_27 = arith.constant 8.000000e+00 : f32
    %42 = vector.broadcast %cst_27 : f32 to vector<1x32xf32>
    %43 = arith.divf %41, %42 : vector<1x32xf32>
    %cst_28 = arith.constant dense<0xFF800000> : vector<32xf32>
    %44 = vector.multi_reduction <maximumf>, %39, %cst_28 [0] : vector<8x32xf32> to vector<32xf32>
    %45 = vector.shape_cast %44 : vector<32xf32> to vector<1x32xf32>
    %cst_29 = arith.constant dense<0x7F800000> : vector<32xf32>
    %46 = vector.multi_reduction <minimumf>, %39, %cst_29 [0] : vector<8x32xf32> to vector<32xf32>
    %47 = vector.shape_cast %46 : vector<32xf32> to vector<1x32xf32>
    %48 = vector.broadcast %43 : vector<1x32xf32> to vector<8x32xf32>
    %49 = arith.subf %39, %48 : vector<8x32xf32>
    %50 = arith.mulf %49, %49 : vector<8x32xf32>
    %cst_30 = arith.constant dense<0.000000e+00> : vector<32xf32>
    %51 = vector.multi_reduction <add>, %50, %cst_30 [0] : vector<8x32xf32> to vector<32xf32>
    %52 = vector.shape_cast %51 : vector<32xf32> to vector<1x32xf32>
    %cst_31 = arith.constant 7.000000e+00 : f32
    %53 = vector.broadcast %cst_31 : f32 to vector<1x32xf32>
    %54 = arith.divf %52, %53 : vector<1x32xf32>
    %cst_32 = arith.constant 0.000000e+00 : f32
    %55 = vector.broadcast %cst_32 : f32 to vector<1x32xf32>
    %56 = arith.maximumf %54, %55 : vector<1x32xf32>
    %57 = math.sqrt %56 : vector<1x32xf32>
    %cst_33 = arith.constant 0.000000e+00 : f32
    %58 = vector.broadcast %cst_33 : f32 to vector<1x32xf32>
    %59 = arith.maximumf %43, %58 : vector<1x32xf32>
    %60 = vector.extract_strided_slice %37 {offsets = [0, 0], sizes = [32, 32], strides = [1, 1]} : vector<128x32xf32> to vector<32x32xf32>
    %cst_34 = arith.constant dense<0.000000e+00> : vector<1x32xf32>
    %61 = tpu.matmul %59, %60, %cst_34 {dimension_numbers = #tpu.dot_dimension_numbers<[1], [0], [0], [1], [0, 0, 1, 1], [], []>} : vector<1x32xf32>, vector<32x32xf32>, vector<1x32xf32> -> vector<1x32xf32>
    %cst_35 = arith.constant 0.000000e+00 : f32
    %62 = vector.broadcast %cst_35 : f32 to vector<1x32xf32>
    %63 = arith.maximumf %45, %62 : vector<1x32xf32>
    %64 = vector.extract_strided_slice %37 {offsets = [32, 0], sizes = [32, 32], strides = [1, 1]} : vector<128x32xf32> to vector<32x32xf32>
    %cst_36 = arith.constant dense<0.000000e+00> : vector<1x32xf32>
    %65 = tpu.matmul %63, %64, %cst_36 {dimension_numbers = #tpu.dot_dimension_numbers<[1], [0], [0], [1], [0, 0, 1, 1], [], []>} : vector<1x32xf32>, vector<32x32xf32>, vector<1x32xf32> -> vector<1x32xf32>
    %66 = arith.addf %61, %65 : vector<1x32xf32>
    %cst_37 = arith.constant 0.000000e+00 : f32
    %67 = vector.broadcast %cst_37 : f32 to vector<1x32xf32>
    %68 = arith.maximumf %47, %67 : vector<1x32xf32>
    %69 = vector.extract_strided_slice %37 {offsets = [64, 0], sizes = [32, 32], strides = [1, 1]} : vector<128x32xf32> to vector<32x32xf32>
    %cst_38 = arith.constant dense<0.000000e+00> : vector<1x32xf32>
    %70 = tpu.matmul %68, %69, %cst_38 {dimension_numbers = #tpu.dot_dimension_numbers<[1], [0], [0], [1], [0, 0, 1, 1], [], []>} : vector<1x32xf32>, vector<32x32xf32>, vector<1x32xf32> -> vector<1x32xf32>
    %71 = arith.addf %66, %70 : vector<1x32xf32>
    %cst_39 = arith.constant 0.000000e+00 : f32
    %72 = vector.broadcast %cst_39 : f32 to vector<1x32xf32>
    %73 = arith.maximumf %57, %72 : vector<1x32xf32>
    %74 = vector.extract_strided_slice %37 {offsets = [96, 0], sizes = [32, 32], strides = [1, 1]} : vector<128x32xf32> to vector<32x32xf32>
    %cst_40 = arith.constant dense<0.000000e+00> : vector<1x32xf32>
    %75 = tpu.matmul %73, %74, %cst_40 {dimension_numbers = #tpu.dot_dimension_numbers<[1], [0], [0], [1], [0, 0, 1, 1], [], []>} : vector<1x32xf32>, vector<32x32xf32>, vector<1x32xf32> -> vector<1x32xf32>
    %76 = arith.addf %71, %75 : vector<1x32xf32>
    %c32 = arith.constant 32 : index
    %c0_41 = arith.constant 0 : index
    %77 = vector.load %arg4[%c32, %c0_41] : memref<112x32xf32, #tpu.memory_space<vmem>>, vector<1x32xf32>
    %78 = arith.addf %76, %77 : vector<1x32xf32>
    %cst_42 = arith.constant 0.000000e+00 : f32
    %79 = vector.broadcast %cst_42 : f32 to vector<1x32xf32>
    %80 = arith.maximumf %78, %79 : vector<1x32xf32>
    %c232 = arith.constant 232 : index
    %c0_43 = arith.constant 0 : index
    %81 = vector.load %arg3[%c232, %c0_43] : memref<480x32xf32, #tpu.memory_space<vmem>>, vector<32x8xf32>
    %cst_44 = arith.constant dense<0.000000e+00> : vector<1x8xf32>
    %82 = tpu.matmul %80, %81, %cst_44 {dimension_numbers = #tpu.dot_dimension_numbers<[1], [0], [0], [1], [0, 0, 1, 1], [], []>} : vector<1x32xf32>, vector<32x8xf32>, vector<1x8xf32> -> vector<1x8xf32>
    %c40_45 = arith.constant 40 : index
    %c0_46 = arith.constant 0 : index
    %83 = vector.load %arg4[%c40_45, %c0_46] : memref<112x32xf32, #tpu.memory_space<vmem>>, vector<1x8xf32>
    %84 = arith.addf %82, %83 : vector<1x8xf32>
    %c264 = arith.constant 264 : index
    %c0_47 = arith.constant 0 : index
    %85 = vector.load %arg3[%c264, %c0_47] : memref<480x32xf32, #tpu.memory_space<vmem>>, vector<32x8xf32>
    %cst_48 = arith.constant dense<0.000000e+00> : vector<1x8xf32>
    %86 = tpu.matmul %80, %85, %cst_48 {dimension_numbers = #tpu.dot_dimension_numbers<[1], [0], [0], [1], [0, 0, 1, 1], [], []>} : vector<1x32xf32>, vector<32x8xf32>, vector<1x8xf32> -> vector<1x8xf32>
    %c48 = arith.constant 48 : index
    %c0_49 = arith.constant 0 : index
    %87 = vector.load %arg4[%c48, %c0_49] : memref<112x32xf32, #tpu.memory_space<vmem>>, vector<1x8xf32>
    %88 = arith.addf %86, %87 : vector<1x8xf32>
    %c0_50 = arith.constant 0 : index
    %c0_51 = arith.constant 0 : index
    %89 = vector.load %arg6[%c0_50, %c0_51] : memref<2x8xf32, #tpu.memory_space<vmem>>, vector<1x8xf32>
    tpu.vector_store %arg6[%c0_50, %c0_51], %84 {strides = array<i32>} : memref<2x8xf32, #tpu.memory_space<vmem>>, vector<1x8xf32>,
    %c0_52 = arith.constant 0 : index
    %c0_53 = arith.constant 0 : index
    %90 = vector.load %arg7[%c0_52, %c0_53] : memref<2x8xf32, #tpu.memory_space<vmem>>, vector<1x8xf32>
    tpu.vector_store %arg7[%c0_52, %c0_53], %88 {strides = array<i32>} : memref<2x8xf32, #tpu.memory_space<vmem>>, vector<1x8xf32>,
    %91 = vector.extract_strided_slice %38 {offsets = [0, 0], sizes = [1, 8], strides = [1, 1]} : vector<2x8xf32> to vector<1x8xf32>
    %92 = arith.mulf %88, %88 : vector<1x8xf32>
    %93 = arith.mulf %91, %92 : vector<1x8xf32>
    %94 = arith.addf %84, %93 : vector<1x8xf32>
    %c304 = arith.constant 304 : index
    %c0_54 = arith.constant 0 : index
    %95 = vector.load %arg3[%c304, %c0_54] : memref<480x32xf32, #tpu.memory_space<vmem>>, vector<8x32xf32>
    %cst_55 = arith.constant dense<0.000000e+00> : vector<1x32xf32>
    %96 = tpu.matmul %94, %95, %cst_55 {dimension_numbers = #tpu.dot_dimension_numbers<[1], [0], [0], [1], [0, 0, 1, 1], [], []>} : vector<1x8xf32>, vector<8x32xf32>, vector<1x32xf32> -> vector<1x32xf32>
    %c64 = arith.constant 64 : index
    %c0_56 = arith.constant 0 : index
    %97 = vector.load %arg4[%c64, %c0_56] : memref<112x32xf32, #tpu.memory_space<vmem>>, vector<1x32xf32>
    %98 = arith.addf %96, %97 : vector<1x32xf32>
    %99 = vector.broadcast %98 : vector<1x32xf32> to vector<8x32xf32>
    %100 = arith.addf %36, %99 : vector<8x32xf32>
    %cst_57 = arith.constant 0.000000e+00 : f32
    %101 = vector.broadcast %cst_57 : f32 to vector<8x32xf32>
    %102 = arith.maximumf %100, %101 : vector<8x32xf32>
    %c312 = arith.constant 312 : index
    %c0_58 = arith.constant 0 : index
    %103 = vector.load %arg3[%c312, %c0_58] : memref<480x32xf32, #tpu.memory_space<vmem>>, vector<32x32xf32>
    %cst_59 = arith.constant dense<0.000000e+00> : vector<8x32xf32>
    %104 = tpu.matmul %102, %103, %cst_59 {dimension_numbers = #tpu.dot_dimension_numbers<[1], [0], [0], [1], [0, 0, 1, 1], [], []>} : vector<8x32xf32>, vector<32x32xf32>, vector<8x32xf32> -> vector<8x32xf32>
    %c72_60 = arith.constant 72 : index
    %c0_61 = arith.constant 0 : index
    %105 = vector.load %arg4[%c72_60, %c0_61] : memref<112x32xf32, #tpu.memory_space<vmem>>, vector<1x32xf32>
    %106 = vector.broadcast %105 : vector<1x32xf32> to vector<8x32xf32>
    %107 = arith.addf %104, %106 : vector<8x32xf32>
    %cst_62 = arith.constant 0.000000e+00 : f32
    %108 = vector.broadcast %cst_62 : f32 to vector<8x32xf32>
    %109 = arith.maximumf %107, %108 : vector<8x32xf32>
    %c344 = arith.constant 344 : index
    %c0_63 = arith.constant 0 : index
    %110 = vector.load %arg3[%c344, %c0_63] : memref<480x32xf32, #tpu.memory_space<vmem>>, vector<32x32xf32>
    %cst_64 = arith.constant dense<0.000000e+00> : vector<8x32xf32>
    %111 = tpu.matmul %109, %110, %cst_64 {dimension_numbers = #tpu.dot_dimension_numbers<[1], [0], [0], [1], [0, 0, 1, 1], [], []>} : vector<8x32xf32>, vector<32x32xf32>, vector<8x32xf32> -> vector<8x32xf32>
    %c80 = arith.constant 80 : index
    %c0_65 = arith.constant 0 : index
    %112 = vector.load %arg4[%c80, %c0_65] : memref<112x32xf32, #tpu.memory_space<vmem>>, vector<1x32xf32>
    %113 = vector.broadcast %112 : vector<1x32xf32> to vector<8x32xf32>
    %114 = arith.addf %111, %113 : vector<8x32xf32>
    %cst_66 = arith.constant 0.000000e+00 : f32
    %115 = vector.broadcast %cst_66 : f32 to vector<8x32xf32>
    %116 = arith.maximumf %114, %115 : vector<8x32xf32>
    %117 = arith.addf %116, %109 : vector<8x32xf32>
    %c376 = arith.constant 376 : index
    %c0_67 = arith.constant 0 : index
    %118 = vector.load %arg3[%c376, %c0_67] : memref<480x32xf32, #tpu.memory_space<vmem>>, vector<32x32xf32>
    %cst_68 = arith.constant dense<0.000000e+00> : vector<8x32xf32>
    %119 = tpu.matmul %117, %118, %cst_68 {dimension_numbers = #tpu.dot_dimension_numbers<[1], [0], [0], [1], [0, 0, 1, 1], [], []>} : vector<8x32xf32>, vector<32x32xf32>, vector<8x32xf32> -> vector<8x32xf32>
    %c88 = arith.constant 88 : index
    %c0_69 = arith.constant 0 : index
    %120 = vector.load %arg4[%c88, %c0_69] : memref<112x32xf32, #tpu.memory_space<vmem>>, vector<1x32xf32>
    %121 = vector.broadcast %120 : vector<1x32xf32> to vector<8x32xf32>
    %122 = arith.addf %119, %121 : vector<8x32xf32>
    %cst_70 = arith.constant 0.000000e+00 : f32
    %123 = vector.broadcast %cst_70 : f32 to vector<8x32xf32>
    %124 = arith.maximumf %122, %123 : vector<8x32xf32>
    %125 = arith.addf %124, %117 : vector<8x32xf32>
    %c408 = arith.constant 408 : index
    %c0_71 = arith.constant 0 : index
    %126 = vector.load %arg3[%c408, %c0_71] : memref<480x32xf32, #tpu.memory_space<vmem>>, vector<32x32xf32>
    %cst_72 = arith.constant dense<0.000000e+00> : vector<8x32xf32>
    %127 = tpu.matmul %125, %126, %cst_72 {dimension_numbers = #tpu.dot_dimension_numbers<[1], [0], [0], [1], [0, 0, 1, 1], [], []>} : vector<8x32xf32>, vector<32x32xf32>, vector<8x32xf32> -> vector<8x32xf32>
    %c96 = arith.constant 96 : index
    %c0_73 = arith.constant 0 : index
    %128 = vector.load %arg4[%c96, %c0_73] : memref<112x32xf32, #tpu.memory_space<vmem>>, vector<1x32xf32>
    %129 = vector.broadcast %128 : vector<1x32xf32> to vector<8x32xf32>
    %130 = arith.addf %127, %129 : vector<8x32xf32>
    %cst_74 = arith.constant 0.000000e+00 : f32
    %131 = vector.broadcast %cst_74 : f32 to vector<8x32xf32>
    %132 = arith.maximumf %130, %131 : vector<8x32xf32>
    %c440 = arith.constant 440 : index
    %c0_75 = arith.constant 0 : index
    %133 = vector.load %arg3[%c440, %c0_75] : memref<480x32xf32, #tpu.memory_space<vmem>>, vector<32x8xf32>
    %cst_76 = arith.constant dense<0.000000e+00> : vector<8x8xf32>
    %134 = tpu.matmul %132, %133, %cst_76 {dimension_numbers = #tpu.dot_dimension_numbers<[1], [0], [0], [1], [0, 0, 1, 1], [], []>} : vector<8x32xf32>, vector<32x8xf32>, vector<8x8xf32> -> vector<8x8xf32>
    %c104_77 = arith.constant 104 : index
    %c0_78 = arith.constant 0 : index
    %135 = vector.load %arg4[%c104_77, %c0_78] : memref<112x32xf32, #tpu.memory_space<vmem>>, vector<1x8xf32>
    %136 = vector.broadcast %135 : vector<1x8xf32> to vector<8x8xf32>
    %137 = arith.addf %134, %136 : vector<8x8xf32>
    %c0_79 = arith.constant 0 : index
    %c0_80 = arith.constant 0 : index
    %c0_81 = arith.constant 0 : index
    %138 = vector.load %arg5[%c0_79, %c0_80, %c0_81] : memref<2x8x8xf32, #tpu.memory_space<vmem>>, vector<1x8x8xf32>
    %139 = vector.shape_cast %138 : vector<1x8x8xf32> to vector<8x8xf32>
    %140 = vector.shape_cast %137 : vector<8x8xf32> to vector<1x8x8xf32>
    tpu.vector_store %arg5[%c0_79, %c0_80, %c0_81], %140 {strides = array<i32>} : memref<2x8x8xf32, #tpu.memory_space<vmem>>, vector<1x8x8xf32>,
    %141 = vector.extract_strided_slice %30 {offsets = [8, 0], sizes = [8, 32], strides = [1, 1]} : vector<16x32xf32> to vector<8x32xf32>
    %cst_82 = arith.constant dense<0.000000e+00> : vector<32xf32>
    %142 = vector.multi_reduction <add>, %141, %cst_82 [0] : vector<8x32xf32> to vector<32xf32>
    %143 = vector.shape_cast %142 : vector<32xf32> to vector<1x32xf32>
    %cst_83 = arith.constant 8.000000e+00 : f32
    %144 = vector.broadcast %cst_83 : f32 to vector<1x32xf32>
    %145 = arith.divf %143, %144 : vector<1x32xf32>
    %cst_84 = arith.constant dense<0xFF800000> : vector<32xf32>
    %146 = vector.multi_reduction <maximumf>, %141, %cst_84 [0] : vector<8x32xf32> to vector<32xf32>
    %147 = vector.shape_cast %146 : vector<32xf32> to vector<1x32xf32>
    %cst_85 = arith.constant dense<0x7F800000> : vector<32xf32>
    %148 = vector.multi_reduction <minimumf>, %141, %cst_85 [0] : vector<8x32xf32> to vector<32xf32>
    %149 = vector.shape_cast %148 : vector<32xf32> to vector<1x32xf32>
    %150 = vector.broadcast %145 : vector<1x32xf32> to vector<8x32xf32>
    %151 = arith.subf %141, %150 : vector<8x32xf32>
    %152 = arith.mulf %151, %151 : vector<8x32xf32>
    %cst_86 = arith.constant dense<0.000000e+00> : vector<32xf32>
    %153 = vector.multi_reduction <add>, %152, %cst_86 [0] : vector<8x32xf32> to vector<32xf32>
    %154 = vector.shape_cast %153 : vector<32xf32> to vector<1x32xf32>
    %cst_87 = arith.constant 7.000000e+00 : f32
    %155 = vector.broadcast %cst_87 : f32 to vector<1x32xf32>
    %156 = arith.divf %154, %155 : vector<1x32xf32>
    %cst_88 = arith.constant 0.000000e+00 : f32
    %157 = vector.broadcast %cst_88 : f32 to vector<1x32xf32>
    %158 = arith.maximumf %156, %157 : vector<1x32xf32>
    %159 = math.sqrt %158 : vector<1x32xf32>
    %cst_89 = arith.constant 0.000000e+00 : f32
    %160 = vector.broadcast %cst_89 : f32 to vector<1x32xf32>
    %161 = arith.maximumf %145, %160 : vector<1x32xf32>
    %162 = vector.extract_strided_slice %37 {offsets = [0, 0], sizes = [32, 32], strides = [1, 1]} : vector<128x32xf32> to vector<32x32xf32>
    %cst_90 = arith.constant dense<0.000000e+00> : vector<1x32xf32>
    %163 = tpu.matmul %161, %162, %cst_90 {dimension_numbers = #tpu.dot_dimension_numbers<[1], [0], [0], [1], [0, 0, 1, 1], [], []>} : vector<1x32xf32>, vector<32x32xf32>, vector<1x32xf32> -> vector<1x32xf32>
    %cst_91 = arith.constant 0.000000e+00 : f32
    %164 = vector.broadcast %cst_91 : f32 to vector<1x32xf32>
    %165 = arith.maximumf %147, %164 : vector<1x32xf32>
    %166 = vector.extract_strided_slice %37 {offsets = [32, 0], sizes = [32, 32], strides = [1, 1]} : vector<128x32xf32> to vector<32x32xf32>
    %cst_92 = arith.constant dense<0.000000e+00> : vector<1x32xf32>
    %167 = tpu.matmul %165, %166, %cst_92 {dimension_numbers = #tpu.dot_dimension_numbers<[1], [0], [0], [1], [0, 0, 1, 1], [], []>} : vector<1x32xf32>, vector<32x32xf32>, vector<1x32xf32> -> vector<1x32xf32>
    %168 = arith.addf %163, %167 : vector<1x32xf32>
    %cst_93 = arith.constant 0.000000e+00 : f32
    %169 = vector.broadcast %cst_93 : f32 to vector<1x32xf32>
    %170 = arith.maximumf %149, %169 : vector<1x32xf32>
    %171 = vector.extract_strided_slice %37 {offsets = [64, 0], sizes = [32, 32], strides = [1, 1]} : vector<128x32xf32> to vector<32x32xf32>
    %cst_94 = arith.constant dense<0.000000e+00> : vector<1x32xf32>
    %172 = tpu.matmul %170, %171, %cst_94 {dimension_numbers = #tpu.dot_dimension_numbers<[1], [0], [0], [1], [0, 0, 1, 1], [], []>} : vector<1x32xf32>, vector<32x32xf32>, vector<1x32xf32> -> vector<1x32xf32>
    %173 = arith.addf %168, %172 : vector<1x32xf32>
    %cst_95 = arith.constant 0.000000e+00 : f32
    %174 = vector.broadcast %cst_95 : f32 to vector<1x32xf32>
    %175 = arith.maximumf %159, %174 : vector<1x32xf32>
    %176 = vector.extract_strided_slice %37 {offsets = [96, 0], sizes = [32, 32], strides = [1, 1]} : vector<128x32xf32> to vector<32x32xf32>
    %cst_96 = arith.constant dense<0.000000e+00> : vector<1x32xf32>
    %177 = tpu.matmul %175, %176, %cst_96 {dimension_numbers = #tpu.dot_dimension_numbers<[1], [0], [0], [1], [0, 0, 1, 1], [], []>} : vector<1x32xf32>, vector<32x32xf32>, vector<1x32xf32> -> vector<1x32xf32>
    %178 = arith.addf %173, %177 : vector<1x32xf32>
    %c32_97 = arith.constant 32 : index
    %c0_98 = arith.constant 0 : index
    %179 = vector.load %arg4[%c32_97, %c0_98] : memref<112x32xf32, #tpu.memory_space<vmem>>, vector<1x32xf32>
    %180 = arith.addf %178, %179 : vector<1x32xf32>
    %cst_99 = arith.constant 0.000000e+00 : f32
    %181 = vector.broadcast %cst_99 : f32 to vector<1x32xf32>
    %182 = arith.maximumf %180, %181 : vector<1x32xf32>
    %c232_100 = arith.constant 232 : index
    %c0_101 = arith.constant 0 : index
    %183 = vector.load %arg3[%c232_100, %c0_101] : memref<480x32xf32, #tpu.memory_space<vmem>>, vector<32x8xf32>
    %cst_102 = arith.constant dense<0.000000e+00> : vector<1x8xf32>
    %184 = tpu.matmul %182, %183, %cst_102 {dimension_numbers = #tpu.dot_dimension_numbers<[1], [0], [0], [1], [0, 0, 1, 1], [], []>} : vector<1x32xf32>, vector<32x8xf32>, vector<1x8xf32> -> vector<1x8xf32>
    %c40_103 = arith.constant 40 : index
    %c0_104 = arith.constant 0 : index
    %185 = vector.load %arg4[%c40_103, %c0_104] : memref<112x32xf32, #tpu.memory_space<vmem>>, vector<1x8xf32>
    %186 = arith.addf %184, %185 : vector<1x8xf32>
    %c264_105 = arith.constant 264 : index
    %c0_106 = arith.constant 0 : index
    %187 = vector.load %arg3[%c264_105, %c0_106] : memref<480x32xf32, #tpu.memory_space<vmem>>, vector<32x8xf32>
    %cst_107 = arith.constant dense<0.000000e+00> : vector<1x8xf32>
    %188 = tpu.matmul %182, %187, %cst_107 {dimension_numbers = #tpu.dot_dimension_numbers<[1], [0], [0], [1], [0, 0, 1, 1], [], []>} : vector<1x32xf32>, vector<32x8xf32>, vector<1x8xf32> -> vector<1x8xf32>
    %c48_108 = arith.constant 48 : index
    %c0_109 = arith.constant 0 : index
    %189 = vector.load %arg4[%c48_108, %c0_109] : memref<112x32xf32, #tpu.memory_space<vmem>>, vector<1x8xf32>
    %190 = arith.addf %188, %189 : vector<1x8xf32>
    %c1 = arith.constant 1 : index
    %c0_110 = arith.constant 0 : index
    %191 = vector.load %arg6[%c1, %c0_110] : memref<2x8xf32, #tpu.memory_space<vmem>>, vector<1x8xf32>
    tpu.vector_store %arg6[%c1, %c0_110], %186 {strides = array<i32>} : memref<2x8xf32, #tpu.memory_space<vmem>>, vector<1x8xf32>,
    %c1_111 = arith.constant 1 : index
    %c0_112 = arith.constant 0 : index
    %192 = vector.load %arg7[%c1_111, %c0_112] : memref<2x8xf32, #tpu.memory_space<vmem>>, vector<1x8xf32>
    tpu.vector_store %arg7[%c1_111, %c0_112], %190 {strides = array<i32>} : memref<2x8xf32, #tpu.memory_space<vmem>>, vector<1x8xf32>,
    %193 = vector.extract_strided_slice %38 {offsets = [1, 0], sizes = [1, 8], strides = [1, 1]} : vector<2x8xf32> to vector<1x8xf32>
    %194 = arith.mulf %190, %190 : vector<1x8xf32>
    %195 = arith.mulf %193, %194 : vector<1x8xf32>
    %196 = arith.addf %186, %195 : vector<1x8xf32>
    %c304_113 = arith.constant 304 : index
    %c0_114 = arith.constant 0 : index
    %197 = vector.load %arg3[%c304_113, %c0_114] : memref<480x32xf32, #tpu.memory_space<vmem>>, vector<8x32xf32>
    %cst_115 = arith.constant dense<0.000000e+00> : vector<1x32xf32>
    %198 = tpu.matmul %196, %197, %cst_115 {dimension_numbers = #tpu.dot_dimension_numbers<[1], [0], [0], [1], [0, 0, 1, 1], [], []>} : vector<1x8xf32>, vector<8x32xf32>, vector<1x32xf32> -> vector<1x32xf32>
    %c64_116 = arith.constant 64 : index
    %c0_117 = arith.constant 0 : index
    %199 = vector.load %arg4[%c64_116, %c0_117] : memref<112x32xf32, #tpu.memory_space<vmem>>, vector<1x32xf32>
    %200 = arith.addf %198, %199 : vector<1x32xf32>
    %201 = vector.broadcast %200 : vector<1x32xf32> to vector<8x32xf32>
    %202 = arith.addf %36, %201 : vector<8x32xf32>
    %cst_118 = arith.constant 0.000000e+00 : f32
    %203 = vector.broadcast %cst_118 : f32 to vector<8x32xf32>
    %204 = arith.maximumf %202, %203 : vector<8x32xf32>
    %c312_119 = arith.constant 312 : index
    %c0_120 = arith.constant 0 : index
    %205 = vector.load %arg3[%c312_119, %c0_120] : memref<480x32xf32, #tpu.memory_space<vmem>>, vector<32x32xf32>
    %cst_121 = arith.constant dense<0.000000e+00> : vector<8x32xf32>
    %206 = tpu.matmul %204, %205, %cst_121 {dimension_numbers = #tpu.dot_dimension_numbers<[1], [0], [0], [1], [0, 0, 1, 1], [], []>} : vector<8x32xf32>, vector<32x32xf32>, vector<8x32xf32> -> vector<8x32xf32>
    %c72_122 = arith.constant 72 : index
    %c0_123 = arith.constant 0 : index
    %207 = vector.load %arg4[%c72_122, %c0_123] : memref<112x32xf32, #tpu.memory_space<vmem>>, vector<1x32xf32>
    %208 = vector.broadcast %207 : vector<1x32xf32> to vector<8x32xf32>
    %209 = arith.addf %206, %208 : vector<8x32xf32>
    %cst_124 = arith.constant 0.000000e+00 : f32
    %210 = vector.broadcast %cst_124 : f32 to vector<8x32xf32>
    %211 = arith.maximumf %209, %210 : vector<8x32xf32>
    %c344_125 = arith.constant 344 : index
    %c0_126 = arith.constant 0 : index
    %212 = vector.load %arg3[%c344_125, %c0_126] : memref<480x32xf32, #tpu.memory_space<vmem>>, vector<32x32xf32>
    %cst_127 = arith.constant dense<0.000000e+00> : vector<8x32xf32>
    %213 = tpu.matmul %211, %212, %cst_127 {dimension_numbers = #tpu.dot_dimension_numbers<[1], [0], [0], [1], [0, 0, 1, 1], [], []>} : vector<8x32xf32>, vector<32x32xf32>, vector<8x32xf32> -> vector<8x32xf32>
    %c80_128 = arith.constant 80 : index
    %c0_129 = arith.constant 0 : index
    %214 = vector.load %arg4[%c80_128, %c0_129] : memref<112x32xf32, #tpu.memory_space<vmem>>, vector<1x32xf32>
    %215 = vector.broadcast %214 : vector<1x32xf32> to vector<8x32xf32>
    %216 = arith.addf %213, %215 : vector<8x32xf32>
    %cst_130 = arith.constant 0.000000e+00 : f32
    %217 = vector.broadcast %cst_130 : f32 to vector<8x32xf32>
    %218 = arith.maximumf %216, %217 : vector<8x32xf32>
    %219 = arith.addf %218, %211 : vector<8x32xf32>
    %c376_131 = arith.constant 376 : index
    %c0_132 = arith.constant 0 : index
    %220 = vector.load %arg3[%c376_131, %c0_132] : memref<480x32xf32, #tpu.memory_space<vmem>>, vector<32x32xf32>
    %cst_133 = arith.constant dense<0.000000e+00> : vector<8x32xf32>
    %221 = tpu.matmul %219, %220, %cst_133 {dimension_numbers = #tpu.dot_dimension_numbers<[1], [0], [0], [1], [0, 0, 1, 1], [], []>} : vector<8x32xf32>, vector<32x32xf32>, vector<8x32xf32> -> vector<8x32xf32>
    %c88_134 = arith.constant 88 : index
    %c0_135 = arith.constant 0 : index
    %222 = vector.load %arg4[%c88_134, %c0_135] : memref<112x32xf32, #tpu.memory_space<vmem>>, vector<1x32xf32>
    %223 = vector.broadcast %222 : vector<1x32xf32> to vector<8x32xf32>
    %224 = arith.addf %221, %223 : vector<8x32xf32>
    %cst_136 = arith.constant 0.000000e+00 : f32
    %225 = vector.broadcast %cst_136 : f32 to vector<8x32xf32>
    %226 = arith.maximumf %224, %225 : vector<8x32xf32>
    %227 = arith.addf %226, %219 : vector<8x32xf32>
    %c408_137 = arith.constant 408 : index
    %c0_138 = arith.constant 0 : index
    %228 = vector.load %arg3[%c408_137, %c0_138] : memref<480x32xf32, #tpu.memory_space<vmem>>, vector<32x32xf32>
    %cst_139 = arith.constant dense<0.000000e+00> : vector<8x32xf32>
    %229 = tpu.matmul %227, %228, %cst_139 {dimension_numbers = #tpu.dot_dimension_numbers<[1], [0], [0], [1], [0, 0, 1, 1], [], []>} : vector<8x32xf32>, vector<32x32xf32>, vector<8x32xf32> -> vector<8x32xf32>
    %c96_140 = arith.constant 96 : index
    %c0_141 = arith.constant 0 : index
    %230 = vector.load %arg4[%c96_140, %c0_141] : memref<112x32xf32, #tpu.memory_space<vmem>>, vector<1x32xf32>
    %231 = vector.broadcast %230 : vector<1x32xf32> to vector<8x32xf32>
    %232 = arith.addf %229, %231 : vector<8x32xf32>
    %cst_142 = arith.constant 0.000000e+00 : f32
    %233 = vector.broadcast %cst_142 : f32 to vector<8x32xf32>
    %234 = arith.maximumf %232, %233 : vector<8x32xf32>
    %c440_143 = arith.constant 440 : index
    %c0_144 = arith.constant 0 : index
    %235 = vector.load %arg3[%c440_143, %c0_144] : memref<480x32xf32, #tpu.memory_space<vmem>>, vector<32x8xf32>
    %cst_145 = arith.constant dense<0.000000e+00> : vector<8x8xf32>
    %236 = tpu.matmul %234, %235, %cst_145 {dimension_numbers = #tpu.dot_dimension_numbers<[1], [0], [0], [1], [0, 0, 1, 1], [], []>} : vector<8x32xf32>, vector<32x8xf32>, vector<8x8xf32> -> vector<8x8xf32>
    %c104_146 = arith.constant 104 : index
    %c0_147 = arith.constant 0 : index
    %237 = vector.load %arg4[%c104_146, %c0_147] : memref<112x32xf32, #tpu.memory_space<vmem>>, vector<1x8xf32>
    %238 = vector.broadcast %237 : vector<1x8xf32> to vector<8x8xf32>
    %239 = arith.addf %236, %238 : vector<8x8xf32>
    %c1_148 = arith.constant 1 : index
    %c0_149 = arith.constant 0 : index
    %c0_150 = arith.constant 0 : index
    %240 = vector.load %arg5[%c1_148, %c0_149, %c0_150] : memref<2x8x8xf32, #tpu.memory_space<vmem>>, vector<1x8x8xf32>
    %241 = vector.shape_cast %240 : vector<1x8x8xf32> to vector<8x8xf32>
    %242 = vector.shape_cast %239 : vector<8x8xf32> to vector<1x8x8xf32>
    tpu.vector_store %arg5[%c1_148, %c0_149, %c0_150], %242 {strides = array<i32>} : memref<2x8x8xf32, #tpu.memory_space<vmem>>, vector<1x8x8xf32>,
    return
  }
  func.func @transform_0(%arg0: i32) -> (i32, i32) {
    %c0_i32 = arith.constant 0 : i32
    %c0_i32_0 = arith.constant 0 : i32
    %c0_i32_1 = arith.constant 0 : i32
    return %c0_i32, %c0_i32_0 : i32, i32
  }
  func.func @transform_1(%arg0: i32) -> (i32, i32) {
    %c0_i32 = arith.constant 0 : i32
    %c0_i32_0 = arith.constant 0 : i32
    %c0_i32_1 = arith.constant 0 : i32
    return %c0_i32, %c0_i32_0 : i32, i32
  }
  func.func @transform_2(%arg0: i32) -> (i32, i32) {
    %c0_i32 = arith.constant 0 : i32
    %c0_i32_0 = arith.constant 0 : i32
    %c0_i32_1 = arith.constant 0 : i32
    return %c0_i32, %c0_i32_0 : i32, i32
  }
  func.func @transform_3(%arg0: i32) -> (i32, i32) {
    %c0_i32 = arith.constant 0 : i32
    %c0_i32_0 = arith.constant 0 : i32
    %c0_i32_1 = arith.constant 0 : i32
    return %c0_i32, %c0_i32_0 : i32, i32
  }
  func.func @transform_4(%arg0: i32) -> (i32, i32, i32) {
    %c0_i32 = arith.constant 0 : i32
    %c0_i32_0 = arith.constant 0 : i32
    %c0_i32_1 = arith.constant 0 : i32
    %c0_i32_2 = arith.constant 0 : i32
    return %c0_i32, %c0_i32_0, %c0_i32_1 : i32, i32, i32
  }
  func.func @transform_5(%arg0: i32) -> (i32, i32) {
    %c0_i32 = arith.constant 0 : i32
    %c0_i32_0 = arith.constant 0 : i32
    %c0_i32_1 = arith.constant 0 : i32
    return %c0_i32, %c0_i32_0 : i32, i32
  }
  func.func @transform_6(%arg0: i32) -> (i32, i32) {
    %c0_i32 = arith.constant 0 : i32
    %c0_i32_0 = arith.constant 0 : i32
    %c0_i32_1 = arith.constant 0 : i32
    return %c0_i32, %c0_i32_0 : i32, i32
  }
}

</mosaic_0001>

<llo_original>
// kernel: set_transformer_vae_forward.1
$region0: #{set_transformer_vae_forward.1}
  #allocation0 [shape = 'u32[]', space=smem, size = 0x4, offset = 0x4, fixed_abs, tag = 'smem constant byte address 0x4 - core index']
  #allocation1 [shape = 'u32[144,128]{1,0:T(1,128)}', space=vmem, size = 0x12000, scoped, tag = 'internal scratch']
  %s0 = inlined_call_operand.vmem [shape: f32[16,8], index: 0, kind: input, shape index: {}]
  %s1 = inlined_call_operand.vmem [shape: f32[2,8], index: 1, kind: input, shape index: {}]
  %s2 = inlined_call_operand.vmem [shape: f32[480,32], index: 2, kind: input, shape index: {}]
  %s3 = inlined_call_operand.vmem [shape: f32[112,32], index: 3, kind: input, shape index: {}]
  %s4 = inlined_call_operand.hbm [shape: f32[2,8,8], index: 4, kind: output, shape index: {0}]
  %s5 = inlined_call_operand.hbm [shape: f32[2,8], index: 5, kind: output, shape index: {1}]
  %s6 = inlined_call_operand.hbm [shape: f32[2,8], index: 6, kind: output, shape index: {2}]
  %7 = xla_tuple %s4, %s5, %s6
  %s8 = sld [smem:[#allocation0]]
  $region42: #{set_transformer_vae_forward.1} parent=0
    _
  %s10 = ssub.s32 1, %s8
  %s11 = scalar_select 0, %s10, %s8
  $region1: #{set_transformer_vae_forward.1} parent=0
    #allocation2 [shape = 'u8[8192]{0}', space=vmem, size = 0x2000, scoped, tag = 'output window, operand 0, single buffered']
    #allocation3 [shape = 's32[1]{0}', space=sflag, size = 0x4, scoped, tag = 'scoped memory for set_transformer_vae_forward.1']
    #allocation4 [shape = 'u8[1024]{0}', space=vmem, size = 0x400, scoped, tag = 'output window, operand 1, single buffered']
    #allocation5 [shape = 's32[1]{0}', space=sflag, size = 0x4, scoped, tag = 'scoped memory for set_transformer_vae_forward.1']
    #allocation6 [shape = 'u8[1024]{0}', space=vmem, size = 0x400, scoped, tag = 'output window, operand 2, single buffered']
    %12 = vsyncpa [#allocation3], 0
    %13 = vsyncpa [#allocation5], 0
    // Predicated region
    $region2: #{set_transformer_vae_forward.1} parent=1 // pred_check
      _
    $region3: #{set_transformer_vae_forward.1} parent=1 // pred_check_branch
      %15 = sbr.rel (0) target = $region5
    $region4: #{set_transformer_vae_forward.1} parent=1 // pred_region
      _
    $region5: #{set_transformer_vae_forward.1} parent=1 // pred_fallthru
      _
    // Predicated region
    $region6: #{set_transformer_vae_forward.1} parent=1 // pred_check
      _
    $region7: #{set_transformer_vae_forward.1} parent=1 // pred_check_branch
      %17 = sbr.rel (0) target = $region9
    $region8: #{set_transformer_vae_forward.1} parent=1 // pred_region
      _
    $region9: #{set_transformer_vae_forward.1} parent=1 // pred_fallthru
      _
    // Predicated region
    $region10: #{set_transformer_vae_forward.1} parent=1 // pred_check
      _
    $region11: #{set_transformer_vae_forward.1} parent=1 // pred_check_branch
      %19 = sbr.rel (0) target = $region13
    $region12: #{set_transformer_vae_forward.1} parent=1 // pred_region
      _
    $region13: #{set_transformer_vae_forward.1} parent=1 // pred_fallthru
      _
    // Predicated region
    $region14: #{set_transformer_vae_forward.1} parent=1 // pred_check
      _
    $region15: #{set_transformer_vae_forward.1} parent=1 // pred_check_branch
      %21 = sbr.rel (0) target = $region17
    $region16: #{set_transformer_vae_forward.1} parent=1 // pred_region
      _
    $region17: #{set_transformer_vae_forward.1} parent=1 // pred_fallthru
      _
    %v22 = vld [vmem:[%s0] sm:$0xff]
    %v23 = vld [vmem:[%s0 + $0x8] sm:$0xff]
    %v24 = vld [vmem:[%s2] sm:$0xff]
    %v25 = vld [vmem:[%s3] sm:$0x1]
    %v26 = vlaneseq
    %v27 = vshrl.u32 %v26, 7
    %v28 = vsub.s32 0, %v27
    %v29 = vrot.slane %v25, %v28
    %vm30 = vcmask 64512
    %v32 = vsel %vm30, %v22, 0
    %v35 = vsel %vm30, %v23, 0
    %37 = vmatprep.subr.mxu0 0.0
    %38 = vmatpush1.msra.mxu0 %v24
    %39 = vmatprep.subr.mxu0 0.0
    %40 = vmatpush1.msra.mxu0 0.0
    %41 = vmatprep.subr.mxu0 0.0
    %42 = vmatpush1.msra.mxu0 0.0
    %43 = vmatprep.subr.mxu0 0.0
    %44 = vmatpush1.msra.mxu0 0.0
    %45 = vmatprep.subr.mxu0 0.0
    %46 = vmatpush1.msra.mxu0 0.0
    %47 = vmatprep.subr.mxu0 0.0
    %48 = vmatpush1.msra.mxu0 0.0
    %49 = vmatprep.subr.mxu0 0.0
    %50 = vmatpush1.msra.mxu0 0.0
    %51 = vmatprep.subr.mxu0 0.0
    %52 = vmatpush1.msra.mxu0 0.0
    %53 = vmatprep.subr.mxu0 0.0
    %54 = vmatpush1.msra.mxu0 0.0
    %55 = vmatprep.subr.mxu0 0.0
    %56 = vmatpush1.msra.mxu0 0.0
    %57 = vmatprep.subr.mxu0 0.0
    %58 = vmatpush1.msra.mxu0 0.0
    %59 = vmatprep.subr.mxu0 0.0
    %60 = vmatpush1.msra.mxu0 0.0
    %61 = vmatprep.subr.mxu0 0.0
    %62 = vmatpush1.msra.mxu0 0.0
    %63 = vmatprep.subr.mxu0 0.0
    %64 = vmatpush1.msra.mxu0 0.0
    %65 = vmatprep.subr.mxu0 0.0
    %66 = vmatpush1.msra.mxu0 0.0
    %67 = vmatprep.subr.mxu0 0.0
    %68 = vmatpush1.msra.mxu0 0.0
    %69 = vmatprep.subr.mxu0 0.0
    %70 = vmatpush1.msra.mxu0 0.0
    %71 = vmatprep.subr.mxu0 0.0
    %72 = vmatpush1.msra.mxu0 0.0
    %73 = vmatprep.subr.mxu0 0.0
    %74 = vmatpush1.msra.mxu0 0.0
    %75 = vmatprep.subr.mxu0 0.0
    %76 = vmatpush1.msra.mxu0 0.0
    %77 = vmatprep.subr.mxu0 0.0
    %78 = vmatpush1.msra.mxu0 0.0
    %79 = vmatprep.subr.mxu0 0.0
    %80 = vmatpush1.msra.mxu0 0.0
    %81 = vmatprep.subr.mxu0 0.0
    %82 = vmatpush1.msra.mxu0 0.0
    %83 = vmatprep.subr.mxu0 0.0
    %84 = vmatpush1.msra.mxu0 0.0
    %85 = vmatprep.subr.mxu0 0.0
    %86 = vmatpush1.msra.mxu0 0.0
    %87 = vmatprep.subr.mxu0 0.0
    %88 = vmatpush1.msra.mxu0 0.0
    %89 = vmatprep.subr.mxu0 0.0
    %90 = vmatpush1.msra.mxu0 0.0
    %91 = vmatprep.subr.mxu0 0.0
    %92 = vmatpush1.msra.mxu0 0.0
    %93 = vmatprep.subr.mxu0 0.0
    %94 = vmatpush1.msra.mxu0 0.0
    %95 = vmatprep.subr.mxu0 0.0
    %96 = vmatpush1.msra.mxu0 0.0
    %97 = vmatprep.subr.mxu0 0.0
    %98 = vmatpush1.msra.mxu0 0.0
    %99 = vmatprep.subr.mxu0 0.0
    %100 = vmatpush1.msra.mxu0 0.0
    %101 = vmatprep.mubr.f32.mxu0 0.0
    %102 = vmatmul.mubr.f32.gmra.mrb[0].mxu0 %v32
    %v103 = vpop.f32.mrb[0].mxu0
    %v104 = vadd.f32 %v29, %v103
    %v105 = vpop.f32.mrb[0].mxu0
    %106 = vmatprep.mubr.f32.mxu0 0.0
    %107 = vmatmul.mubr.f32.gmra.mrb[0].mxu0 %v35
    %v108 = vpop.f32.mrb[0].mxu0
    %v109 = vadd.f32 %v29, %v108
    %v110 = vpop.f32.mrb[0].mxu0
    %111 = vdwg.mxu0
    %v112 = vmax.f32 %v104, 0.0
    %v113 = vmax.f32 %v109, 0.0
    %v114 = vld [vmem:[%s2 + $0x8] sm:$0xff]
    %v115 = vld [vmem:[%s2 + $0x10] sm:$0xff]
    %v116 = vld [vmem:[%s2 + $0x18] sm:$0xff]
    %v117 = vld [vmem:[%s2 + $0x20] sm:$0xff]
    %v118 = vld [vmem:[%s3 + $0x8] sm:$0x1]
    %v119 = vlaneseq
    %v120 = vshrl.u32 %v119, 7
    %v121 = vsub.s32 0, %v120
    %v122 = vrot.slane %v118, %v121
    %vm123 = vcmask 261120
    %v125 = vsel %vm123, %v112, 0
    %v128 = vsel %vm123, %v113, 0
    %130 = vmatprep.subr.mxu0 0.0
    %131 = vmatpush1.msra.mxu0 %v114
    %132 = vmatprep.subr.mxu0 0.0
    %133 = vmatpush1.msra.mxu0 %v115
    %134 = vmatprep.subr.mxu0 0.0
    %135 = vmatpush1.msra.mxu0 %v116
    %136 = vmatprep.subr.mxu0 0.0
    %137 = vmatpush1.msra.mxu0 %v117
    %138 = vmatprep.subr.mxu0 0.0
    %139 = vmatpush1.msra.mxu0 0.0
    %140 = vmatprep.subr.mxu0 0.0
    %141 = vmatpush1.msra.mxu0 0.0
    %142 = vmatprep.subr.mxu0 0.0
    %143 = vmatpush1.msra.mxu0 0.0
    %144 = vmatprep.subr.mxu0 0.0
    %145 = vmatpush1.msra.mxu0 0.0
    %146 = vmatprep.subr.mxu0 0.0
    %147 = vmatpush1.msra.mxu0 0.0
    %148 = vmatprep.subr.mxu0 0.0
    %149 = vmatpush1.msra.mxu0 0.0
    %150 = vmatprep.subr.mxu0 0.0
    %151 = vmatpush1.msra.mxu0 0.0
    %152 = vmatprep.subr.mxu0 0.0
    %153 = vmatpush1.msra.mxu0 0.0
    %154 = vmatprep.subr.mxu0 0.0
    %155 = vmatpush1.msra.mxu0 0.0
    %156 = vmatprep.subr.mxu0 0.0
    %157 = vmatpush1.msra.mxu0 0.0
    %158 = vmatprep.subr.mxu0 0.0
    %159 = vmatpush1.msra.mxu0 0.0
    %160 = vmatprep.subr.mxu0 0.0
    %161 = vmatpush1.msra.mxu0 0.0
    %162 = vmatprep.subr.mxu0 0.0
    %163 = vmatpush1.msra.mxu0 0.0
    %164 = vmatprep.subr.mxu0 0.0
    %165 = vmatpush1.msra.mxu0 0.0
    %166 = vmatprep.subr.mxu0 0.0
    %167 = vmatpush1.msra.mxu0 0.0
    %168 = vmatprep.subr.mxu0 0.0
    %169 = vmatpush1.msra.mxu0 0.0
    %170 = vmatprep.subr.mxu0 0.0
    %171 = vmatpush1.msra.mxu0 0.0
    %172 = vmatprep.subr.mxu0 0.0
    %173 = vmatpush1.msra.mxu0 0.0
    %174 = vmatprep.subr.mxu0 0.0
    %175 = vmatpush1.msra.mxu0 0.0
    %176 = vmatprep.subr.mxu0 0.0
    %177 = vmatpush1.msra.mxu0 0.0
    %178 = vmatprep.subr.mxu0 0.0
    %179 = vmatpush1.msra.mxu0 0.0
    %180 = vmatprep.subr.mxu0 0.0
    %181 = vmatpush1.msra.mxu0 0.0
    %182 = vmatprep.subr.mxu0 0.0
    %183 = vmatpush1.msra.mxu0 0.0
    %184 = vmatprep.subr.mxu0 0.0
    %185 = vmatpush1.msra.mxu0 0.0
    %186 = vmatprep.subr.mxu0 0.0
    %187 = vmatpush1.msra.mxu0 0.0
    %188 = vmatprep.subr.mxu0 0.0
    %189 = vmatpush1.msra.mxu0 0.0
    %190 = vmatprep.subr.mxu0 0.0
    %191 = vmatpush1.msra.mxu0 0.0
    %192 = vmatprep.subr.mxu0 0.0
    %193 = vmatpush1.msra.mxu0 0.0
    %194 = vmatprep.mubr.f32.mxu0 0.0
    %195 = vmatmul.mubr.f32.gmra.mrb[0].mxu0 %v125
    %v196 = vpop.f32.mrb[0].mxu0
    %v197 = vadd.f32 %v122, %v196
    %v198 = vpop.f32.mrb[0].mxu0
    %199 = vmatprep.mubr.f32.mxu0 0.0
    %200 = vmatmul.mubr.f32.gmra.mrb[0].mxu0 %v128
    %v201 = vpop.f32.mrb[0].mxu0
    %v202 = vadd.f32 %v122, %v201
    %v203 = vpop.f32.mrb[0].mxu0
    %204 = vdwg.mxu0
    %v205 = vmax.f32 %v197, 0.0
    %v206 = vmax.f32 %v202, 0.0
    %v207 = vld [vmem:[%s2 + $0x28] sm:$0xff]
    %v208 = vld [vmem:[%s2 + $0x30] sm:$0xff]
    %v209 = vld [vmem:[%s2 + $0x38] sm:$0xff]
    %v210 = vld [vmem:[%s2 + $0x40] sm:$0xff]
    %v211 = vld [vmem:[%s3 + $0x10] sm:$0x1]
    %v212 = vlaneseq
    %v213 = vshrl.u32 %v212, 7
    %v214 = vsub.s32 0, %v213
    %v215 = vrot.slane %v211, %v214
    %v217 = vsel %vm123, %v205, 0
    %v220 = vsel %vm123, %v206, 0
    %222 = vmatprep.subr.mxu0 0.0
    %223 = vmatpush1.msra.mxu0 %v207
    %224 = vmatprep.subr.mxu0 0.0
    %225 = vmatpush1.msra.mxu0 %v208
    %226 = vmatprep.subr.mxu0 0.0
    %227 = vmatpush1.msra.mxu0 %v209
    %228 = vmatprep.subr.mxu0 0.0
    %229 = vmatpush1.msra.mxu0 %v210
    %230 = vmatprep.subr.mxu0 0.0
    %231 = vmatpush1.msra.mxu0 0.0
    %232 = vmatprep.subr.mxu0 0.0
    %233 = vmatpush1.msra.mxu0 0.0
    %234 = vmatprep.subr.mxu0 0.0
    %235 = vmatpush1.msra.mxu0 0.0
    %236 = vmatprep.subr.mxu0 0.0
    %237 = vmatpush1.msra.mxu0 0.0
    %238 = vmatprep.subr.mxu0 0.0
    %239 = vmatpush1.msra.mxu0 0.0
    %240 = vmatprep.subr.mxu0 0.0
    %241 = vmatpush1.msra.mxu0 0.0
    %242 = vmatprep.subr.mxu0 0.0
    %243 = vmatpush1.msra.mxu0 0.0
    %244 = vmatprep.subr.mxu0 0.0
    %245 = vmatpush1.msra.mxu0 0.0
    %246 = vmatprep.subr.mxu0 0.0
    %247 = vmatpush1.msra.mxu0 0.0
    %248 = vmatprep.subr.mxu0 0.0
    %249 = vmatpush1.msra.mxu0 0.0
    %250 = vmatprep.subr.mxu0 0.0
    %251 = vmatpush1.msra.mxu0 0.0
    %252 = vmatprep.subr.mxu0 0.0
    %253 = vmatpush1.msra.mxu0 0.0
    %254 = vmatprep.subr.mxu0 0.0
    %255 = vmatpush1.msra.mxu0 0.0
    %256 = vmatprep.subr.mxu0 0.0
    %257 = vmatpush1.msra.mxu0 0.0
    %258 = vmatprep.subr.mxu0 0.0
    %259 = vmatpush1.msra.mxu0 0.0
    %260 = vmatprep.subr.mxu0 0.0
    %261 = vmatpush1.msra.mxu0 0.0
    %262 = vmatprep.subr.mxu0 0.0
    %263 = vmatpush1.msra.mxu0 0.0
    %264 = vmatprep.subr.mxu0 0.0
    %265 = vmatpush1.msra.mxu0 0.0
    %266 = vmatprep.subr.mxu0 0.0
    %267 = vmatpush1.msra.mxu0 0.0
    %268 = vmatprep.subr.mxu0 0.0
    %269 = vmatpush1.msra.mxu0 0.0
    %270 = vmatprep.subr.mxu0 0.0
    %271 = vmatpush1.msra.mxu0 0.0
    %272 = vmatprep.subr.mxu0 0.0
    %273 = vmatpush1.msra.mxu0 0.0
    %274 = vmatprep.subr.mxu0 0.0
    %275 = vmatpush1.msra.mxu0 0.0
    %276 = vmatprep.subr.mxu0 0.0
    %277 = vmatpush1.msra.mxu0 0.0
    %278 = vmatprep.subr.mxu0 0.0
    %279 = vmatpush1.msra.mxu0 0.0
    %280 = vmatprep.subr.mxu0 0.0
    %281 = vmatpush1.msra.mxu0 0.0
    %282 = vmatprep.subr.mxu0 0.0
    %283 = vmatpush1.msra.mxu0 0.0
    %284 = vmatprep.subr.mxu0 0.0
    %285 = vmatpush1.msra.mxu0 0.0
    %286 = vmatprep.mubr.f32.mxu0 0.0
    %287 = vmatmul.mubr.f32.gmra.mrb[0].mxu0 %v217
    %v288 = vpop.f32.mrb[0].mxu0
    %v289 = vadd.f32 %v215, %v288
    %v290 = vpop.f32.mrb[0].mxu0
    %291 = vmatprep.mubr.f32.mxu0 0.0
    %292 = vmatmul.mubr.f32.gmra.mrb[0].mxu0 %v220
    %v293 = vpop.f32.mrb[0].mxu0
    %v294 = vadd.f32 %v215, %v293
    %v295 = vpop.f32.mrb[0].mxu0
    %296 = vdwg.mxu0
    %v297 = vmax.f32 %v289, 0.0
    %v298 = vmax.f32 %v294, 0.0
    %v299 = vadd.f32 %v297, %v205
    %v300 = vadd.f32 %v298, %v206
    %v301 = vld [vmem:[%s2 + $0x48] sm:$0xff]
    %v302 = vld [vmem:[%s2 + $0x50] sm:$0xff]
    %v303 = vld [vmem:[%s2 + $0x58] sm:$0xff]
    %v304 = vld [vmem:[%s2 + $0x60] sm:$0xff]
    %v305 = vld [vmem:[%s3 + $0x18] sm:$0x1]
    %v306 = vlaneseq
    %v307 = vshrl.u32 %v306, 7
    %v308 = vsub.s32 0, %v307
    %v309 = vrot.slane %v305, %v308
    %v311 = vsel %vm123, %v299, 0
    %v314 = vsel %vm123, %v300, 0
    %316 = vmatprep.subr.mxu0 0.0
    %317 = vmatpush1.msra.mxu0 %v301
    %318 = vmatprep.subr.mxu0 0.0
    %319 = vmatpush1.msra.mxu0 %v302
    %320 = vmatprep.subr.mxu0 0.0
    %321 = vmatpush1.msra.mxu0 %v303
    %322 = vmatprep.subr.mxu0 0.0
    %323 = vmatpush1.msra.mxu0 %v304
    %324 = vmatprep.subr.mxu0 0.0
    %325 = vmatpush1.msra.mxu0 0.0
    %326 = vmatprep.subr.mxu0 0.0
    %327 = vmatpush1.msra.mxu0 0.0
    %328 = vmatprep.subr.mxu0 0.0
    %329 = vmatpush1.msra.mxu0 0.0
    %330 = vmatprep.subr.mxu0 0.0
    %331 = vmatpush1.msra.mxu0 0.0
    %332 = vmatprep.subr.mxu0 0.0
    %333 = vmatpush1.msra.mxu0 0.0
    %334 = vmatprep.subr.mxu0 0.0
    %335 = vmatpush1.msra.mxu0 0.0
    %336 = vmatprep.subr.mxu0 0.0
    %337 = vmatpush1.msra.mxu0 0.0
    %338 = vmatprep.subr.mxu0 0.0
    %339 = vmatpush1.msra.mxu0 0.0
    %340 = vmatprep.subr.mxu0 0.0
    %341 = vmatpush1.msra.mxu0 0.0
    %342 = vmatprep.subr.mxu0 0.0
    %343 = vmatpush1.msra.mxu0 0.0
    %344 = vmatprep.subr.mxu0 0.0
    %345 = vmatpush1.msra.mxu0 0.0
    %346 = vmatprep.subr.mxu0 0.0
    %347 = vmatpush1.msra.mxu0 0.0
    %348 = vmatprep.subr.mxu0 0.0
    %349 = vmatpush1.msra.mxu0 0.0
    %350 = vmatprep.subr.mxu0 0.0
    %351 = vmatpush1.msra.mxu0 0.0
    %352 = vmatprep.subr.mxu0 0.0
    %353 = vmatpush1.msra.mxu0 0.0
    %354 = vmatprep.subr.mxu0 0.0
    %355 = vmatpush1.msra.mxu0 0.0
    %356 = vmatprep.subr.mxu0 0.0
    %357 = vmatpush1.msra.mxu0 0.0
    %358 = vmatprep.subr.mxu0 0.0
    %359 = vmatpush1.msra.mxu0 0.0
    %360 = vmatprep.subr.mxu0 0.0
    %361 = vmatpush1.msra.mxu0 0.0
    %362 = vmatprep.subr.mxu0 0.0
    %363 = vmatpush1.msra.mxu0 0.0
    %364 = vmatprep.subr.mxu0 0.0
    %365 = vmatpush1.msra.mxu0 0.0
    %366 = vmatprep.subr.mxu0 0.0
    %367 = vmatpush1.msra.mxu0 0.0
    %368 = vmatprep.subr.mxu0 0.0
    %369 = vmatpush1.msra.mxu0 0.0
    %370 = vmatprep.subr.mxu0 0.0
    %371 = vmatpush1.msra.mxu0 0.0
    %372 = vmatprep.subr.mxu0 0.0
    %373 = vmatpush1.msra.mxu0 0.0
    %374 = vmatprep.subr.mxu0 0.0
    %375 = vmatpush1.msra.mxu0 0.0
    %376 = vmatprep.subr.mxu0 0.0
    %377 = vmatpush1.msra.mxu0 0.0
    %378 = vmatprep.subr.mxu0 0.0
    %379 = vmatpush1.msra.mxu0 0.0
    %380 = vmatprep.mubr.f32.mxu0 0.0
    %381 = vmatmul.mubr.f32.gmra.mrb[0].mxu0 %v311
    %v382 = vpop.f32.mrb[0].mxu0
    %v383 = vadd.f32 %v309, %v382
    %v384 = vpop.f32.mrb[0].mxu0
    %385 = vmatprep.mubr.f32.mxu0 0.0
    %386 = vmatmul.mubr.f32.gmra.mrb[0].mxu0 %v314
    %v387 = vpop.f32.mrb[0].mxu0
    %v388 = vadd.f32 %v309, %v387
    %v389 = vpop.f32.mrb[0].mxu0
    %390 = vdwg.mxu0
    %v391 = vmax.f32 %v383, 0.0
    %v392 = vmax.f32 %v388, 0.0
    %v393 = vadd.f32 %v391, %v299
    %v394 = vadd.f32 %v392, %v300
    %v395 = vld [vmem:[%s2 + $0x1d8] sm:$0xff]
    %v396 = vld [vmem:[%s2 + $0x128] sm:$0xff]
    %v397 = vld [vmem:[%s3 + $0x38] sm:$0x1]
    %v398 = vlaneseq
    %v399 = vshrl.u32 %v398, 7
    %v400 = vsub.s32 0, %v399
    %v401 = vrot.slane %v397, %v400
    %v403 = vsel %vm30, %v395, 0
    %405 = vmatprep.subr.mxu0 0.0
    %406 = vmatpush1.msra.mxu0 %v396
    %407 = vmatprep.subr.mxu0 0.0
    %408 = vmatpush1.msra.mxu0 0.0
    %409 = vmatprep.subr.mxu0 0.0
    %410 = vmatpush1.msra.mxu0 0.0
    %411 = vmatprep.subr.mxu0 0.0
    %412 = vmatpush1.msra.mxu0 0.0
    %413 = vmatprep.subr.mxu0 0.0
    %414 = vmatpush1.msra.mxu0 0.0
    %415 = vmatprep.subr.mxu0 0.0
    %416 = vmatpush1.msra.mxu0 0.0
    %417 = vmatprep.subr.mxu0 0.0
    %418 = vmatpush1.msra.mxu0 0.0
    %419 = vmatprep.subr.mxu0 0.0
    %420 = vmatpush1.msra.mxu0 0.0
    %421 = vmatprep.subr.mxu0 0.0
    %422 = vmatpush1.msra.mxu0 0.0
    %423 = vmatprep.subr.mxu0 0.0
    %424 = vmatpush1.msra.mxu0 0.0
    %425 = vmatprep.subr.mxu0 0.0
    %426 = vmatpush1.msra.mxu0 0.0
    %427 = vmatprep.subr.mxu0 0.0
    %428 = vmatpush1.msra.mxu0 0.0
    %429 = vmatprep.subr.mxu0 0.0
    %430 = vmatpush1.msra.mxu0 0.0
    %431 = vmatprep.subr.mxu0 0.0
    %432 = vmatpush1.msra.mxu0 0.0
    %433 = vmatprep.subr.mxu0 0.0
    %434 = vmatpush1.msra.mxu0 0.0
    %435 = vmatprep.subr.mxu0 0.0
    %436 = vmatpush1.msra.mxu0 0.0
    %437 = vmatprep.subr.mxu0 0.0
    %438 = vmatpush1.msra.mxu0 0.0
    %439 = vmatprep.subr.mxu0 0.0
    %440 = vmatpush1.msra.mxu0 0.0
    %441 = vmatprep.subr.mxu0 0.0
    %442 = vmatpush1.msra.mxu0 0.0
    %443 = vmatprep.subr.mxu0 0.0
    %444 = vmatpush1.msra.mxu0 0.0
    %445 = vmatprep.subr.mxu0 0.0
    %446 = vmatpush1.msra.mxu0 0.0
    %447 = vmatprep.subr.mxu0 0.0
    %448 = vmatpush1.msra.mxu0 0.0
    %449 = vmatprep.subr.mxu0 0.0
    %450 = vmatpush1.msra.mxu0 0.0
    %451 = vmatprep.subr.mxu0 0.0
    %452 = vmatpush1.msra.mxu0 0.0
    %453 = vmatprep.subr.mxu0 0.0
    %454 = vmatpush1.msra.mxu0 0.0
    %455 = vmatprep.subr.mxu0 0.0
    %456 = vmatpush1.msra.mxu0 0.0
    %457 = vmatprep.subr.mxu0 0.0
    %458 = vmatpush1.msra.mxu0 0.0
    %459 = vmatprep.subr.mxu0 0.0
    %460 = vmatpush1.msra.mxu0 0.0
    %461 = vmatprep.subr.mxu0 0.0
    %462 = vmatpush1.msra.mxu0 0.0
    %463 = vmatprep.subr.mxu0 0.0
    %464 = vmatpush1.msra.mxu0 0.0
    %465 = vmatprep.subr.mxu0 0.0
    %466 = vmatpush1.msra.mxu0 0.0
    %467 = vmatprep.subr.mxu0 0.0
    %468 = vmatpush1.msra.mxu0 0.0
    %469 = vmatprep.mubr.f32.mxu0 0.0
    %470 = vmatmul.mubr.f32.gmra.mrb[0].mxu0 %v403
    %v471 = vpop.f32.mrb[0].mxu0
    %v472 = vadd.f32 %v401, %v471
    %v473 = vpop.f32.mrb[0].mxu0
    %474 = vdwg.mxu0
    %v475 = vld [vmem:[%s2 + $0x68] sm:$0xff]
    %v476 = vld [vmem:[%s2 + $0x70] sm:$0xff]
    %v477 = vld [vmem:[%s2 + $0x78] sm:$0xff]
    %v478 = vld [vmem:[%s2 + $0x80] sm:$0xff]
    %v479 = vld [vmem:[%s2 + $0x88] sm:$0xff]
    %v480 = vld [vmem:[%s2 + $0x90] sm:$0xff]
    %v481 = vld [vmem:[%s2 + $0x98] sm:$0xff]
    %v482 = vld [vmem:[%s2 + $0xa0] sm:$0xff]
    %v483 = vld [vmem:[%s2 + $0xa8] sm:$0xff]
    %v484 = vld [vmem:[%s2 + $0xb0] sm:$0xff]
    %v485 = vld [vmem:[%s2 + $0xb8] sm:$0xff]
    %v486 = vld [vmem:[%s2 + $0xc0] sm:$0xff]
    %v487 = vld [vmem:[%s2 + $0xc8] sm:$0xff]
    %v488 = vld [vmem:[%s2 + $0xd0] sm:$0xff]
    %v489 = vld [vmem:[%s2 + $0xd8] sm:$0xff]
    %v490 = vld [vmem:[%s2 + $0xe0] sm:$0xff]
    %v491 = vld [vmem:[%s1] sm:$0x3]
    %v492 = vsel %vm123, %v393, 0.0
    %v493 = vrot.slane %v492, 4
    %v494 = vadd.f32 %v492, %v493
    %v495 = vrot.slane %v494, 2
    %v496 = vadd.f32 %v494, %v495
    %v497 = vrot.slane %v496, 1
    %v498 = vadd.f32 %v496, %v497
    %v499 = vrcp.pop 8.0
    %v500 = vmul.f32 %v498, %v499
    %v501 = vsel %vm123, %v393, -inf
    %v502 = vrot.slane %v501, 4
    %v503 = vmax.f32 %v501, %v502
    %v504 = vrot.slane %v503, 2
    %v505 = vmax.f32 %v503, %v504
    %v506 = vrot.slane %v505, 1
    %v507 = vmax.f32 %v505, %v506
    %v508 = vsel %vm123, %v393, inf
    %v509 = vrot.slane %v508, 4
    %v510 = vmin.f32 %v508, %v509
    %v511 = vrot.slane %v510, 2
    %v512 = vmin.f32 %v510, %v511
    %v513 = vrot.slane %v512, 1
    %v514 = vmin.f32 %v512, %v513
    %v515 = vsub.f32 %v393, %v500
    %v516 = vmul.f32 %v515, %v515
    %v517 = vsel %vm123, %v516, 0.0
    %v518 = vrot.slane %v517, 4
    %v519 = vadd.f32 %v517, %v518
    %v520 = vrot.slane %v519, 2
    %v521 = vadd.f32 %v519, %v520
    %v522 = vrot.slane %v521, 1
    %v523 = vadd.f32 %v521, %v522
    %v524 = vrcp.pop 7.0
    %v525 = vmul.f32 %v523, %v524
    %v526 = vmax.f32 %v525, 0.0
    %v527 = vrsqrt.pop %v526
    %v528 = vmul.f32 %v526, %v527
    %vm529 = vcmp.eq.f32.partialorder %v526, inf
    %v530 = vsel %vm529, %v526, %v528
    %vm531 = vcmp.eq.f32.partialorder %v526, 0.0
    %v532 = vand.u32 %v526, 2147483648
    %v533 = vsel %vm531, %v532, %v530
    %v534 = vmax.f32 %v500, 0.0
    %v535 = vmax.f32 %v507, 0.0
    %v537 = vsel %vm123, %v535, 0
    %539 = vmatprep.subr.mxu0 0.0
    %540 = vmatpush1.msra.mxu0 %v479
    %541 = vmatprep.subr.mxu0 0.0
    %542 = vmatpush1.msra.mxu0 %v480
    %543 = vmatprep.subr.mxu0 0.0
    %544 = vmatpush1.msra.mxu0 %v481
    %545 = vmatprep.subr.mxu0 0.0
    %546 = vmatpush1.msra.mxu0 %v482
    %547 = vmatprep.subr.mxu0 0.0
    %548 = vmatpush1.msra.mxu0 0.0
    %549 = vmatprep.subr.mxu0 0.0
    %550 = vmatpush1.msra.mxu0 0.0
    %551 = vmatprep.subr.mxu0 0.0
    %552 = vmatpush1.msra.mxu0 0.0
    %553 = vmatprep.subr.mxu0 0.0
    %554 = vmatpush1.msra.mxu0 0.0
    %555 = vmatprep.subr.mxu0 0.0
    %556 = vmatpush1.msra.mxu0 0.0
    %557 = vmatprep.subr.mxu0 0.0
    %558 = vmatpush1.msra.mxu0 0.0
    %559 = vmatprep.subr.mxu0 0.0
    %560 = vmatpush1.msra.mxu0 0.0
    %561 = vmatprep.subr.mxu0 0.0
    %562 = vmatpush1.msra.mxu0 0.0
    %563 = vmatprep.subr.mxu0 0.0
    %564 = vmatpush1.msra.mxu0 0.0
    %565 = vmatprep.subr.mxu0 0.0
    %566 = vmatpush1.msra.mxu0 0.0
    %567 = vmatprep.subr.mxu0 0.0
    %568 = vmatpush1.msra.mxu0 0.0
    %569 = vmatprep.subr.mxu0 0.0
    %570 = vmatpush1.msra.mxu0 0.0
    %571 = vmatprep.subr.mxu0 0.0
    %572 = vmatpush1.msra.mxu0 0.0
    %573 = vmatprep.subr.mxu0 0.0
    %574 = vmatpush1.msra.mxu0 0.0
    %575 = vmatprep.subr.mxu0 0.0
    %576 = vmatpush1.msra.mxu0 0.0
    %577 = vmatprep.subr.mxu0 0.0
    %578 = vmatpush1.msra.mxu0 0.0
    %579 = vmatprep.subr.mxu0 0.0
    %580 = vmatpush1.msra.mxu0 0.0
    %581 = vmatprep.subr.mxu0 0.0
    %582 = vmatpush1.msra.mxu0 0.0
    %583 = vmatprep.subr.mxu0 0.0
    %584 = vmatpush1.msra.mxu0 0.0
    %585 = vmatprep.subr.mxu0 0.0
    %586 = vmatpush1.msra.mxu0 0.0
    %587 = vmatprep.subr.mxu0 0.0
    %588 = vmatpush1.msra.mxu0 0.0
    %589 = vmatprep.subr.mxu0 0.0
    %590 = vmatpush1.msra.mxu0 0.0
    %591 = vmatprep.subr.mxu0 0.0
    %592 = vmatpush1.msra.mxu0 0.0
    %593 = vmatprep.subr.mxu0 0.0
    %594 = vmatpush1.msra.mxu0 0.0
    %595 = vmatprep.subr.mxu0 0.0
    %596 = vmatpush1.msra.mxu0 0.0
    %597 = vmatprep.subr.mxu0 0.0
    %598 = vmatpush1.msra.mxu0 0.0
    %599 = vmatprep.subr.mxu0 0.0
    %600 = vmatpush1.msra.mxu0 0.0
    %601 = vmatprep.subr.mxu0 0.0
    %602 = vmatpush1.msra.mxu0 0.0
    %603 = vmatprep.mubr.f32.mxu0 0.0
    %604 = vmatmul.mubr.f32.gmra.mrb[0].mxu0 %v537
    %v605 = vpop.f32.mrb[0].mxu0
    %v606 = vadd.f32 0.0, %v605
    %v607 = vpop.f32.mrb[0].mxu0
    %608 = vdwg.mxu0
    %v610 = vsel %vm123, %v534, 0
    %612 = vmatprep.subr.mxu0 0.0
    %613 = vmatpush1.msra.mxu0 %v475
    %614 = vmatprep.subr.mxu0 0.0
    %615 = vmatpush1.msra.mxu0 %v476
    %616 = vmatprep.subr.mxu0 0.0
    %617 = vmatpush1.msra.mxu0 %v477
    %618 = vmatprep.subr.mxu0 0.0
    %619 = vmatpush1.msra.mxu0 %v478
    %620 = vmatprep.subr.mxu0 0.0
    %621 = vmatpush1.msra.mxu0 0.0
    %622 = vmatprep.subr.mxu0 0.0
    %623 = vmatpush1.msra.mxu0 0.0
    %624 = vmatprep.subr.mxu0 0.0
    %625 = vmatpush1.msra.mxu0 0.0
    %626 = vmatprep.subr.mxu0 0.0
    %627 = vmatpush1.msra.mxu0 0.0
    %628 = vmatprep.subr.mxu0 0.0
    %629 = vmatpush1.msra.mxu0 0.0
    %630 = vmatprep.subr.mxu0 0.0
    %631 = vmatpush1.msra.mxu0 0.0
    %632 = vmatprep.subr.mxu0 0.0
    %633 = vmatpush1.msra.mxu0 0.0
    %634 = vmatprep.subr.mxu0 0.0
    %635 = vmatpush1.msra.mxu0 0.0
    %636 = vmatprep.subr.mxu0 0.0
    %637 = vmatpush1.msra.mxu0 0.0
    %638 = vmatprep.subr.mxu0 0.0
    %639 = vmatpush1.msra.mxu0 0.0
    %640 = vmatprep.subr.mxu0 0.0
    %641 = vmatpush1.msra.mxu0 0.0
    %642 = vmatprep.subr.mxu0 0.0
    %643 = vmatpush1.msra.mxu0 0.0
    %644 = vmatprep.subr.mxu0 0.0
    %645 = vmatpush1.msra.mxu0 0.0
    %646 = vmatprep.subr.mxu0 0.0
    %647 = vmatpush1.msra.mxu0 0.0
    %648 = vmatprep.subr.mxu0 0.0
    %649 = vmatpush1.msra.mxu0 0.0
    %650 = vmatprep.subr.mxu0 0.0
    %651 = vmatpush1.msra.mxu0 0.0
    %652 = vmatprep.subr.mxu0 0.0
    %653 = vmatpush1.msra.mxu0 0.0
    %654 = vmatprep.subr.mxu0 0.0
    %655 = vmatpush1.msra.mxu0 0.0
    %656 = vmatprep.subr.mxu0 0.0
    %657 = vmatpush1.msra.mxu0 0.0
    %658 = vmatprep.subr.mxu0 0.0
    %659 = vmatpush1.msra.mxu0 0.0
    %660 = vmatprep.subr.mxu0 0.0
    %661 = vmatpush1.msra.mxu0 0.0
    %662 = vmatprep.subr.mxu0 0.0
    %663 = vmatpush1.msra.mxu0 0.0
    %664 = vmatprep.subr.mxu0 0.0
    %665 = vmatpush1.msra.mxu0 0.0
    %666 = vmatprep.subr.mxu0 0.0
    %667 = vmatpush1.msra.mxu0 0.0
    %668 = vmatprep.subr.mxu0 0.0
    %669 = vmatpush1.msra.mxu0 0.0
    %670 = vmatprep.subr.mxu0 0.0
    %671 = vmatpush1.msra.mxu0 0.0
    %672 = vmatprep.subr.mxu0 0.0
    %673 = vmatpush1.msra.mxu0 0.0
    %674 = vmatprep.subr.mxu0 0.0
    %675 = vmatpush1.msra.mxu0 0.0
    %676 = vmatprep.mubr.f32.mxu0 0.0
    %677 = vmatmul.mubr.f32.gmra.mrb[0].mxu0 %v610
    %v678 = vpop.f32.mrb[0].mxu0
    %v679 = vadd.f32 %v606, %v678
    %v680 = vpop.f32.mrb[0].mxu0
    %681 = vdwg.mxu0
    %v682 = vmax.f32 %v514, 0.0
    %v684 = vsel %vm123, %v682, 0
    %686 = vmatprep.subr.mxu0 0.0
    %687 = vmatpush1.msra.mxu0 %v483
    %688 = vmatprep.subr.mxu0 0.0
    %689 = vmatpush1.msra.mxu0 %v484
    %690 = vmatprep.subr.mxu0 0.0
    %691 = vmatpush1.msra.mxu0 %v485
    %692 = vmatprep.subr.mxu0 0.0
    %693 = vmatpush1.msra.mxu0 %v486
    %694 = vmatprep.subr.mxu0 0.0
    %695 = vmatpush1.msra.mxu0 0.0
    %696 = vmatprep.subr.mxu0 0.0
    %697 = vmatpush1.msra.mxu0 0.0
    %698 = vmatprep.subr.mxu0 0.0
    %699 = vmatpush1.msra.mxu0 0.0
    %700 = vmatprep.subr.mxu0 0.0
    %701 = vmatpush1.msra.mxu0 0.0
    %702 = vmatprep.subr.mxu0 0.0
    %703 = vmatpush1.msra.mxu0 0.0
    %704 = vmatprep.subr.mxu0 0.0
    %705 = vmatpush1.msra.mxu0 0.0
    %706 = vmatprep.subr.mxu0 0.0
    %707 = vmatpush1.msra.mxu0 0.0
    %708 = vmatprep.subr.mxu0 0.0
    %709 = vmatpush1.msra.mxu0 0.0
    %710 = vmatprep.subr.mxu0 0.0
    %711 = vmatpush1.msra.mxu0 0.0
    %712 = vmatprep.subr.mxu0 0.0
    %713 = vmatpush1.msra.mxu0 0.0
    %714 = vmatprep.subr.mxu0 0.0
    %715 = vmatpush1.msra.mxu0 0.0
    %716 = vmatprep.subr.mxu0 0.0
    %717 = vmatpush1.msra.mxu0 0.0
    %718 = vmatprep.subr.mxu0 0.0
    %719 = vmatpush1.msra.mxu0 0.0
    %720 = vmatprep.subr.mxu0 0.0
    %721 = vmatpush1.msra.mxu0 0.0
    %722 = vmatprep.subr.mxu0 0.0
    %723 = vmatpush1.msra.mxu0 0.0
    %724 = vmatprep.subr.mxu0 0.0
    %725 = vmatpush1.msra.mxu0 0.0
    %726 = vmatprep.subr.mxu0 0.0
    %727 = vmatpush1.msra.mxu0 0.0
    %728 = vmatprep.subr.mxu0 0.0
    %729 = vmatpush1.msra.mxu0 0.0
    %730 = vmatprep.subr.mxu0 0.0
    %731 = vmatpush1.msra.mxu0 0.0
    %732 = vmatprep.subr.mxu0 0.0
    %733 = vmatpush1.msra.mxu0 0.0
    %734 = vmatprep.subr.mxu0 0.0
    %735 = vmatpush1.msra.mxu0 0.0
    %736 = vmatprep.subr.mxu0 0.0
    %737 = vmatpush1.msra.mxu0 0.0
    %738 = vmatprep.subr.mxu0 0.0
    %739 = vmatpush1.msra.mxu0 0.0
    %740 = vmatprep.subr.mxu0 0.0
    %741 = vmatpush1.msra.mxu0 0.0
    %742 = vmatprep.subr.mxu0 0.0
    %743 = vmatpush1.msra.mxu0 0.0
    %744 = vmatprep.subr.mxu0 0.0
    %745 = vmatpush1.msra.mxu0 0.0
    %746 = vmatprep.subr.mxu0 0.0
    %747 = vmatpush1.msra.mxu0 0.0
    %748 = vmatprep.subr.mxu0 0.0
    %749 = vmatpush1.msra.mxu0 0.0
    %750 = vmatprep.mubr.f32.mxu0 0.0
    %751 = vmatmul.mubr.f32.gmra.mrb[0].mxu0 %v684
    %v752 = vpop.f32.mrb[0].mxu0
    %v753 = vadd.f32 0.0, %v752
    %v754 = vpop.f32.mrb[0].mxu0
    %755 = vdwg.mxu0
    %v756 = vadd.f32 %v679, %v753
    %v757 = vmax.f32 %v533, 0.0
    %v759 = vsel %vm123, %v757, 0
    %761 = vmatprep.subr.mxu0 0.0
    %762 = vmatpush1.msra.mxu0 %v487
    %763 = vmatprep.subr.mxu0 0.0
    %764 = vmatpush1.msra.mxu0 %v488
    %765 = vmatprep.subr.mxu0 0.0
    %766 = vmatpush1.msra.mxu0 %v489
    %767 = vmatprep.subr.mxu0 0.0
    %768 = vmatpush1.msra.mxu0 %v490
    %769 = vmatprep.subr.mxu0 0.0
    %770 = vmatpush1.msra.mxu0 0.0
    %771 = vmatprep.subr.mxu0 0.0
    %772 = vmatpush1.msra.mxu0 0.0
    %773 = vmatprep.subr.mxu0 0.0
    %774 = vmatpush1.msra.mxu0 0.0
    %775 = vmatprep.subr.mxu0 0.0
    %776 = vmatpush1.msra.mxu0 0.0
    %777 = vmatprep.subr.mxu0 0.0
    %778 = vmatpush1.msra.mxu0 0.0
    %779 = vmatprep.subr.mxu0 0.0
    %780 = vmatpush1.msra.mxu0 0.0
    %781 = vmatprep.subr.mxu0 0.0
    %782 = vmatpush1.msra.mxu0 0.0
    %783 = vmatprep.subr.mxu0 0.0
    %784 = vmatpush1.msra.mxu0 0.0
    %785 = vmatprep.subr.mxu0 0.0
    %786 = vmatpush1.msra.mxu0 0.0
    %787 = vmatprep.subr.mxu0 0.0
    %788 = vmatpush1.msra.mxu0 0.0
    %789 = vmatprep.subr.mxu0 0.0
    %790 = vmatpush1.msra.mxu0 0.0
    %791 = vmatprep.subr.mxu0 0.0
    %792 = vmatpush1.msra.mxu0 0.0
    %793 = vmatprep.subr.mxu0 0.0
    %794 = vmatpush1.msra.mxu0 0.0
    %795 = vmatprep.subr.mxu0 0.0
    %796 = vmatpush1.msra.mxu0 0.0
    %797 = vmatprep.subr.mxu0 0.0
    %798 = vmatpush1.msra.mxu0 0.0
    %799 = vmatprep.subr.mxu0 0.0
    %800 = vmatpush1.msra.mxu0 0.0
    %801 = vmatprep.subr.mxu0 0.0
    %802 = vmatpush1.msra.mxu0 0.0
    %803 = vmatprep.subr.mxu0 0.0
    %804 = vmatpush1.msra.mxu0 0.0
    %805 = vmatprep.subr.mxu0 0.0
    %806 = vmatpush1.msra.mxu0 0.0
    %807 = vmatprep.subr.mxu0 0.0
    %808 = vmatpush1.msra.mxu0 0.0
    %809 = vmatprep.subr.mxu0 0.0
    %810 = vmatpush1.msra.mxu0 0.0
    %811 = vmatprep.subr.mxu0 0.0
    %812 = vmatpush1.msra.mxu0 0.0
    %813 = vmatprep.subr.mxu0 0.0
    %814 = vmatpush1.msra.mxu0 0.0
    %815 = vmatprep.subr.mxu0 0.0
    %816 = vmatpush1.msra.mxu0 0.0
    %817 = vmatprep.subr.mxu0 0.0
    %818 = vmatpush1.msra.mxu0 0.0
    %819 = vmatprep.subr.mxu0 0.0
    %820 = vmatpush1.msra.mxu0 0.0
    %821 = vmatprep.subr.mxu0 0.0
    %822 = vmatpush1.msra.mxu0 0.0
    %823 = vmatprep.subr.mxu0 0.0
    %824 = vmatpush1.msra.mxu0 0.0
    %825 = vmatprep.mubr.f32.mxu0 0.0
    %826 = vmatmul.mubr.f32.gmra.mrb[0].mxu0 %v759
    %v827 = vpop.f32.mrb[0].mxu0
    %v828 = vadd.f32 0.0, %v827
    %v829 = vpop.f32.mrb[0].mxu0
    %830 = vdwg.mxu0
    %v831 = vadd.f32 %v756, %v828
    %v832 = vld [vmem:[%s3 + $0x20] sm:$0x1]
    %v833 = vadd.f32 %v831, %v832
    %v834 = vmax.f32 %v833, 0.0
    %v835 = vld [vmem:[%s2 + $0xe8] sm:$0xff]
    %v836 = vld [vmem:[%s2 + $0xf0] sm:$0xff]
    %v837 = vld [vmem:[%s2 + $0xf8] sm:$0xff]
    %v838 = vld [vmem:[%s2 + $0x100] sm:$0xff]
    %v839 = vld [vmem:[%s3 + $0x28] sm:$0x1]
    %v841 = vsel %vm123, %v834, 0
    %843 = vmatprep.subr.mxu0 0.0
    %844 = vmatpush1.msra.mxu0 %v835
    %845 = vmatprep.subr.mxu0 0.0
    %846 = vmatpush1.msra.mxu0 %v836
    %847 = vmatprep.subr.mxu0 0.0
    %848 = vmatpush1.msra.mxu0 %v837
    %849 = vmatprep.subr.mxu0 0.0
    %850 = vmatpush1.msra.mxu0 %v838
    %851 = vmatprep.subr.mxu0 0.0
    %852 = vmatpush1.msra.mxu0 0.0
    %853 = vmatprep.subr.mxu0 0.0
    %854 = vmatpush1.msra.mxu0 0.0
    %855 = vmatprep.subr.mxu0 0.0
    %856 = vmatpush1.msra.mxu0 0.0
    %857 = vmatprep.subr.mxu0 0.0
    %858 = vmatpush1.msra.mxu0 0.0
    %859 = vmatprep.subr.mxu0 0.0
    %860 = vmatpush1.msra.mxu0 0.0
    %861 = vmatprep.subr.mxu0 0.0
    %862 = vmatpush1.msra.mxu0 0.0
    %863 = vmatprep.subr.mxu0 0.0
    %864 = vmatpush1.msra.mxu0 0.0
    %865 = vmatprep.subr.mxu0 0.0
    %866 = vmatpush1.msra.mxu0 0.0
    %867 = vmatprep.subr.mxu0 0.0
    %868 = vmatpush1.msra.mxu0 0.0
    %869 = vmatprep.subr.mxu0 0.0
    %870 = vmatpush1.msra.mxu0 0.0
    %871 = vmatprep.subr.mxu0 0.0
    %872 = vmatpush1.msra.mxu0 0.0
    %873 = vmatprep.subr.mxu0 0.0
    %874 = vmatpush1.msra.mxu0 0.0
    %875 = vmatprep.subr.mxu0 0.0
    %876 = vmatpush1.msra.mxu0 0.0
    %877 = vmatprep.subr.mxu0 0.0
    %878 = vmatpush1.msra.mxu0 0.0
    %879 = vmatprep.subr.mxu0 0.0
    %880 = vmatpush1.msra.mxu0 0.0
    %881 = vmatprep.subr.mxu0 0.0
    %882 = vmatpush1.msra.mxu0 0.0
    %883 = vmatprep.subr.mxu0 0.0
    %884 = vmatpush1.msra.mxu0 0.0
    %885 = vmatprep.subr.mxu0 0.0
    %886 = vmatpush1.msra.mxu0 0.0
    %887 = vmatprep.subr.mxu0 0.0
    %888 = vmatpush1.msra.mxu0 0.0
    %889 = vmatprep.subr.mxu0 0.0
    %890 = vmatpush1.msra.mxu0 0.0
    %891 = vmatprep.subr.mxu0 0.0
    %892 = vmatpush1.msra.mxu0 0.0
    %893 = vmatprep.subr.mxu0 0.0
    %894 = vmatpush1.msra.mxu0 0.0
    %895 = vmatprep.subr.mxu0 0.0
    %896 = vmatpush1.msra.mxu0 0.0
    %897 = vmatprep.subr.mxu0 0.0
    %898 = vmatpush1.msra.mxu0 0.0
    %899 = vmatprep.subr.mxu0 0.0
    %900 = vmatpush1.msra.mxu0 0.0
    %901 = vmatprep.subr.mxu0 0.0
    %902 = vmatpush1.msra.mxu0 0.0
    %903 = vmatprep.subr.mxu0 0.0
    %904 = vmatpush1.msra.mxu0 0.0
    %905 = vmatprep.subr.mxu0 0.0
    %906 = vmatpush1.msra.mxu0 0.0
    %907 = vmatprep.mubr.f32.mxu0 0.0
    %908 = vmatmul.mubr.f32.gmra.mrb[0].mxu0 %v841
    %v909 = vpop.f32.mrb[0].mxu0
    %v910 = vadd.f32 %v839, %v909
    %v911 = vpop.f32.mrb[0].mxu0
    %912 = vdwg.mxu0
    %v913 = vld [vmem:[%s2 + $0x108] sm:$0xff]
    %v914 = vld [vmem:[%s2 + $0x110] sm:$0xff]
    %v915 = vld [vmem:[%s2 + $0x118] sm:$0xff]
    %v916 = vld [vmem:[%s2 + $0x120] sm:$0xff]
    %v917 = vld [vmem:[%s3 + $0x30] sm:$0x1]
    %918 = vmatprep.subr.mxu0 0.0
    %919 = vmatpush1.msra.mxu0 %v913
    %920 = vmatprep.subr.mxu0 0.0
    %921 = vmatpush1.msra.mxu0 %v914
    %922 = vmatprep.subr.mxu0 0.0
    %923 = vmatpush1.msra.mxu0 %v915
    %924 = vmatprep.subr.mxu0 0.0
    %925 = vmatpush1.msra.mxu0 %v916
    %926 = vmatprep.subr.mxu0 0.0
    %927 = vmatpush1.msra.mxu0 0.0
    %928 = vmatprep.subr.mxu0 0.0
    %929 = vmatpush1.msra.mxu0 0.0
    %930 = vmatprep.subr.mxu0 0.0
    %931 = vmatpush1.msra.mxu0 0.0
    %932 = vmatprep.subr.mxu0 0.0
    %933 = vmatpush1.msra.mxu0 0.0
    %934 = vmatprep.subr.mxu0 0.0
    %935 = vmatpush1.msra.mxu0 0.0
    %936 = vmatprep.subr.mxu0 0.0
    %937 = vmatpush1.msra.mxu0 0.0
    %938 = vmatprep.subr.mxu0 0.0
    %939 = vmatpush1.msra.mxu0 0.0
    %940 = vmatprep.subr.mxu0 0.0
    %941 = vmatpush1.msra.mxu0 0.0
    %942 = vmatprep.subr.mxu0 0.0
    %943 = vmatpush1.msra.mxu0 0.0
    %944 = vmatprep.subr.mxu0 0.0
    %945 = vmatpush1.msra.mxu0 0.0
    %946 = vmatprep.subr.mxu0 0.0
    %947 = vmatpush1.msra.mxu0 0.0
    %948 = vmatprep.subr.mxu0 0.0
    %949 = vmatpush1.msra.mxu0 0.0
    %950 = vmatprep.subr.mxu0 0.0
    %951 = vmatpush1.msra.mxu0 0.0
    %952 = vmatprep.subr.mxu0 0.0
    %953 = vmatpush1.msra.mxu0 0.0
    %954 = vmatprep.subr.mxu0 0.0
    %955 = vmatpush1.msra.mxu0 0.0
    %956 = vmatprep.subr.mxu0 0.0
    %957 = vmatpush1.msra.mxu0 0.0
    %958 = vmatprep.subr.mxu0 0.0
    %959 = vmatpush1.msra.mxu0 0.0
    %960 = vmatprep.subr.mxu0 0.0
    %961 = vmatpush1.msra.mxu0 0.0
    %962 = vmatprep.subr.mxu0 0.0
    %963 = vmatpush1.msra.mxu0 0.0
    %964 = vmatprep.subr.mxu0 0.0
    %965 = vmatpush1.msra.mxu0 0.0
    %966 = vmatprep.subr.mxu0 0.0
    %967 = vmatpush1.msra.mxu0 0.0
    %968 = vmatprep.subr.mxu0 0.0
    %969 = vmatpush1.msra.mxu0 0.0
    %970 = vmatprep.subr.mxu0 0.0
    %971 = vmatpush1.msra.mxu0 0.0
    %972 = vmatprep.subr.mxu0 0.0
    %973 = vmatpush1.msra.mxu0 0.0
    %974 = vmatprep.subr.mxu0 0.0
    %975 = vmatpush1.msra.mxu0 0.0
    %976 = vmatprep.subr.mxu0 0.0
    %977 = vmatpush1.msra.mxu0 0.0
    %978 = vmatprep.subr.mxu0 0.0
    %979 = vmatpush1.msra.mxu0 0.0
    %980 = vmatprep.subr.mxu0 0.0
    %981 = vmatpush1.msra.mxu0 0.0
    %982 = vmatprep.mubr.f32.mxu0 0.0
    %983 = vmatmul.mubr.f32.gmra.mrb[0].mxu0 %v841
    %v984 = vpop.f32.mrb[0].mxu0
    %v985 = vadd.f32 %v917, %v984
    %v986 = vpop.f32.mrb[0].mxu0
    %987 = vdwg.mxu0
    %vm988 = vcmask 57344
    %989 = vst.msk [vmem:[#allocation4] sm:$0x1] %vm988, %v910
    %990 = vst.msk [vmem:[#allocation6] sm:$0x1] %vm988, %v985
    %v991 = vmul.f32 %v985, %v985
    %v992 = vmul.f32 %v491, %v991
    %v993 = vadd.f32 %v910, %v992
    %v994 = vld [vmem:[%s2 + $0x130] sm:$0xff]
    %v995 = vld [vmem:[%s3 + $0x40] sm:$0x1]
    %v997 = vsel %vm30, %v993, 0
    %999 = vmatprep.subr.mxu0 0.0
    %1000 = vmatpush1.msra.mxu0 %v994
    %1001 = vmatprep.subr.mxu0 0.0
    %1002 = vmatpush1.msra.mxu0 0.0
    %1003 = vmatprep.subr.mxu0 0.0
    %1004 = vmatpush1.msra.mxu0 0.0
    %1005 = vmatprep.subr.mxu0 0.0
    %1006 = vmatpush1.msra.mxu0 0.0
    %1007 = vmatprep.subr.mxu0 0.0
    %1008 = vmatpush1.msra.mxu0 0.0
    %1009 = vmatprep.subr.mxu0 0.0
    %1010 = vmatpush1.msra.mxu0 0.0
    %1011 = vmatprep.subr.mxu0 0.0
    %1012 = vmatpush1.msra.mxu0 0.0
    %1013 = vmatprep.subr.mxu0 0.0
    %1014 = vmatpush1.msra.mxu0 0.0
    %1015 = vmatprep.subr.mxu0 0.0
    %1016 = vmatpush1.msra.mxu0 0.0
    %1017 = vmatprep.subr.mxu0 0.0
    %1018 = vmatpush1.msra.mxu0 0.0
    %1019 = vmatprep.subr.mxu0 0.0
    %1020 = vmatpush1.msra.mxu0 0.0
    %1021 = vmatprep.subr.mxu0 0.0
    %1022 = vmatpush1.msra.mxu0 0.0
    %1023 = vmatprep.subr.mxu0 0.0
    %1024 = vmatpush1.msra.mxu0 0.0
    %1025 = vmatprep.subr.mxu0 0.0
    %1026 = vmatpush1.msra.mxu0 0.0
    %1027 = vmatprep.subr.mxu0 0.0
    %1028 = vmatpush1.msra.mxu0 0.0
    %1029 = vmatprep.subr.mxu0 0.0
    %1030 = vmatpush1.msra.mxu0 0.0
    %1031 = vmatprep.subr.mxu0 0.0
    %1032 = vmatpush1.msra.mxu0 0.0
    %1033 = vmatprep.subr.mxu0 0.0
    %1034 = vmatpush1.msra.mxu0 0.0
    %1035 = vmatprep.subr.mxu0 0.0
    %1036 = vmatpush1.msra.mxu0 0.0
    %1037 = vmatprep.subr.mxu0 0.0
    %1038 = vmatpush1.msra.mxu0 0.0
    %1039 = vmatprep.subr.mxu0 0.0
    %1040 = vmatpush1.msra.mxu0 0.0
    %1041 = vmatprep.subr.mxu0 0.0
    %1042 = vmatpush1.msra.mxu0 0.0
    %1043 = vmatprep.subr.mxu0 0.0
    %1044 = vmatpush1.msra.mxu0 0.0
    %1045 = vmatprep.subr.mxu0 0.0
    %1046 = vmatpush1.msra.mxu0 0.0
    %1047 = vmatprep.subr.mxu0 0.0
    %1048 = vmatpush1.msra.mxu0 0.0
    %1049 = vmatprep.subr.mxu0 0.0
    %1050 = vmatpush1.msra.mxu0 0.0
    %1051 = vmatprep.subr.mxu0 0.0
    %1052 = vmatpush1.msra.mxu0 0.0
    %1053 = vmatprep.subr.mxu0 0.0
    %1054 = vmatpush1.msra.mxu0 0.0
    %1055 = vmatprep.subr.mxu0 0.0
    %1056 = vmatpush1.msra.mxu0 0.0
    %1057 = vmatprep.subr.mxu0 0.0
    %1058 = vmatpush1.msra.mxu0 0.0
    %1059 = vmatprep.subr.mxu0 0.0
    %1060 = vmatpush1.msra.mxu0 0.0
    %1061 = vmatprep.subr.mxu0 0.0
    %1062 = vmatpush1.msra.mxu0 0.0
    %1063 = vmatprep.mubr.f32.mxu0 0.0
    %1064 = vmatmul.mubr.f32.gmra.mrb[0].mxu0 %v997
    %v1065 = vpop.f32.mrb[0].mxu0
    %v1066 = vadd.f32 %v995, %v1065
    %v1067 = vpop.f32.mrb[0].mxu0
    %1068 = vdwg.mxu0
    %v1069 = vlaneseq
    %v1070 = vshrl.u32 %v1069, 7
    %v1071 = vsub.s32 0, %v1070
    %v1072 = vrot.slane %v1066, %v1071
    %v1073 = vadd.f32 %v472, %v1072
    %v1074 = vmax.f32 %v1073, 0.0
    %v1075 = vld [vmem:[%s2 + $0x138] sm:$0xff]
    %v1076 = vld [vmem:[%s2 + $0x140] sm:$0xff]
    %v1077 = vld [vmem:[%s2 + $0x148] sm:$0xff]
    %v1078 = vld [vmem:[%s2 + $0x150] sm:$0xff]
    %v1079 = vld [vmem:[%s3 + $0x48] sm:$0x1]
    %v1080 = vlaneseq
    %v1081 = vshrl.u32 %v1080, 7
    %v1082 = vsub.s32 0, %v1081
    %v1083 = vrot.slane %v1079, %v1082
    %v1085 = vsel %vm123, %v1074, 0
    %1087 = vmatprep.subr.mxu0 0.0
    %1088 = vmatpush1.msra.mxu0 %v1075
    %1089 = vmatprep.subr.mxu0 0.0
    %1090 = vmatpush1.msra.mxu0 %v1076
    %1091 = vmatprep.subr.mxu0 0.0
    %1092 = vmatpush1.msra.mxu0 %v1077
    %1093 = vmatprep.subr.mxu0 0.0
    %1094 = vmatpush1.msra.mxu0 %v1078
    %1095 = vmatprep.subr.mxu0 0.0
    %1096 = vmatpush1.msra.mxu0 0.0
    %1097 = vmatprep.subr.mxu0 0.0
    %1098 = vmatpush1.msra.mxu0 0.0
    %1099 = vmatprep.subr.mxu0 0.0
    %1100 = vmatpush1.msra.mxu0 0.0
    %1101 = vmatprep.subr.mxu0 0.0
    %1102 = vmatpush1.msra.mxu0 0.0
    %1103 = vmatprep.subr.mxu0 0.0
    %1104 = vmatpush1.msra.mxu0 0.0
    %1105 = vmatprep.subr.mxu0 0.0
    %1106 = vmatpush1.msra.mxu0 0.0
    %1107 = vmatprep.subr.mxu0 0.0
    %1108 = vmatpush1.msra.mxu0 0.0
    %1109 = vmatprep.subr.mxu0 0.0
    %1110 = vmatpush1.msra.mxu0 0.0
    %1111 = vmatprep.subr.mxu0 0.0
    %1112 = vmatpush1.msra.mxu0 0.0
    %1113 = vmatprep.subr.mxu0 0.0
    %1114 = vmatpush1.msra.mxu0 0.0
    %1115 = vmatprep.subr.mxu0 0.0
    %1116 = vmatpush1.msra.mxu0 0.0
    %1117 = vmatprep.subr.mxu0 0.0
    %1118 = vmatpush1.msra.mxu0 0.0
    %1119 = vmatprep.subr.mxu0 0.0
    %1120 = vmatpush1.msra.mxu0 0.0
    %1121 = vmatprep.subr.mxu0 0.0
    %1122 = vmatpush1.msra.mxu0 0.0
    %1123 = vmatprep.subr.mxu0 0.0
    %1124 = vmatpush1.msra.mxu0 0.0
    %1125 = vmatprep.subr.mxu0 0.0
    %1126 = vmatpush1.msra.mxu0 0.0
    %1127 = vmatprep.subr.mxu0 0.0
    %1128 = vmatpush1.msra.mxu0 0.0
    %1129 = vmatprep.subr.mxu0 0.0
    %1130 = vmatpush1.msra.mxu0 0.0
    %1131 = vmatprep.subr.mxu0 0.0
    %1132 = vmatpush1.msra.mxu0 0.0
    %1133 = vmatprep.subr.mxu0 0.0
    %1134 = vmatpush1.msra.mxu0 0.0
    %1135 = vmatprep.subr.mxu0 0.0
    %1136 = vmatpush1.msra.mxu0 0.0
    %1137 = vmatprep.subr.mxu0 0.0
    %1138 = vmatpush1.msra.mxu0 0.0
    %1139 = vmatprep.subr.mxu0 0.0
    %1140 = vmatpush1.msra.mxu0 0.0
    %1141 = vmatprep.subr.mxu0 0.0
    %1142 = vmatpush1.msra.mxu0 0.0
    %1143 = vmatprep.subr.mxu0 0.0
    %1144 = vmatpush1.msra.mxu0 0.0
    %1145 = vmatprep.subr.mxu0 0.0
    %1146 = vmatpush1.msra.mxu0 0.0
    %1147 = vmatprep.subr.mxu0 0.0
    %1148 = vmatpush1.msra.mxu0 0.0
    %1149 = vmatprep.subr.mxu0 0.0
    %1150 = vmatpush1.msra.mxu0 0.0
    %1151 = vmatprep.mubr.f32.mxu0 0.0
    %1152 = vmatmul.mubr.f32.gmra.mrb[0].mxu0 %v1085
    %v1153 = vpop.f32.mrb[0].mxu0
    %v1154 = vadd.f32 %v1083, %v1153
    %v1155 = vpop.f32.mrb[0].mxu0
    %1156 = vdwg.mxu0
    %v1157 = vmax.f32 %v1154, 0.0
    %v1158 = vld [vmem:[%s2 + $0x158] sm:$0xff]
    %v1159 = vld [vmem:[%s2 + $0x160] sm:$0xff]
    %v1160 = vld [vmem:[%s2 + $0x168] sm:$0xff]
    %v1161 = vld [vmem:[%s2 + $0x170] sm:$0xff]
    %v1162 = vld [vmem:[%s3 + $0x50] sm:$0x1]
    %v1163 = vlaneseq
    %v1164 = vshrl.u32 %v1163, 7
    %v1165 = vsub.s32 0, %v1164
    %v1166 = vrot.slane %v1162, %v1165
    %v1168 = vsel %vm123, %v1157, 0
    %1170 = vmatprep.subr.mxu0 0.0
    %1171 = vmatpush1.msra.mxu0 %v1158
    %1172 = vmatprep.subr.mxu0 0.0
    %1173 = vmatpush1.msra.mxu0 %v1159
    %1174 = vmatprep.subr.mxu0 0.0
    %1175 = vmatpush1.msra.mxu0 %v1160
    %1176 = vmatprep.subr.mxu0 0.0
    %1177 = vmatpush1.msra.mxu0 %v1161
    %1178 = vmatprep.subr.mxu0 0.0
    %1179 = vmatpush1.msra.mxu0 0.0
    %1180 = vmatprep.subr.mxu0 0.0
    %1181 = vmatpush1.msra.mxu0 0.0
    %1182 = vmatprep.subr.mxu0 0.0
    %1183 = vmatpush1.msra.mxu0 0.0
    %1184 = vmatprep.subr.mxu0 0.0
    %1185 = vmatpush1.msra.mxu0 0.0
    %1186 = vmatprep.subr.mxu0 0.0
    %1187 = vmatpush1.msra.mxu0 0.0
    %1188 = vmatprep.subr.mxu0 0.0
    %1189 = vmatpush1.msra.mxu0 0.0
    %1190 = vmatprep.subr.mxu0 0.0
    %1191 = vmatpush1.msra.mxu0 0.0
    %1192 = vmatprep.subr.mxu0 0.0
    %1193 = vmatpush1.msra.mxu0 0.0
    %1194 = vmatprep.subr.mxu0 0.0
    %1195 = vmatpush1.msra.mxu0 0.0
    %1196 = vmatprep.subr.mxu0 0.0
    %1197 = vmatpush1.msra.mxu0 0.0
    %1198 = vmatprep.subr.mxu0 0.0
    %1199 = vmatpush1.msra.mxu0 0.0
    %1200 = vmatprep.subr.mxu0 0.0
    %1201 = vmatpush1.msra.mxu0 0.0
    %1202 = vmatprep.subr.mxu0 0.0
    %1203 = vmatpush1.msra.mxu0 0.0
    %1204 = vmatprep.subr.mxu0 0.0
    %1205 = vmatpush1.msra.mxu0 0.0
    %1206 = vmatprep.subr.mxu0 0.0
    %1207 = vmatpush1.msra.mxu0 0.0
    %1208 = vmatprep.subr.mxu0 0.0
    %1209 = vmatpush1.msra.mxu0 0.0
    %1210 = vmatprep.subr.mxu0 0.0
    %1211 = vmatpush1.msra.mxu0 0.0
    %1212 = vmatprep.subr.mxu0 0.0
    %1213 = vmatpush1.msra.mxu0 0.0
    %1214 = vmatprep.subr.mxu0 0.0
    %1215 = vmatpush1.msra.mxu0 0.0
    %1216 = vmatprep.subr.mxu0 0.0
    %1217 = vmatpush1.msra.mxu0 0.0
    %1218 = vmatprep.subr.mxu0 0.0
    %1219 = vmatpush1.msra.mxu0 0.0
    %1220 = vmatprep.subr.mxu0 0.0
    %1221 = vmatpush1.msra.mxu0 0.0
    %1222 = vmatprep.subr.mxu0 0.0
    %1223 = vmatpush1.msra.mxu0 0.0
    %1224 = vmatprep.subr.mxu0 0.0
    %1225 = vmatpush1.msra.mxu0 0.0
    %1226 = vmatprep.subr.mxu0 0.0
    %1227 = vmatpush1.msra.mxu0 0.0
    %1228 = vmatprep.subr.mxu0 0.0
    %1229 = vmatpush1.msra.mxu0 0.0
    %1230 = vmatprep.subr.mxu0 0.0
    %1231 = vmatpush1.msra.mxu0 0.0
    %1232 = vmatprep.subr.mxu0 0.0
    %1233 = vmatpush1.msra.mxu0 0.0
    %1234 = vmatprep.mubr.f32.mxu0 0.0
    %1235 = vmatmul.mubr.f32.gmra.mrb[0].mxu0 %v1168
    %v1236 = vpop.f32.mrb[0].mxu0
    %v1237 = vadd.f32 %v1166, %v1236
    %v1238 = vpop.f32.mrb[0].mxu0
    %1239 = vdwg.mxu0
    %v1240 = vmax.f32 %v1237, 0.0
    %v1241 = vadd.f32 %v1240, %v1157
    %v1242 = vld [vmem:[%s2 + $0x178] sm:$0xff]
    %v1243 = vld [vmem:[%s2 + $0x180] sm:$0xff]
    %v1244 = vld [vmem:[%s2 + $0x188] sm:$0xff]
    %v1245 = vld [vmem:[%s2 + $0x190] sm:$0xff]
    %v1246 = vld [vmem:[%s3 + $0x58] sm:$0x1]
    %v1247 = vlaneseq
    %v1248 = vshrl.u32 %v1247, 7
    %v1249 = vsub.s32 0, %v1248
    %v1250 = vrot.slane %v1246, %v1249
    %v1252 = vsel %vm123, %v1241, 0
    %1254 = vmatprep.subr.mxu0 0.0
    %1255 = vmatpush1.msra.mxu0 %v1242
    %1256 = vmatprep.subr.mxu0 0.0
    %1257 = vmatpush1.msra.mxu0 %v1243
    %1258 = vmatprep.subr.mxu0 0.0
    %1259 = vmatpush1.msra.mxu0 %v1244
    %1260 = vmatprep.subr.mxu0 0.0
    %1261 = vmatpush1.msra.mxu0 %v1245
    %1262 = vmatprep.subr.mxu0 0.0
    %1263 = vmatpush1.msra.mxu0 0.0
    %1264 = vmatprep.subr.mxu0 0.0
    %1265 = vmatpush1.msra.mxu0 0.0
    %1266 = vmatprep.subr.mxu0 0.0
    %1267 = vmatpush1.msra.mxu0 0.0
    %1268 = vmatprep.subr.mxu0 0.0
    %1269 = vmatpush1.msra.mxu0 0.0
    %1270 = vmatprep.subr.mxu0 0.0
    %1271 = vmatpush1.msra.mxu0 0.0
    %1272 = vmatprep.subr.mxu0 0.0
    %1273 = vmatpush1.msra.mxu0 0.0
    %1274 = vmatprep.subr.mxu0 0.0
    %1275 = vmatpush1.msra.mxu0 0.0
    %1276 = vmatprep.subr.mxu0 0.0
    %1277 = vmatpush1.msra.mxu0 0.0
    %1278 = vmatprep.subr.mxu0 0.0
    %1279 = vmatpush1.msra.mxu0 0.0
    %1280 = vmatprep.subr.mxu0 0.0
    %1281 = vmatpush1.msra.mxu0 0.0
    %1282 = vmatprep.subr.mxu0 0.0
    %1283 = vmatpush1.msra.mxu0 0.0
    %1284 = vmatprep.subr.mxu0 0.0
    %1285 = vmatpush1.msra.mxu0 0.0
    %1286 = vmatprep.subr.mxu0 0.0
    %1287 = vmatpush1.msra.mxu0 0.0
    %1288 = vmatprep.subr.mxu0 0.0
    %1289 = vmatpush1.msra.mxu0 0.0
    %1290 = vmatprep.subr.mxu0 0.0
    %1291 = vmatpush1.msra.mxu0 0.0
    %1292 = vmatprep.subr.mxu0 0.0
    %1293 = vmatpush1.msra.mxu0 0.0
    %1294 = vmatprep.subr.mxu0 0.0
    %1295 = vmatpush1.msra.mxu0 0.0
    %1296 = vmatprep.subr.mxu0 0.0
    %1297 = vmatpush1.msra.mxu0 0.0
    %1298 = vmatprep.subr.mxu0 0.0
    %1299 = vmatpush1.msra.mxu0 0.0
    %1300 = vmatprep.subr.mxu0 0.0
    %1301 = vmatpush1.msra.mxu0 0.0
    %1302 = vmatprep.subr.mxu0 0.0
    %1303 = vmatpush1.msra.mxu0 0.0
    %1304 = vmatprep.subr.mxu0 0.0
    %1305 = vmatpush1.msra.mxu0 0.0
    %1306 = vmatprep.subr.mxu0 0.0
    %1307 = vmatpush1.msra.mxu0 0.0
    %1308 = vmatprep.subr.mxu0 0.0
    %1309 = vmatpush1.msra.mxu0 0.0
    %1310 = vmatprep.subr.mxu0 0.0
    %1311 = vmatpush1.msra.mxu0 0.0
    %1312 = vmatprep.subr.mxu0 0.0
    %1313 = vmatpush1.msra.mxu0 0.0
    %1314 = vmatprep.subr.mxu0 0.0
    %1315 = vmatpush1.msra.mxu0 0.0
    %1316 = vmatprep.subr.mxu0 0.0
    %1317 = vmatpush1.msra.mxu0 0.0
    %1318 = vmatprep.mubr.f32.mxu0 0.0
    %1319 = vmatmul.mubr.f32.gmra.mrb[0].mxu0 %v1252
    %v1320 = vpop.f32.mrb[0].mxu0
    %v1321 = vadd.f32 %v1250, %v1320
    %v1322 = vpop.f32.mrb[0].mxu0
    %1323 = vdwg.mxu0
    %v1324 = vmax.f32 %v1321, 0.0
    %v1325 = vadd.f32 %v1324, %v1241
    %v1326 = vld [vmem:[%s2 + $0x198] sm:$0xff]
    %v1327 = vld [vmem:[%s2 + $0x1a0] sm:$0xff]
    %v1328 = vld [vmem:[%s2 + $0x1a8] sm:$0xff]
    %v1329 = vld [vmem:[%s2 + $0x1b0] sm:$0xff]
    %v1330 = vld [vmem:[%s3 + $0x60] sm:$0x1]
    %v1331 = vlaneseq
    %v1332 = vshrl.u32 %v1331, 7
    %v1333 = vsub.s32 0, %v1332
    %v1334 = vrot.slane %v1330, %v1333
    %v1336 = vsel %vm123, %v1325, 0
    %1338 = vmatprep.subr.mxu0 0.0
    %1339 = vmatpush1.msra.mxu0 %v1326
    %1340 = vmatprep.subr.mxu0 0.0
    %1341 = vmatpush1.msra.mxu0 %v1327
    %1342 = vmatprep.subr.mxu0 0.0
    %1343 = vmatpush1.msra.mxu0 %v1328
    %1344 = vmatprep.subr.mxu0 0.0
    %1345 = vmatpush1.msra.mxu0 %v1329
    %1346 = vmatprep.subr.mxu0 0.0
    %1347 = vmatpush1.msra.mxu0 0.0
    %1348 = vmatprep.subr.mxu0 0.0
    %1349 = vmatpush1.msra.mxu0 0.0
    %1350 = vmatprep.subr.mxu0 0.0
    %1351 = vmatpush1.msra.mxu0 0.0
    %1352 = vmatprep.subr.mxu0 0.0
    %1353 = vmatpush1.msra.mxu0 0.0
    %1354 = vmatprep.subr.mxu0 0.0
    %1355 = vmatpush1.msra.mxu0 0.0
    %1356 = vmatprep.subr.mxu0 0.0
    %1357 = vmatpush1.msra.mxu0 0.0
    %1358 = vmatprep.subr.mxu0 0.0
    %1359 = vmatpush1.msra.mxu0 0.0
    %1360 = vmatprep.subr.mxu0 0.0
    %1361 = vmatpush1.msra.mxu0 0.0
    %1362 = vmatprep.subr.mxu0 0.0
    %1363 = vmatpush1.msra.mxu0 0.0
    %1364 = vmatprep.subr.mxu0 0.0
    %1365 = vmatpush1.msra.mxu0 0.0
    %1366 = vmatprep.subr.mxu0 0.0
    %1367 = vmatpush1.msra.mxu0 0.0
    %1368 = vmatprep.subr.mxu0 0.0
    %1369 = vmatpush1.msra.mxu0 0.0
    %1370 = vmatprep.subr.mxu0 0.0
    %1371 = vmatpush1.msra.mxu0 0.0
    %1372 = vmatprep.subr.mxu0 0.0
    %1373 = vmatpush1.msra.mxu0 0.0
    %1374 = vmatprep.subr.mxu0 0.0
    %1375 = vmatpush1.msra.mxu0 0.0
    %1376 = vmatprep.subr.mxu0 0.0
    %1377 = vmatpush1.msra.mxu0 0.0
    %1378 = vmatprep.subr.mxu0 0.0
    %1379 = vmatpush1.msra.mxu0 0.0
    %1380 = vmatprep.subr.mxu0 0.0
    %1381 = vmatpush1.msra.mxu0 0.0
    %1382 = vmatprep.subr.mxu0 0.0
    %1383 = vmatpush1.msra.mxu0 0.0
    %1384 = vmatprep.subr.mxu0 0.0
    %1385 = vmatpush1.msra.mxu0 0.0
    %1386 = vmatprep.subr.mxu0 0.0
    %1387 = vmatpush1.msra.mxu0 0.0
    %1388 = vmatprep.subr.mxu0 0.0
    %1389 = vmatpush1.msra.mxu0 0.0
    %1390 = vmatprep.subr.mxu0 0.0
    %1391 = vmatpush1.msra.mxu0 0.0
    %1392 = vmatprep.subr.mxu0 0.0
    %1393 = vmatpush1.msra.mxu0 0.0
    %1394 = vmatprep.subr.mxu0 0.0
    %1395 = vmatpush1.msra.mxu0 0.0
    %1396 = vmatprep.subr.mxu0 0.0
    %1397 = vmatpush1.msra.mxu0 0.0
    %1398 = vmatprep.subr.mxu0 0.0
    %1399 = vmatpush1.msra.mxu0 0.0
    %1400 = vmatprep.subr.mxu0 0.0
    %1401 = vmatpush1.msra.mxu0 0.0
    %1402 = vmatprep.mubr.f32.mxu0 0.0
    %1403 = vmatmul.mubr.f32.gmra.mrb[0].mxu0 %v1336
    %v1404 = vpop.f32.mrb[0].mxu0
    %v1405 = vadd.f32 %v1334, %v1404
    %v1406 = vpop.f32.mrb[0].mxu0
    %1407 = vdwg.mxu0
    %v1408 = vmax.f32 %v1405, 0.0
    %v1409 = vld [vmem:[%s2 + $0x1b8] sm:$0xff]
    %v1410 = vld [vmem:[%s2 + $0x1c0] sm:$0xff]
    %v1411 = vld [vmem:[%s2 + $0x1c8] sm:$0xff]
    %v1412 = vld [vmem:[%s2 + $0x1d0] sm:$0xff]
    %v1413 = vld [vmem:[%s3 + $0x68] sm:$0x1]
    %v1414 = vlaneseq
    %v1415 = vshrl.u32 %v1414, 7
    %v1416 = vsub.s32 0, %v1415
    %v1417 = vrot.slane %v1413, %v1416
    %v1419 = vsel %vm123, %v1408, 0
    %1421 = vmatprep.subr.mxu0 0.0
    %1422 = vmatpush1.msra.mxu0 %v1409
    %1423 = vmatprep.subr.mxu0 0.0
    %1424 = vmatpush1.msra.mxu0 %v1410
    %1425 = vmatprep.subr.mxu0 0.0
    %1426 = vmatpush1.msra.mxu0 %v1411
    %1427 = vmatprep.subr.mxu0 0.0
    %1428 = vmatpush1.msra.mxu0 %v1412
    %1429 = vmatprep.subr.mxu0 0.0
    %1430 = vmatpush1.msra.mxu0 0.0
    %1431 = vmatprep.subr.mxu0 0.0
    %1432 = vmatpush1.msra.mxu0 0.0
    %1433 = vmatprep.subr.mxu0 0.0
    %1434 = vmatpush1.msra.mxu0 0.0
    %1435 = vmatprep.subr.mxu0 0.0
    %1436 = vmatpush1.msra.mxu0 0.0
    %1437 = vmatprep.subr.mxu0 0.0
    %1438 = vmatpush1.msra.mxu0 0.0
    %1439 = vmatprep.subr.mxu0 0.0
    %1440 = vmatpush1.msra.mxu0 0.0
    %1441 = vmatprep.subr.mxu0 0.0
    %1442 = vmatpush1.msra.mxu0 0.0
    %1443 = vmatprep.subr.mxu0 0.0
    %1444 = vmatpush1.msra.mxu0 0.0
    %1445 = vmatprep.subr.mxu0 0.0
    %1446 = vmatpush1.msra.mxu0 0.0
    %1447 = vmatprep.subr.mxu0 0.0
    %1448 = vmatpush1.msra.mxu0 0.0
    %1449 = vmatprep.subr.mxu0 0.0
    %1450 = vmatpush1.msra.mxu0 0.0
    %1451 = vmatprep.subr.mxu0 0.0
    %1452 = vmatpush1.msra.mxu0 0.0
    %1453 = vmatprep.subr.mxu0 0.0
    %1454 = vmatpush1.msra.mxu0 0.0
    %1455 = vmatprep.subr.mxu0 0.0
    %1456 = vmatpush1.msra.mxu0 0.0
    %1457 = vmatprep.subr.mxu0 0.0
    %1458 = vmatpush1.msra.mxu0 0.0
    %1459 = vmatprep.subr.mxu0 0.0
    %1460 = vmatpush1.msra.mxu0 0.0
    %1461 = vmatprep.subr.mxu0 0.0
    %1462 = vmatpush1.msra.mxu0 0.0
    %1463 = vmatprep.subr.mxu0 0.0
    %1464 = vmatpush1.msra.mxu0 0.0
    %1465 = vmatprep.subr.mxu0 0.0
    %1466 = vmatpush1.msra.mxu0 0.0
    %1467 = vmatprep.subr.mxu0 0.0
    %1468 = vmatpush1.msra.mxu0 0.0
    %1469 = vmatprep.subr.mxu0 0.0
    %1470 = vmatpush1.msra.mxu0 0.0
    %1471 = vmatprep.subr.mxu0 0.0
    %1472 = vmatpush1.msra.mxu0 0.0
    %1473 = vmatprep.subr.mxu0 0.0
    %1474 = vmatpush1.msra.mxu0 0.0
    %1475 = vmatprep.subr.mxu0 0.0
    %1476 = vmatpush1.msra.mxu0 0.0
    %1477 = vmatprep.subr.mxu0 0.0
    %1478 = vmatpush1.msra.mxu0 0.0
    %1479 = vmatprep.subr.mxu0 0.0
    %1480 = vmatpush1.msra.mxu0 0.0
    %1481 = vmatprep.subr.mxu0 0.0
    %1482 = vmatpush1.msra.mxu0 0.0
    %1483 = vmatprep.subr.mxu0 0.0
    %1484 = vmatpush1.msra.mxu0 0.0
    %1485 = vmatprep.mubr.f32.mxu0 0.0
    %1486 = vmatmul.mubr.f32.gmra.mrb[0].mxu0 %v1419
    %v1487 = vpop.f32.mrb[0].mxu0
    %v1488 = vadd.f32 %v1417, %v1487
    %v1489 = vpop.f32.mrb[0].mxu0
    %1490 = vdwg.mxu0
    %1491 = vst.msk [vmem:[#allocation2] sm:$0xff] %vm30, %v1488
    %v1492 = vsel %vm123, %v394, 0.0
    %v1493 = vrot.slane %v1492, 4
    %v1494 = vadd.f32 %v1492, %v1493
    %v1495 = vrot.slane %v1494, 2
    %v1496 = vadd.f32 %v1494, %v1495
    %v1497 = vrot.slane %v1496, 1
    %v1498 = vadd.f32 %v1496, %v1497
    %v1499 = vmul.f32 %v1498, %v499
    %v1500 = vsel %vm123, %v394, -inf
    %v1501 = vrot.slane %v1500, 4
    %v1502 = vmax.f32 %v1500, %v1501
    %v1503 = vrot.slane %v1502, 2
    %v1504 = vmax.f32 %v1502, %v1503
    %v1505 = vrot.slane %v1504, 1
    %v1506 = vmax.f32 %v1504, %v1505
    %v1507 = vsel %vm123, %v394, inf
    %v1508 = vrot.slane %v1507, 4
    %v1509 = vmin.f32 %v1507, %v1508
    %v1510 = vrot.slane %v1509, 2
    %v1511 = vmin.f32 %v1509, %v1510
    %v1512 = vrot.slane %v1511, 1
    %v1513 = vmin.f32 %v1511, %v1512
    %v1514 = vsub.f32 %v394, %v1499
    %v1515 = vmul.f32 %v1514, %v1514
    %v1516 = vsel %vm123, %v1515, 0.0
    %v1517 = vrot.slane %v1516, 4
    %v1518 = vadd.f32 %v1516, %v1517
    %v1519 = vrot.slane %v1518, 2
    %v1520 = vadd.f32 %v1518, %v1519
    %v1521 = vrot.slane %v1520, 1
    %v1522 = vadd.f32 %v1520, %v1521
    %v1523 = vmul.f32 %v1522, %v524
    %v1524 = vmax.f32 %v1523, 0.0
    %v1525 = vrsqrt.pop %v1524
    %v1526 = vmul.f32 %v1524, %v1525
    %vm1527 = vcmp.eq.f32.partialorder %v1524, inf
    %v1528 = vsel %vm1527, %v1524, %v1526
    %vm1529 = vcmp.eq.f32.partialorder %v1524, 0.0
    %v1530 = vand.u32 %v1524, 2147483648
    %v1531 = vsel %vm1529, %v1530, %v1528
    %v1532 = vmax.f32 %v1499, 0.0
    %v1533 = vmax.f32 %v1506, 0.0
    %v1535 = vsel %vm123, %v1533, 0
    %1537 = vmatprep.subr.mxu0 0.0
    %1538 = vmatpush1.msra.mxu0 %v479
    %1539 = vmatprep.subr.mxu0 0.0
    %1540 = vmatpush1.msra.mxu0 %v480
    %1541 = vmatprep.subr.mxu0 0.0
    %1542 = vmatpush1.msra.mxu0 %v481
    %1543 = vmatprep.subr.mxu0 0.0
    %1544 = vmatpush1.msra.mxu0 %v482
    %1545 = vmatprep.subr.mxu0 0.0
    %1546 = vmatpush1.msra.mxu0 0.0
    %1547 = vmatprep.subr.mxu0 0.0
    %1548 = vmatpush1.msra.mxu0 0.0
    %1549 = vmatprep.subr.mxu0 0.0
    %1550 = vmatpush1.msra.mxu0 0.0
    %1551 = vmatprep.subr.mxu0 0.0
    %1552 = vmatpush1.msra.mxu0 0.0
    %1553 = vmatprep.subr.mxu0 0.0
    %1554 = vmatpush1.msra.mxu0 0.0
    %1555 = vmatprep.subr.mxu0 0.0
    %1556 = vmatpush1.msra.mxu0 0.0
    %1557 = vmatprep.subr.mxu0 0.0
    %1558 = vmatpush1.msra.mxu0 0.0
    %1559 = vmatprep.subr.mxu0 0.0
    %1560 = vmatpush1.msra.mxu0 0.0
    %1561 = vmatprep.subr.mxu0 0.0
    %1562 = vmatpush1.msra.mxu0 0.0
    %1563 = vmatprep.subr.mxu0 0.0
    %1564 = vmatpush1.msra.mxu0 0.0
    %1565 = vmatprep.subr.mxu0 0.0
    %1566 = vmatpush1.msra.mxu0 0.0
    %1567 = vmatprep.subr.mxu0 0.0
    %1568 = vmatpush1.msra.mxu0 0.0
    %1569 = vmatprep.subr.mxu0 0.0
    %1570 = vmatpush1.msra.mxu0 0.0
    %1571 = vmatprep.subr.mxu0 0.0
    %1572 = vmatpush1.msra.mxu0 0.0
    %1573 = vmatprep.subr.mxu0 0.0
    %1574 = vmatpush1.msra.mxu0 0.0
    %1575 = vmatprep.subr.mxu0 0.0
    %1576 = vmatpush1.msra.mxu0 0.0
    %1577 = vmatprep.subr.mxu0 0.0
    %1578 = vmatpush1.msra.mxu0 0.0
    %1579 = vmatprep.subr.mxu0 0.0
    %1580 = vmatpush1.msra.mxu0 0.0
    %1581 = vmatprep.subr.mxu0 0.0
    %1582 = vmatpush1.msra.mxu0 0.0
    %1583 = vmatprep.subr.mxu0 0.0
    %1584 = vmatpush1.msra.mxu0 0.0
    %1585 = vmatprep.subr.mxu0 0.0
    %1586 = vmatpush1.msra.mxu0 0.0
    %1587 = vmatprep.subr.mxu0 0.0
    %1588 = vmatpush1.msra.mxu0 0.0
    %1589 = vmatprep.subr.mxu0 0.0
    %1590 = vmatpush1.msra.mxu0 0.0
    %1591 = vmatprep.subr.mxu0 0.0
    %1592 = vmatpush1.msra.mxu0 0.0
    %1593 = vmatprep.subr.mxu0 0.0
    %1594 = vmatpush1.msra.mxu0 0.0
    %1595 = vmatprep.subr.mxu0 0.0
    %1596 = vmatpush1.msra.mxu0 0.0
    %1597 = vmatprep.subr.mxu0 0.0
    %1598 = vmatpush1.msra.mxu0 0.0
    %1599 = vmatprep.subr.mxu0 0.0
    %1600 = vmatpush1.msra.mxu0 0.0
    %1601 = vmatprep.mubr.f32.mxu0 0.0
    %1602 = vmatmul.mubr.f32.gmra.mrb[0].mxu0 %v1535
    %v1603 = vpop.f32.mrb[0].mxu0
    %v1604 = vadd.f32 0.0, %v1603
    %v1605 = vpop.f32.mrb[0].mxu0
    %1606 = vdwg.mxu0
    %v1608 = vsel %vm123, %v1532, 0
    %1610 = vmatprep.subr.mxu0 0.0
    %1611 = vmatpush1.msra.mxu0 %v475
    %1612 = vmatprep.subr.mxu0 0.0
    %1613 = vmatpush1.msra.mxu0 %v476
    %1614 = vmatprep.subr.mxu0 0.0
    %1615 = vmatpush1.msra.mxu0 %v477
    %1616 = vmatprep.subr.mxu0 0.0
    %1617 = vmatpush1.msra.mxu0 %v478
    %1618 = vmatprep.subr.mxu0 0.0
    %1619 = vmatpush1.msra.mxu0 0.0
    %1620 = vmatprep.subr.mxu0 0.0
    %1621 = vmatpush1.msra.mxu0 0.0
    %1622 = vmatprep.subr.mxu0 0.0
    %1623 = vmatpush1.msra.mxu0 0.0
    %1624 = vmatprep.subr.mxu0 0.0
    %1625 = vmatpush1.msra.mxu0 0.0
    %1626 = vmatprep.subr.mxu0 0.0
    %1627 = vmatpush1.msra.mxu0 0.0
    %1628 = vmatprep.subr.mxu0 0.0
    %1629 = vmatpush1.msra.mxu0 0.0
    %1630 = vmatprep.subr.mxu0 0.0
    %1631 = vmatpush1.msra.mxu0 0.0
    %1632 = vmatprep.subr.mxu0 0.0
    %1633 = vmatpush1.msra.mxu0 0.0
    %1634 = vmatprep.subr.mxu0 0.0
    %1635 = vmatpush1.msra.mxu0 0.0
    %1636 = vmatprep.subr.mxu0 0.0
    %1637 = vmatpush1.msra.mxu0 0.0
    %1638 = vmatprep.subr.mxu0 0.0
    %1639 = vmatpush1.msra.mxu0 0.0
    %1640 = vmatprep.subr.mxu0 0.0
    %1641 = vmatpush1.msra.mxu0 0.0
    %1642 = vmatprep.subr.mxu0 0.0
    %1643 = vmatpush1.msra.mxu0 0.0
    %1644 = vmatprep.subr.mxu0 0.0
    %1645 = vmatpush1.msra.mxu0 0.0
    %1646 = vmatprep.subr.mxu0 0.0
    %1647 = vmatpush1.msra.mxu0 0.0
    %1648 = vmatprep.subr.mxu0 0.0
    %1649 = vmatpush1.msra.mxu0 0.0
    %1650 = vmatprep.subr.mxu0 0.0
    %1651 = vmatpush1.msra.mxu0 0.0
    %1652 = vmatprep.subr.mxu0 0.0
    %1653 = vmatpush1.msra.mxu0 0.0
    %1654 = vmatprep.subr.mxu0 0.0
    %1655 = vmatpush1.msra.mxu0 0.0
    %1656 = vmatprep.subr.mxu0 0.0
    %1657 = vmatpush1.msra.mxu0 0.0
    %1658 = vmatprep.subr.mxu0 0.0
    %1659 = vmatpush1.msra.mxu0 0.0
    %1660 = vmatprep.subr.mxu0 0.0
    %1661 = vmatpush1.msra.mxu0 0.0
    %1662 = vmatprep.subr.mxu0 0.0
    %1663 = vmatpush1.msra.mxu0 0.0
    %1664 = vmatprep.subr.mxu0 0.0
    %1665 = vmatpush1.msra.mxu0 0.0
    %1666 = vmatprep.subr.mxu0 0.0
    %1667 = vmatpush1.msra.mxu0 0.0
    %1668 = vmatprep.subr.mxu0 0.0
    %1669 = vmatpush1.msra.mxu0 0.0
    %1670 = vmatprep.subr.mxu0 0.0
    %1671 = vmatpush1.msra.mxu0 0.0
    %1672 = vmatprep.subr.mxu0 0.0
    %1673 = vmatpush1.msra.mxu0 0.0
    %1674 = vmatprep.mubr.f32.mxu0 0.0
    %1675 = vmatmul.mubr.f32.gmra.mrb[0].mxu0 %v1608
    %v1676 = vpop.f32.mrb[0].mxu0
    %v1677 = vadd.f32 %v1604, %v1676
    %v1678 = vpop.f32.mrb[0].mxu0
    %1679 = vdwg.mxu0
    %v1680 = vmax.f32 %v1513, 0.0
    %v1682 = vsel %vm123, %v1680, 0
    %1684 = vmatprep.subr.mxu0 0.0
    %1685 = vmatpush1.msra.mxu0 %v483
    %1686 = vmatprep.subr.mxu0 0.0
    %1687 = vmatpush1.msra.mxu0 %v484
    %1688 = vmatprep.subr.mxu0 0.0
    %1689 = vmatpush1.msra.mxu0 %v485
    %1690 = vmatprep.subr.mxu0 0.0
    %1691 = vmatpush1.msra.mxu0 %v486
    %1692 = vmatprep.subr.mxu0 0.0
    %1693 = vmatpush1.msra.mxu0 0.0
    %1694 = vmatprep.subr.mxu0 0.0
    %1695 = vmatpush1.msra.mxu0 0.0
    %1696 = vmatprep.subr.mxu0 0.0
    %1697 = vmatpush1.msra.mxu0 0.0
    %1698 = vmatprep.subr.mxu0 0.0
    %1699 = vmatpush1.msra.mxu0 0.0
    %1700 = vmatprep.subr.mxu0 0.0
    %1701 = vmatpush1.msra.mxu0 0.0
    %1702 = vmatprep.subr.mxu0 0.0
    %1703 = vmatpush1.msra.mxu0 0.0
    %1704 = vmatprep.subr.mxu0 0.0
    %1705 = vmatpush1.msra.mxu0 0.0
    %1706 = vmatprep.subr.mxu0 0.0
    %1707 = vmatpush1.msra.mxu0 0.0
    %1708 = vmatprep.subr.mxu0 0.0
    %1709 = vmatpush1.msra.mxu0 0.0
    %1710 = vmatprep.subr.mxu0 0.0
    %1711 = vmatpush1.msra.mxu0 0.0
    %1712 = vmatprep.subr.mxu0 0.0
    %1713 = vmatpush1.msra.mxu0 0.0
    %1714 = vmatprep.subr.mxu0 0.0
    %1715 = vmatpush1.msra.mxu0 0.0
    %1716 = vmatprep.subr.mxu0 0.0
    %1717 = vmatpush1.msra.mxu0 0.0
    %1718 = vmatprep.subr.mxu0 0.0
    %1719 = vmatpush1.msra.mxu0 0.0
    %1720 = vmatprep.subr.mxu0 0.0
    %1721 = vmatpush1.msra.mxu0 0.0
    %1722 = vmatprep.subr.mxu0 0.0
    %1723 = vmatpush1.msra.mxu0 0.0
    %1724 = vmatprep.subr.mxu0 0.0
    %1725 = vmatpush1.msra.mxu0 0.0
    %1726 = vmatprep.subr.mxu0 0.0
    %1727 = vmatpush1.msra.mxu0 0.0
    %1728 = vmatprep.subr.mxu0 0.0
    %1729 = vmatpush1.msra.mxu0 0.0
    %1730 = vmatprep.subr.mxu0 0.0
    %1731 = vmatpush1.msra.mxu0 0.0
    %1732 = vmatprep.subr.mxu0 0.0
    %1733 = vmatpush1.msra.mxu0 0.0
    %1734 = vmatprep.subr.mxu0 0.0
    %1735 = vmatpush1.msra.mxu0 0.0
    %1736 = vmatprep.subr.mxu0 0.0
    %1737 = vmatpush1.msra.mxu0 0.0
    %1738 = vmatprep.subr.mxu0 0.0
    %1739 = vmatpush1.msra.mxu0 0.0
    %1740 = vmatprep.subr.mxu0 0.0
    %1741 = vmatpush1.msra.mxu0 0.0
    %1742 = vmatprep.subr.mxu0 0.0
    %1743 = vmatpush1.msra.mxu0 0.0
    %1744 = vmatprep.subr.mxu0 0.0
    %1745 = vmatpush1.msra.mxu0 0.0
    %1746 = vmatprep.subr.mxu0 0.0
    %1747 = vmatpush1.msra.mxu0 0.0
    %1748 = vmatprep.mubr.f32.mxu0 0.0
    %1749 = vmatmul.mubr.f32.gmra.mrb[0].mxu0 %v1682
    %v1750 = vpop.f32.mrb[0].mxu0
    %v1751 = vadd.f32 0.0, %v1750
    %v1752 = vpop.f32.mrb[0].mxu0
    %1753 = vdwg.mxu0
    %v1754 = vadd.f32 %v1677, %v1751
    %v1755 = vmax.f32 %v1531, 0.0
    %v1757 = vsel %vm123, %v1755, 0
    %1759 = vmatprep.subr.mxu0 0.0
    %1760 = vmatpush1.msra.mxu0 %v487
    %1761 = vmatprep.subr.mxu0 0.0
    %1762 = vmatpush1.msra.mxu0 %v488
    %1763 = vmatprep.subr.mxu0 0.0
    %1764 = vmatpush1.msra.mxu0 %v489
    %1765 = vmatprep.subr.mxu0 0.0
    %1766 = vmatpush1.msra.mxu0 %v490
    %1767 = vmatprep.subr.mxu0 0.0
    %1768 = vmatpush1.msra.mxu0 0.0
    %1769 = vmatprep.subr.mxu0 0.0
    %1770 = vmatpush1.msra.mxu0 0.0
    %1771 = vmatprep.subr.mxu0 0.0
    %1772 = vmatpush1.msra.mxu0 0.0
    %1773 = vmatprep.subr.mxu0 0.0
    %1774 = vmatpush1.msra.mxu0 0.0
    %1775 = vmatprep.subr.mxu0 0.0
    %1776 = vmatpush1.msra.mxu0 0.0
    %1777 = vmatprep.subr.mxu0 0.0
    %1778 = vmatpush1.msra.mxu0 0.0
    %1779 = vmatprep.subr.mxu0 0.0
    %1780 = vmatpush1.msra.mxu0 0.0
    %1781 = vmatprep.subr.mxu0 0.0
    %1782 = vmatpush1.msra.mxu0 0.0
    %1783 = vmatprep.subr.mxu0 0.0
    %1784 = vmatpush1.msra.mxu0 0.0
    %1785 = vmatprep.subr.mxu0 0.0
    %1786 = vmatpush1.msra.mxu0 0.0
    %1787 = vmatprep.subr.mxu0 0.0
    %1788 = vmatpush1.msra.mxu0 0.0
    %1789 = vmatprep.subr.mxu0 0.0
    %1790 = vmatpush1.msra.mxu0 0.0
    %1791 = vmatprep.subr.mxu0 0.0
    %1792 = vmatpush1.msra.mxu0 0.0
    %1793 = vmatprep.subr.mxu0 0.0
    %1794 = vmatpush1.msra.mxu0 0.0
    %1795 = vmatprep.subr.mxu0 0.0
    %1796 = vmatpush1.msra.mxu0 0.0
    %1797 = vmatprep.subr.mxu0 0.0
    %1798 = vmatpush1.msra.mxu0 0.0
    %1799 = vmatprep.subr.mxu0 0.0
    %1800 = vmatpush1.msra.mxu0 0.0
    %1801 = vmatprep.subr.mxu0 0.0
    %1802 = vmatpush1.msra.mxu0 0.0
    %1803 = vmatprep.subr.mxu0 0.0
    %1804 = vmatpush1.msra.mxu0 0.0
    %1805 = vmatprep.subr.mxu0 0.0
    %1806 = vmatpush1.msra.mxu0 0.0
    %1807 = vmatprep.subr.mxu0 0.0
    %1808 = vmatpush1.msra.mxu0 0.0
    %1809 = vmatprep.subr.mxu0 0.0
    %1810 = vmatpush1.msra.mxu0 0.0
    %1811 = vmatprep.subr.mxu0 0.0
    %1812 = vmatpush1.msra.mxu0 0.0
    %1813 = vmatprep.subr.mxu0 0.0
    %1814 = vmatpush1.msra.mxu0 0.0
    %1815 = vmatprep.subr.mxu0 0.0
    %1816 = vmatpush1.msra.mxu0 0.0
    %1817 = vmatprep.subr.mxu0 0.0
    %1818 = vmatpush1.msra.mxu0 0.0
    %1819 = vmatprep.subr.mxu0 0.0
    %1820 = vmatpush1.msra.mxu0 0.0
    %1821 = vmatprep.subr.mxu0 0.0
    %1822 = vmatpush1.msra.mxu0 0.0
    %1823 = vmatprep.mubr.f32.mxu0 0.0
    %1824 = vmatmul.mubr.f32.gmra.mrb[0].mxu0 %v1757
    %v1825 = vpop.f32.mrb[0].mxu0
    %v1826 = vadd.f32 0.0, %v1825
    %v1827 = vpop.f32.mrb[0].mxu0
    %1828 = vdwg.mxu0
    %v1829 = vadd.f32 %v1754, %v1826
    %v1830 = vld [vmem:[%s3 + $0x20] sm:$0x1]
    %v1831 = vadd.f32 %v1829, %v1830
    %v1832 = vmax.f32 %v1831, 0.0
    %v1833 = vld [vmem:[%s2 + $0xe8] sm:$0xff]
    %v1834 = vld [vmem:[%s2 + $0xf0] sm:$0xff]
    %v1835 = vld [vmem:[%s2 + $0xf8] sm:$0xff]
    %v1836 = vld [vmem:[%s2 + $0x100] sm:$0xff]
    %v1837 = vld [vmem:[%s3 + $0x28] sm:$0x1]
    %v1839 = vsel %vm123, %v1832, 0
    %1841 = vmatprep.subr.mxu0 0.0
    %1842 = vmatpush1.msra.mxu0 %v1833
    %1843 = vmatprep.subr.mxu0 0.0
    %1844 = vmatpush1.msra.mxu0 %v1834
    %1845 = vmatprep.subr.mxu0 0.0
    %1846 = vmatpush1.msra.mxu0 %v1835
    %1847 = vmatprep.subr.mxu0 0.0
    %1848 = vmatpush1.msra.mxu0 %v1836
    %1849 = vmatprep.subr.mxu0 0.0
    %1850 = vmatpush1.msra.mxu0 0.0
    %1851 = vmatprep.subr.mxu0 0.0
    %1852 = vmatpush1.msra.mxu0 0.0
    %1853 = vmatprep.subr.mxu0 0.0
    %1854 = vmatpush1.msra.mxu0 0.0
    %1855 = vmatprep.subr.mxu0 0.0
    %1856 = vmatpush1.msra.mxu0 0.0
    %1857 = vmatprep.subr.mxu0 0.0
    %1858 = vmatpush1.msra.mxu0 0.0
    %1859 = vmatprep.subr.mxu0 0.0
    %1860 = vmatpush1.msra.mxu0 0.0
    %1861 = vmatprep.subr.mxu0 0.0
    %1862 = vmatpush1.msra.mxu0 0.0
    %1863 = vmatprep.subr.mxu0 0.0
    %1864 = vmatpush1.msra.mxu0 0.0
    %1865 = vmatprep.subr.mxu0 0.0
    %1866 = vmatpush1.msra.mxu0 0.0
    %1867 = vmatprep.subr.mxu0 0.0
    %1868 = vmatpush1.msra.mxu0 0.0
    %1869 = vmatprep.subr.mxu0 0.0
    %1870 = vmatpush1.msra.mxu0 0.0
    %1871 = vmatprep.subr.mxu0 0.0
    %1872 = vmatpush1.msra.mxu0 0.0
    %1873 = vmatprep.subr.mxu0 0.0
    %1874 = vmatpush1.msra.mxu0 0.0
    %1875 = vmatprep.subr.mxu0 0.0
    %1876 = vmatpush1.msra.mxu0 0.0
    %1877 = vmatprep.subr.mxu0 0.0
    %1878 = vmatpush1.msra.mxu0 0.0
    %1879 = vmatprep.subr.mxu0 0.0
    %1880 = vmatpush1.msra.mxu0 0.0
    %1881 = vmatprep.subr.mxu0 0.0
    %1882 = vmatpush1.msra.mxu0 0.0
    %1883 = vmatprep.subr.mxu0 0.0
    %1884 = vmatpush1.msra.mxu0 0.0
    %1885 = vmatprep.subr.mxu0 0.0
    %1886 = vmatpush1.msra.mxu0 0.0
    %1887 = vmatprep.subr.mxu0 0.0
    %1888 = vmatpush1.msra.mxu0 0.0
    %1889 = vmatprep.subr.mxu0 0.0
    %1890 = vmatpush1.msra.mxu0 0.0
    %1891 = vmatprep.subr.mxu0 0.0
    %1892 = vmatpush1.msra.mxu0 0.0
    %1893 = vmatprep.subr.mxu0 0.0
    %1894 = vmatpush1.msra.mxu0 0.0
    %1895 = vmatprep.subr.mxu0 0.0
    %1896 = vmatpush1.msra.mxu0 0.0
    %1897 = vmatprep.subr.mxu0 0.0
    %1898 = vmatpush1.msra.mxu0 0.0
    %1899 = vmatprep.subr.mxu0 0.0
    %1900 = vmatpush1.msra.mxu0 0.0
    %1901 = vmatprep.subr.mxu0 0.0
    %1902 = vmatpush1.msra.mxu0 0.0
    %1903 = vmatprep.subr.mxu0 0.0
    %1904 = vmatpush1.msra.mxu0 0.0
    %1905 = vmatprep.mubr.f32.mxu0 0.0
    %1906 = vmatmul.mubr.f32.gmra.mrb[0].mxu0 %v1839
    %v1907 = vpop.f32.mrb[0].mxu0
    %v1908 = vadd.f32 %v1837, %v1907
    %v1909 = vpop.f32.mrb[0].mxu0
    %1910 = vdwg.mxu0
    %v1911 = vld [vmem:[%s2 + $0x108] sm:$0xff]
    %v1912 = vld [vmem:[%s2 + $0x110] sm:$0xff]
    %v1913 = vld [vmem:[%s2 + $0x118] sm:$0xff]
    %v1914 = vld [vmem:[%s2 + $0x120] sm:$0xff]
    %v1915 = vld [vmem:[%s3 + $0x30] sm:$0x1]
    %1916 = vmatprep.subr.mxu0 0.0
    %1917 = vmatpush1.msra.mxu0 %v1911
    %1918 = vmatprep.subr.mxu0 0.0
    %1919 = vmatpush1.msra.mxu0 %v1912
    %1920 = vmatprep.subr.mxu0 0.0
    %1921 = vmatpush1.msra.mxu0 %v1913
    %1922 = vmatprep.subr.mxu0 0.0
    %1923 = vmatpush1.msra.mxu0 %v1914
    %1924 = vmatprep.subr.mxu0 0.0
    %1925 = vmatpush1.msra.mxu0 0.0
    %1926 = vmatprep.subr.mxu0 0.0
    %1927 = vmatpush1.msra.mxu0 0.0
    %1928 = vmatprep.subr.mxu0 0.0
    %1929 = vmatpush1.msra.mxu0 0.0
    %1930 = vmatprep.subr.mxu0 0.0
    %1931 = vmatpush1.msra.mxu0 0.0
    %1932 = vmatprep.subr.mxu0 0.0
    %1933 = vmatpush1.msra.mxu0 0.0
    %1934 = vmatprep.subr.mxu0 0.0
    %1935 = vmatpush1.msra.mxu0 0.0
    %1936 = vmatprep.subr.mxu0 0.0
    %1937 = vmatpush1.msra.mxu0 0.0
    %1938 = vmatprep.subr.mxu0 0.0
    %1939 = vmatpush1.msra.mxu0 0.0
    %1940 = vmatprep.subr.mxu0 0.0
    %1941 = vmatpush1.msra.mxu0 0.0
    %1942 = vmatprep.subr.mxu0 0.0
    %1943 = vmatpush1.msra.mxu0 0.0
    %1944 = vmatprep.subr.mxu0 0.0
    %1945 = vmatpush1.msra.mxu0 0.0
    %1946 = vmatprep.subr.mxu0 0.0
    %1947 = vmatpush1.msra.mxu0 0.0
    %1948 = vmatprep.subr.mxu0 0.0
    %1949 = vmatpush1.msra.mxu0 0.0
    %1950 = vmatprep.subr.mxu0 0.0
    %1951 = vmatpush1.msra.mxu0 0.0
    %1952 = vmatprep.subr.mxu0 0.0
    %1953 = vmatpush1.msra.mxu0 0.0
    %1954 = vmatprep.subr.mxu0 0.0
    %1955 = vmatpush1.msra.mxu0 0.0
    %1956 = vmatprep.subr.mxu0 0.0
    %1957 = vmatpush1.msra.mxu0 0.0
    %1958 = vmatprep.subr.mxu0 0.0
    %1959 = vmatpush1.msra.mxu0 0.0
    %1960 = vmatprep.subr.mxu0 0.0
    %1961 = vmatpush1.msra.mxu0 0.0
    %1962 = vmatprep.subr.mxu0 0.0
    %1963 = vmatpush1.msra.mxu0 0.0
    %1964 = vmatprep.subr.mxu0 0.0
    %1965 = vmatpush1.msra.mxu0 0.0
    %1966 = vmatprep.subr.mxu0 0.0
    %1967 = vmatpush1.msra.mxu0 0.0
    %1968 = vmatprep.subr.mxu0 0.0
    %1969 = vmatpush1.msra.mxu0 0.0
    %1970 = vmatprep.subr.mxu0 0.0
    %1971 = vmatpush1.msra.mxu0 0.0
    %1972 = vmatprep.subr.mxu0 0.0
    %1973 = vmatpush1.msra.mxu0 0.0
    %1974 = vmatprep.subr.mxu0 0.0
    %1975 = vmatpush1.msra.mxu0 0.0
    %1976 = vmatprep.subr.mxu0 0.0
    %1977 = vmatpush1.msra.mxu0 0.0
    %1978 = vmatprep.subr.mxu0 0.0
    %1979 = vmatpush1.msra.mxu0 0.0
    %1980 = vmatprep.mubr.f32.mxu0 0.0
    %1981 = vmatmul.mubr.f32.gmra.mrb[0].mxu0 %v1839
    %v1982 = vpop.f32.mrb[0].mxu0
    %v1983 = vadd.f32 %v1915, %v1982
    %v1984 = vpop.f32.mrb[0].mxu0
    %1985 = vdwg.mxu0
    %1986 = vst.msk [vmem:[#allocation4 + $0x1] sm:$0x1] %vm988, %v1908
    %1987 = vst.msk [vmem:[#allocation6 + $0x1] sm:$0x1] %vm988, %v1983
    %v1988 = vmul.f32 %v1983, %v1983
    %v1990 = vrot.slane %v1988, 7
    %v1992 = vmul.f32 %v491, %v1990
    %v1994 = vrot.slane %v1992, 1
    %v1996 = vadd.f32 %v1908, %v1994
    %v1997 = vld [vmem:[%s2 + $0x130] sm:$0xff]
    %v1998 = vld [vmem:[%s3 + $0x40] sm:$0x1]
    %v2000 = vsel %vm30, %v1996, 0
    %2002 = vmatprep.subr.mxu0 0.0
    %2003 = vmatpush1.msra.mxu0 %v1997
    %2004 = vmatprep.subr.mxu0 0.0
    %2005 = vmatpush1.msra.mxu0 0.0
    %2006 = vmatprep.subr.mxu0 0.0
    %2007 = vmatpush1.msra.mxu0 0.0
    %2008 = vmatprep.subr.mxu0 0.0
    %2009 = vmatpush1.msra.mxu0 0.0
    %2010 = vmatprep.subr.mxu0 0.0
    %2011 = vmatpush1.msra.mxu0 0.0
    %2012 = vmatprep.subr.mxu0 0.0
    %2013 = vmatpush1.msra.mxu0 0.0
    %2014 = vmatprep.subr.mxu0 0.0
    %2015 = vmatpush1.msra.mxu0 0.0
    %2016 = vmatprep.subr.mxu0 0.0
    %2017 = vmatpush1.msra.mxu0 0.0
    %2018 = vmatprep.subr.mxu0 0.0
    %2019 = vmatpush1.msra.mxu0 0.0
    %2020 = vmatprep.subr.mxu0 0.0
    %2021 = vmatpush1.msra.mxu0 0.0
    %2022 = vmatprep.subr.mxu0 0.0
    %2023 = vmatpush1.msra.mxu0 0.0
    %2024 = vmatprep.subr.mxu0 0.0
    %2025 = vmatpush1.msra.mxu0 0.0
    %2026 = vmatprep.subr.mxu0 0.0
    %2027 = vmatpush1.msra.mxu0 0.0
    %2028 = vmatprep.subr.mxu0 0.0
    %2029 = vmatpush1.msra.mxu0 0.0
    %2030 = vmatprep.subr.mxu0 0.0
    %2031 = vmatpush1.msra.mxu0 0.0
    %2032 = vmatprep.subr.mxu0 0.0
    %2033 = vmatpush1.msra.mxu0 0.0
    %2034 = vmatprep.subr.mxu0 0.0
    %2035 = vmatpush1.msra.mxu0 0.0
    %2036 = vmatprep.subr.mxu0 0.0
    %2037 = vmatpush1.msra.mxu0 0.0
    %2038 = vmatprep.subr.mxu0 0.0
    %2039 = vmatpush1.msra.mxu0 0.0
    %2040 = vmatprep.subr.mxu0 0.0
    %2041 = vmatpush1.msra.mxu0 0.0
    %2042 = vmatprep.subr.mxu0 0.0
    %2043 = vmatpush1.msra.mxu0 0.0
    %2044 = vmatprep.subr.mxu0 0.0
    %2045 = vmatpush1.msra.mxu0 0.0
    %2046 = vmatprep.subr.mxu0 0.0
    %2047 = vmatpush1.msra.mxu0 0.0
    %2048 = vmatprep.subr.mxu0 0.0
    %2049 = vmatpush1.msra.mxu0 0.0
    %2050 = vmatprep.subr.mxu0 0.0
    %2051 = vmatpush1.msra.mxu0 0.0
    %2052 = vmatprep.subr.mxu0 0.0
    %2053 = vmatpush1.msra.mxu0 0.0
    %2054 = vmatprep.subr.mxu0 0.0
    %2055 = vmatpush1.msra.mxu0 0.0
    %2056 = vmatprep.subr.mxu0 0.0
    %2057 = vmatpush1.msra.mxu0 0.0
    %2058 = vmatprep.subr.mxu0 0.0
    %2059 = vmatpush1.msra.mxu0 0.0
    %2060 = vmatprep.subr.mxu0 0.0
    %2061 = vmatpush1.msra.mxu0 0.0
    %2062 = vmatprep.subr.mxu0 0.0
    %2063 = vmatpush1.msra.mxu0 0.0
    %2064 = vmatprep.subr.mxu0 0.0
    %2065 = vmatpush1.msra.mxu0 0.0
    %2066 = vmatprep.mubr.f32.mxu0 0.0
    %2067 = vmatmul.mubr.f32.gmra.mrb[0].mxu0 %v2000
    %v2068 = vpop.f32.mrb[0].mxu0
    %v2069 = vadd.f32 %v1998, %v2068
    %v2070 = vpop.f32.mrb[0].mxu0
    %2071 = vdwg.mxu0
    %v2072 = vlaneseq
    %v2073 = vshrl.u32 %v2072, 7
    %v2074 = vsub.s32 0, %v2073
    %v2075 = vrot.slane %v2069, %v2074
    %v2076 = vadd.f32 %v472, %v2075
    %v2077 = vmax.f32 %v2076, 0.0
    %v2078 = vld [vmem:[%s2 + $0x138] sm:$0xff]
    %v2079 = vld [vmem:[%s2 + $0x140] sm:$0xff]
    %v2080 = vld [vmem:[%s2 + $0x148] sm:$0xff]
    %v2081 = vld [vmem:[%s2 + $0x150] sm:$0xff]
    %v2082 = vld [vmem:[%s3 + $0x48] sm:$0x1]
    %v2083 = vlaneseq
    %v2084 = vshrl.u32 %v2083, 7
    %v2085 = vsub.s32 0, %v2084
    %v2086 = vrot.slane %v2082, %v2085
    %v2088 = vsel %vm123, %v2077, 0
    %2090 = vmatprep.subr.mxu0 0.0
    %2091 = vmatpush1.msra.mxu0 %v2078
    %2092 = vmatprep.subr.mxu0 0.0
    %2093 = vmatpush1.msra.mxu0 %v2079
    %2094 = vmatprep.subr.mxu0 0.0
    %2095 = vmatpush1.msra.mxu0 %v2080
    %2096 = vmatprep.subr.mxu0 0.0
    %2097 = vmatpush1.msra.mxu0 %v2081
    %2098 = vmatprep.subr.mxu0 0.0
    %2099 = vmatpush1.msra.mxu0 0.0
    %2100 = vmatprep.subr.mxu0 0.0
    %2101 = vmatpush1.msra.mxu0 0.0
    %2102 = vmatprep.subr.mxu0 0.0
    %2103 = vmatpush1.msra.mxu0 0.0
    %2104 = vmatprep.subr.mxu0 0.0
    %2105 = vmatpush1.msra.mxu0 0.0
    %2106 = vmatprep.subr.mxu0 0.0
    %2107 = vmatpush1.msra.mxu0 0.0
    %2108 = vmatprep.subr.mxu0 0.0
    %2109 = vmatpush1.msra.mxu0 0.0
    %2110 = vmatprep.subr.mxu0 0.0
    %2111 = vmatpush1.msra.mxu0 0.0
    %2112 = vmatprep.subr.mxu0 0.0
    %2113 = vmatpush1.msra.mxu0 0.0
    %2114 = vmatprep.subr.mxu0 0.0
    %2115 = vmatpush1.msra.mxu0 0.0
    %2116 = vmatprep.subr.mxu0 0.0
    %2117 = vmatpush1.msra.mxu0 0.0
    %2118 = vmatprep.subr.mxu0 0.0
    %2119 = vmatpush1.msra.mxu0 0.0
    %2120 = vmatprep.subr.mxu0 0.0
    %2121 = vmatpush1.msra.mxu0 0.0
    %2122 = vmatprep.subr.mxu0 0.0
    %2123 = vmatpush1.msra.mxu0 0.0
    %2124 = vmatprep.subr.mxu0 0.0
    %2125 = vmatpush1.msra.mxu0 0.0
    %2126 = vmatprep.subr.mxu0 0.0
    %2127 = vmatpush1.msra.mxu0 0.0
    %2128 = vmatprep.subr.mxu0 0.0
    %2129 = vmatpush1.msra.mxu0 0.0
    %2130 = vmatprep.subr.mxu0 0.0
    %2131 = vmatpush1.msra.mxu0 0.0
    %2132 = vmatprep.subr.mxu0 0.0
    %2133 = vmatpush1.msra.mxu0 0.0
    %2134 = vmatprep.subr.mxu0 0.0
    %2135 = vmatpush1.msra.mxu0 0.0
    %2136 = vmatprep.subr.mxu0 0.0
    %2137 = vmatpush1.msra.mxu0 0.0
    %2138 = vmatprep.subr.mxu0 0.0
    %2139 = vmatpush1.msra.mxu0 0.0
    %2140 = vmatprep.subr.mxu0 0.0
    %2141 = vmatpush1.msra.mxu0 0.0
    %2142 = vmatprep.subr.mxu0 0.0
    %2143 = vmatpush1.msra.mxu0 0.0
    %2144 = vmatprep.subr.mxu0 0.0
    %2145 = vmatpush1.msra.mxu0 0.0
    %2146 = vmatprep.subr.mxu0 0.0
    %2147 = vmatpush1.msra.mxu0 0.0
    %2148 = vmatprep.subr.mxu0 0.0
    %2149 = vmatpush1.msra.mxu0 0.0
    %2150 = vmatprep.subr.mxu0 0.0
    %2151 = vmatpush1.msra.mxu0 0.0
    %2152 = vmatprep.subr.mxu0 0.0
    %2153 = vmatpush1.msra.mxu0 0.0
    %2154 = vmatprep.mubr.f32.mxu0 0.0
    %2155 = vmatmul.mubr.f32.gmra.mrb[0].mxu0 %v2088
    %v2156 = vpop.f32.mrb[0].mxu0
    %v2157 = vadd.f32 %v2086, %v2156
    %v2158 = vpop.f32.mrb[0].mxu0
    %2159 = vdwg.mxu0
    %v2160 = vmax.f32 %v2157, 0.0
    %v2161 = vld [vmem:[%s2 + $0x158] sm:$0xff]
    %v2162 = vld [vmem:[%s2 + $0x160] sm:$0xff]
    %v2163 = vld [vmem:[%s2 + $0x168] sm:$0xff]
    %v2164 = vld [vmem:[%s2 + $0x170] sm:$0xff]
    %v2165 = vld [vmem:[%s3 + $0x50] sm:$0x1]
    %v2166 = vlaneseq
    %v2167 = vshrl.u32 %v2166, 7
    %v2168 = vsub.s32 0, %v2167
    %v2169 = vrot.slane %v2165, %v2168
    %v2171 = vsel %vm123, %v2160, 0
    %2173 = vmatprep.subr.mxu0 0.0
    %2174 = vmatpush1.msra.mxu0 %v2161
    %2175 = vmatprep.subr.mxu0 0.0
    %2176 = vmatpush1.msra.mxu0 %v2162
    %2177 = vmatprep.subr.mxu0 0.0
    %2178 = vmatpush1.msra.mxu0 %v2163
    %2179 = vmatprep.subr.mxu0 0.0
    %2180 = vmatpush1.msra.mxu0 %v2164
    %2181 = vmatprep.subr.mxu0 0.0
    %2182 = vmatpush1.msra.mxu0 0.0
    %2183 = vmatprep.subr.mxu0 0.0
    %2184 = vmatpush1.msra.mxu0 0.0
    %2185 = vmatprep.subr.mxu0 0.0
    %2186 = vmatpush1.msra.mxu0 0.0
    %2187 = vmatprep.subr.mxu0 0.0
    %2188 = vmatpush1.msra.mxu0 0.0
    %2189 = vmatprep.subr.mxu0 0.0
    %2190 = vmatpush1.msra.mxu0 0.0
    %2191 = vmatprep.subr.mxu0 0.0
    %2192 = vmatpush1.msra.mxu0 0.0
    %2193 = vmatprep.subr.mxu0 0.0
    %2194 = vmatpush1.msra.mxu0 0.0
    %2195 = vmatprep.subr.mxu0 0.0
    %2196 = vmatpush1.msra.mxu0 0.0
    %2197 = vmatprep.subr.mxu0 0.0
    %2198 = vmatpush1.msra.mxu0 0.0
    %2199 = vmatprep.subr.mxu0 0.0
    %2200 = vmatpush1.msra.mxu0 0.0
    %2201 = vmatprep.subr.mxu0 0.0
    %2202 = vmatpush1.msra.mxu0 0.0
    %2203 = vmatprep.subr.mxu0 0.0
    %2204 = vmatpush1.msra.mxu0 0.0
    %2205 = vmatprep.subr.mxu0 0.0
    %2206 = vmatpush1.msra.mxu0 0.0
    %2207 = vmatprep.subr.mxu0 0.0
    %2208 = vmatpush1.msra.mxu0 0.0
    %2209 = vmatprep.subr.mxu0 0.0
    %2210 = vmatpush1.msra.mxu0 0.0
    %2211 = vmatprep.subr.mxu0 0.0
    %2212 = vmatpush1.msra.mxu0 0.0
    %2213 = vmatprep.subr.mxu0 0.0
    %2214 = vmatpush1.msra.mxu0 0.0
    %2215 = vmatprep.subr.mxu0 0.0
    %2216 = vmatpush1.msra.mxu0 0.0
    %2217 = vmatprep.subr.mxu0 0.0
    %2218 = vmatpush1.msra.mxu0 0.0
    %2219 = vmatprep.subr.mxu0 0.0
    %2220 = vmatpush1.msra.mxu0 0.0
    %2221 = vmatprep.subr.mxu0 0.0
    %2222 = vmatpush1.msra.mxu0 0.0
    %2223 = vmatprep.subr.mxu0 0.0
    %2224 = vmatpush1.msra.mxu0 0.0
    %2225 = vmatprep.subr.mxu0 0.0
    %2226 = vmatpush1.msra.mxu0 0.0
    %2227 = vmatprep.subr.mxu0 0.0
    %2228 = vmatpush1.msra.mxu0 0.0
    %2229 = vmatprep.subr.mxu0 0.0
    %2230 = vmatpush1.msra.mxu0 0.0
    %2231 = vmatprep.subr.mxu0 0.0
    %2232 = vmatpush1.msra.mxu0 0.0
    %2233 = vmatprep.subr.mxu0 0.0
    %2234 = vmatpush1.msra.mxu0 0.0
    %2235 = vmatprep.subr.mxu0 0.0
    %2236 = vmatpush1.msra.mxu0 0.0
    %2237 = vmatprep.mubr.f32.mxu0 0.0
    %2238 = vmatmul.mubr.f32.gmra.mrb[0].mxu0 %v2171
    %v2239 = vpop.f32.mrb[0].mxu0
    %v2240 = vadd.f32 %v2169, %v2239
    %v2241 = vpop.f32.mrb[0].mxu0
    %2242 = vdwg.mxu0
    %v2243 = vmax.f32 %v2240, 0.0
    %v2244 = vadd.f32 %v2243, %v2160
    %v2245 = vld [vmem:[%s2 + $0x178] sm:$0xff]
    %v2246 = vld [vmem:[%s2 + $0x180] sm:$0xff]
    %v2247 = vld [vmem:[%s2 + $0x188] sm:$0xff]
    %v2248 = vld [vmem:[%s2 + $0x190] sm:$0xff]
    %v2249 = vld [vmem:[%s3 + $0x58] sm:$0x1]
    %v2250 = vlaneseq
    %v2251 = vshrl.u32 %v2250, 7
    %v2252 = vsub.s32 0, %v2251
    %v2253 = vrot.slane %v2249, %v2252
    %v2255 = vsel %vm123, %v2244, 0
    %2257 = vmatprep.subr.mxu0 0.0
    %2258 = vmatpush1.msra.mxu0 %v2245
    %2259 = vmatprep.subr.mxu0 0.0
    %2260 = vmatpush1.msra.mxu0 %v2246
    %2261 = vmatprep.subr.mxu0 0.0
    %2262 = vmatpush1.msra.mxu0 %v2247
    %2263 = vmatprep.subr.mxu0 0.0
    %2264 = vmatpush1.msra.mxu0 %v2248
    %2265 = vmatprep.subr.mxu0 0.0
    %2266 = vmatpush1.msra.mxu0 0.0
    %2267 = vmatprep.subr.mxu0 0.0
    %2268 = vmatpush1.msra.mxu0 0.0
    %2269 = vmatprep.subr.mxu0 0.0
    %2270 = vmatpush1.msra.mxu0 0.0
    %2271 = vmatprep.subr.mxu0 0.0
    %2272 = vmatpush1.msra.mxu0 0.0
    %2273 = vmatprep.subr.mxu0 0.0
    %2274 = vmatpush1.msra.mxu0 0.0
    %2275 = vmatprep.subr.mxu0 0.0
    %2276 = vmatpush1.msra.mxu0 0.0
    %2277 = vmatprep.subr.mxu0 0.0
    %2278 = vmatpush1.msra.mxu0 0.0
    %2279 = vmatprep.subr.mxu0 0.0
    %2280 = vmatpush1.msra.mxu0 0.0
    %2281 = vmatprep.subr.mxu0 0.0
    %2282 = vmatpush1.msra.mxu0 0.0
    %2283 = vmatprep.subr.mxu0 0.0
    %2284 = vmatpush1.msra.mxu0 0.0
    %2285 = vmatprep.subr.mxu0 0.0
    %2286 = vmatpush1.msra.mxu0 0.0
    %2287 = vmatprep.subr.mxu0 0.0
    %2288 = vmatpush1.msra.mxu0 0.0
    %2289 = vmatprep.subr.mxu0 0.0
    %2290 = vmatpush1.msra.mxu0 0.0
    %2291 = vmatprep.subr.mxu0 0.0
    %2292 = vmatpush1.msra.mxu0 0.0
    %2293 = vmatprep.subr.mxu0 0.0
    %2294 = vmatpush1.msra.mxu0 0.0
    %2295 = vmatprep.subr.mxu0 0.0
    %2296 = vmatpush1.msra.mxu0 0.0
    %2297 = vmatprep.subr.mxu0 0.0
    %2298 = vmatpush1.msra.mxu0 0.0
    %2299 = vmatprep.subr.mxu0 0.0
    %2300 = vmatpush1.msra.mxu0 0.0
    %2301 = vmatprep.subr.mxu0 0.0
    %2302 = vmatpush1.msra.mxu0 0.0
    %2303 = vmatprep.subr.mxu0 0.0
    %2304 = vmatpush1.msra.mxu0 0.0
    %2305 = vmatprep.subr.mxu0 0.0
    %2306 = vmatpush1.msra.mxu0 0.0
    %2307 = vmatprep.subr.mxu0 0.0
    %2308 = vmatpush1.msra.mxu0 0.0
    %2309 = vmatprep.subr.mxu0 0.0
    %2310 = vmatpush1.msra.mxu0 0.0
    %2311 = vmatprep.subr.mxu0 0.0
    %2312 = vmatpush1.msra.mxu0 0.0
    %2313 = vmatprep.subr.mxu0 0.0
    %2314 = vmatpush1.msra.mxu0 0.0
    %2315 = vmatprep.subr.mxu0 0.0
    %2316 = vmatpush1.msra.mxu0 0.0
    %2317 = vmatprep.subr.mxu0 0.0
    %2318 = vmatpush1.msra.mxu0 0.0
    %2319 = vmatprep.subr.mxu0 0.0
    %2320 = vmatpush1.msra.mxu0 0.0
    %2321 = vmatprep.mubr.f32.mxu0 0.0
    %2322 = vmatmul.mubr.f32.gmra.mrb[0].mxu0 %v2255
    %v2323 = vpop.f32.mrb[0].mxu0
    %v2324 = vadd.f32 %v2253, %v2323
    %v2325 = vpop.f32.mrb[0].mxu0
    %2326 = vdwg.mxu0
    %v2327 = vmax.f32 %v2324, 0.0
    %v2328 = vadd.f32 %v2327, %v2244
    %v2329 = vld [vmem:[%s2 + $0x198] sm:$0xff]
    %v2330 = vld [vmem:[%s2 + $0x1a0] sm:$0xff]
    %v2331 = vld [vmem:[%s2 + $0x1a8] sm:$0xff]
    %v2332 = vld [vmem:[%s2 + $0x1b0] sm:$0xff]
    %v2333 = vld [vmem:[%s3 + $0x60] sm:$0x1]
    %v2334 = vlaneseq
    %v2335 = vshrl.u32 %v2334, 7
    %v2336 = vsub.s32 0, %v2335
    %v2337 = vrot.slane %v2333, %v2336
    %v2339 = vsel %vm123, %v2328, 0
    %2341 = vmatprep.subr.mxu0 0.0
    %2342 = vmatpush1.msra.mxu0 %v2329
    %2343 = vmatprep.subr.mxu0 0.0
    %2344 = vmatpush1.msra.mxu0 %v2330
    %2345 = vmatprep.subr.mxu0 0.0
    %2346 = vmatpush1.msra.mxu0 %v2331
    %2347 = vmatprep.subr.mxu0 0.0
    %2348 = vmatpush1.msra.mxu0 %v2332
    %2349 = vmatprep.subr.mxu0 0.0
    %2350 = vmatpush1.msra.mxu0 0.0
    %2351 = vmatprep.subr.mxu0 0.0
    %2352 = vmatpush1.msra.mxu0 0.0
    %2353 = vmatprep.subr.mxu0 0.0
    %2354 = vmatpush1.msra.mxu0 0.0
    %2355 = vmatprep.subr.mxu0 0.0
    %2356 = vmatpush1.msra.mxu0 0.0
    %2357 = vmatprep.subr.mxu0 0.0
    %2358 = vmatpush1.msra.mxu0 0.0
    %2359 = vmatprep.subr.mxu0 0.0
    %2360 = vmatpush1.msra.mxu0 0.0
    %2361 = vmatprep.subr.mxu0 0.0
    %2362 = vmatpush1.msra.mxu0 0.0
    %2363 = vmatprep.subr.mxu0 0.0
    %2364 = vmatpush1.msra.mxu0 0.0
    %2365 = vmatprep.subr.mxu0 0.0
    %2366 = vmatpush1.msra.mxu0 0.0
    %2367 = vmatprep.subr.mxu0 0.0
    %2368 = vmatpush1.msra.mxu0 0.0
    %2369 = vmatprep.subr.mxu0 0.0
    %2370 = vmatpush1.msra.mxu0 0.0
    %2371 = vmatprep.subr.mxu0 0.0
    %2372 = vmatpush1.msra.mxu0 0.0
    %2373 = vmatprep.subr.mxu0 0.0
    %2374 = vmatpush1.msra.mxu0 0.0
    %2375 = vmatprep.subr.mxu0 0.0
    %2376 = vmatpush1.msra.mxu0 0.0
    %2377 = vmatprep.subr.mxu0 0.0
    %2378 = vmatpush1.msra.mxu0 0.0
    %2379 = vmatprep.subr.mxu0 0.0
    %2380 = vmatpush1.msra.mxu0 0.0
    %2381 = vmatprep.subr.mxu0 0.0
    %2382 = vmatpush1.msra.mxu0 0.0
    %2383 = vmatprep.subr.mxu0 0.0
    %2384 = vmatpush1.msra.mxu0 0.0
    %2385 = vmatprep.subr.mxu0 0.0
    %2386 = vmatpush1.msra.mxu0 0.0
    %2387 = vmatprep.subr.mxu0 0.0
    %2388 = vmatpush1.msra.mxu0 0.0
    %2389 = vmatprep.subr.mxu0 0.0
    %2390 = vmatpush1.msra.mxu0 0.0
    %2391 = vmatprep.subr.mxu0 0.0
    %2392 = vmatpush1.msra.mxu0 0.0
    %2393 = vmatprep.subr.mxu0 0.0
    %2394 = vmatpush1.msra.mxu0 0.0
    %2395 = vmatprep.subr.mxu0 0.0
    %2396 = vmatpush1.msra.mxu0 0.0
    %2397 = vmatprep.subr.mxu0 0.0
    %2398 = vmatpush1.msra.mxu0 0.0
    %2399 = vmatprep.subr.mxu0 0.0
    %2400 = vmatpush1.msra.mxu0 0.0
    %2401 = vmatprep.subr.mxu0 0.0
    %2402 = vmatpush1.msra.mxu0 0.0
    %2403 = vmatprep.subr.mxu0 0.0
    %2404 = vmatpush1.msra.mxu0 0.0
    %2405 = vmatprep.mubr.f32.mxu0 0.0
    %2406 = vmatmul.mubr.f32.gmra.mrb[0].mxu0 %v2339
    %v2407 = vpop.f32.mrb[0].mxu0
    %v2408 = vadd.f32 %v2337, %v2407
    %v2409 = vpop.f32.mrb[0].mxu0
    %2410 = vdwg.mxu0
    %v2411 = vmax.f32 %v2408, 0.0
    %v2412 = vld [vmem:[%s2 + $0x1b8] sm:$0xff]
    %v2413 = vld [vmem:[%s2 + $0x1c0] sm:$0xff]
    %v2414 = vld [vmem:[%s2 + $0x1c8] sm:$0xff]
    %v2415 = vld [vmem:[%s2 + $0x1d0] sm:$0xff]
    %v2416 = vld [vmem:[%s3 + $0x68] sm:$0x1]
    %v2417 = vlaneseq
    %v2418 = vshrl.u32 %v2417, 7
    %v2419 = vsub.s32 0, %v2418
    %v2420 = vrot.slane %v2416, %v2419
    %v2422 = vsel %vm123, %v2411, 0
    %2424 = vmatprep.subr.mxu0 0.0
    %2425 = vmatpush1.msra.mxu0 %v2412
    %2426 = vmatprep.subr.mxu0 0.0
    %2427 = vmatpush1.msra.mxu0 %v2413
    %2428 = vmatprep.subr.mxu0 0.0
    %2429 = vmatpush1.msra.mxu0 %v2414
    %2430 = vmatprep.subr.mxu0 0.0
    %2431 = vmatpush1.msra.mxu0 %v2415
    %2432 = vmatprep.subr.mxu0 0.0
    %2433 = vmatpush1.msra.mxu0 0.0
    %2434 = vmatprep.subr.mxu0 0.0
    %2435 = vmatpush1.msra.mxu0 0.0
    %2436 = vmatprep.subr.mxu0 0.0
    %2437 = vmatpush1.msra.mxu0 0.0
    %2438 = vmatprep.subr.mxu0 0.0
    %2439 = vmatpush1.msra.mxu0 0.0
    %2440 = vmatprep.subr.mxu0 0.0
    %2441 = vmatpush1.msra.mxu0 0.0
    %2442 = vmatprep.subr.mxu0 0.0
    %2443 = vmatpush1.msra.mxu0 0.0
    %2444 = vmatprep.subr.mxu0 0.0
    %2445 = vmatpush1.msra.mxu0 0.0
    %2446 = vmatprep.subr.mxu0 0.0
    %2447 = vmatpush1.msra.mxu0 0.0
    %2448 = vmatprep.subr.mxu0 0.0
    %2449 = vmatpush1.msra.mxu0 0.0
    %2450 = vmatprep.subr.mxu0 0.0
    %2451 = vmatpush1.msra.mxu0 0.0
    %2452 = vmatprep.subr.mxu0 0.0
    %2453 = vmatpush1.msra.mxu0 0.0
    %2454 = vmatprep.subr.mxu0 0.0
    %2455 = vmatpush1.msra.mxu0 0.0
    %2456 = vmatprep.subr.mxu0 0.0
    %2457 = vmatpush1.msra.mxu0 0.0
    %2458 = vmatprep.subr.mxu0 0.0
    %2459 = vmatpush1.msra.mxu0 0.0
    %2460 = vmatprep.subr.mxu0 0.0
    %2461 = vmatpush1.msra.mxu0 0.0
    %2462 = vmatprep.subr.mxu0 0.0
    %2463 = vmatpush1.msra.mxu0 0.0
    %2464 = vmatprep.subr.mxu0 0.0
    %2465 = vmatpush1.msra.mxu0 0.0
    %2466 = vmatprep.subr.mxu0 0.0
    %2467 = vmatpush1.msra.mxu0 0.0
    %2468 = vmatprep.subr.mxu0 0.0
    %2469 = vmatpush1.msra.mxu0 0.0
    %2470 = vmatprep.subr.mxu0 0.0
    %2471 = vmatpush1.msra.mxu0 0.0
    %2472 = vmatprep.subr.mxu0 0.0
    %2473 = vmatpush1.msra.mxu0 0.0
    %2474 = vmatprep.subr.mxu0 0.0
    %2475 = vmatpush1.msra.mxu0 0.0
    %2476 = vmatprep.subr.mxu0 0.0
    %2477 = vmatpush1.msra.mxu0 0.0
    %2478 = vmatprep.subr.mxu0 0.0
    %2479 = vmatpush1.msra.mxu0 0.0
    %2480 = vmatprep.subr.mxu0 0.0
    %2481 = vmatpush1.msra.mxu0 0.0
    %2482 = vmatprep.subr.mxu0 0.0
    %2483 = vmatpush1.msra.mxu0 0.0
    %2484 = vmatprep.subr.mxu0 0.0
    %2485 = vmatpush1.msra.mxu0 0.0
    %2486 = vmatprep.subr.mxu0 0.0
    %2487 = vmatpush1.msra.mxu0 0.0
    %2488 = vmatprep.mubr.f32.mxu0 0.0
    %2489 = vmatmul.mubr.f32.gmra.mrb[0].mxu0 %v2422
    %v2490 = vpop.f32.mrb[0].mxu0
    %v2491 = vadd.f32 %v2420, %v2490
    %v2492 = vpop.f32.mrb[0].mxu0
    %2493 = vdwg.mxu0
    %s2494 = scalar_lea.vmem [#allocation2], 8
    %2495 = vst.msk [vmem:[%s2494] sm:$0xff] %vm30, %v2491
    // Predicated region
    $region18: #{set_transformer_vae_forward.1} parent=1 // pred_check
      _
    $region19: #{set_transformer_vae_forward.1} parent=1 // pred_check_branch
      %2497 = sbr.rel (0) target = $region21
    $region20: #{set_transformer_vae_forward.1} parent=1 // pred_region
      %s2499 = ssub.s32 256, 256
      %2500 = vsyncadd [#allocation3], %s2499
      %s2501 = sshll.u32 [#allocation2], 4
      %s2502 = int_to_ptr.vmem [resolvable:$true] %s2501
      %2507 = dma.vmem_to_hbm [thread:$0]  %s2502, 256, %s4, [#allocation3], 128, 128, 8
    $region21: #{set_transformer_vae_forward.1} parent=1 // pred_fallthru
      _
    // Predicated region
    $region22: #{set_transformer_vae_forward.1} parent=1 // pred_check
      _
    $region23: #{set_transformer_vae_forward.1} parent=1 // pred_check_branch
      %2509 = sbr.rel (0) target = $region25
    $region24: #{set_transformer_vae_forward.1} parent=1 // pred_region
      %s2511 = ssub.s32 32, 32
      %2512 = vsyncadd [#allocation5], %s2511
      %s2514 = sshll.u32 [#allocation4], 4
      %s2515 = int_to_ptr.vmem [resolvable:$true] %s2514
      %2517 = dma.vmem_to_hbm [thread:$0]  %s2515, 32, %s5, [#allocation5]
    $region25: #{set_transformer_vae_forward.1} parent=1 // pred_fallthru
      _
    // Predicated region
    $region26: #{set_transformer_vae_forward.1} parent=1 // pred_check
      _
    $region27: #{set_transformer_vae_forward.1} parent=1 // pred_check_branch
      %2519 = sbr.rel (0) target = $region29
    $region28: #{set_transformer_vae_forward.1} parent=1 // pred_region
      %s2521 = ssub.s32 32, 32
      %2522 = vsyncadd [#allocation5], %s2521
      %s2524 = sshll.u32 [#allocation6], 4
      %s2525 = int_to_ptr.vmem [resolvable:$true] %s2524
      %2527 = dma.vmem_to_hbm [thread:$0]  %s2525, 32, %s6, [#allocation5]
    $region29: #{set_transformer_vae_forward.1} parent=1 // pred_fallthru
      _
    // Predicated region
    $region30: #{set_transformer_vae_forward.1} parent=1 // pred_check
      _
    $region31: #{set_transformer_vae_forward.1} parent=1 // pred_check_branch
      %2529 = sbr.rel (0) target = $region33
    $region32: #{set_transformer_vae_forward.1} parent=1 // pred_region
      %2530 = dma.done [#allocation3], 256
    $region33: #{set_transformer_vae_forward.1} parent=1 // pred_fallthru
      _
    // Predicated region
    $region34: #{set_transformer_vae_forward.1} parent=1 // pred_check
      _
    $region35: #{set_transformer_vae_forward.1} parent=1 // pred_check_branch
      %2532 = sbr.rel (0) target = $region37
    $region36: #{set_transformer_vae_forward.1} parent=1 // pred_region
      %2533 = dma.done [#allocation5], 32
    $region37: #{set_transformer_vae_forward.1} parent=1 // pred_fallthru
      _
    // Predicated region
    $region38: #{set_transformer_vae_forward.1} parent=1 // pred_check
      _
    $region39: #{set_transformer_vae_forward.1} parent=1 // pred_check_branch
      %2535 = sbr.rel (0) target = $region41
    $region40: #{set_transformer_vae_forward.1} parent=1 // pred_region
      %2536 = dma.done [#allocation5], 32
    $region41: #{set_transformer_vae_forward.1} parent=1 // pred_fallthru
      _
    %2537 = vsyncpa [#allocation3], 1
    %2538 = vsyncpa [#allocation5], 1

</llo_original>
